<compile_context>
chip_gen: v6e
topology: v6e:2x2x1
jax: 0.10.0
libtpu: 0.0.40
codegen_flags: <defaults>
</compile_context>

<pallas_src>
import numpy as np
import jax
import jax.numpy as jnp
from jax import lax
from jax.experimental import pallas as pl
from jax.experimental.pallas import tpu as pltpu

EPS = 1e-5
KS = (3, 5, 7)            # branch1, branch2, branch3 conv kernel sizes
H = W = 16                # spatial size assumed by the constant pooling maps
P1 = H * W                # conv1 output positions per sample (stride 1, same pad)
HP = 5                    # pool1 output spatial size (16 -> 5, kernel 3 stride 3)
NPOOL = HP * HP           # 25 pooled positions
Q = 9                     # conv2 positions used by pool2 (3x3 window) == GAP support
C_IN = 3
C1 = 32                   # conv1 out channels
C2 = 64                   # conv2 out channels
NUM_CLASSES = 3
K7 = 7
CK7 = K7 * K7 * C_IN      # 147 = fused conv1 im2col width (k=7 superset window)
CK7P = 256                # padded to the MXU-friendly contraction width


def _round_up(v, m):
    return ((v + m - 1) // m) * m


# channel-blocks per branch for the conv2 contraction, padded so B*32 % 128 == 0
BLK = {k: _round_up(k * k * C1, 128) // C1 for k in KS}   # {3: 12, 5: 28, 7: 52}


# ----------------------------- Pallas kernels ------------------------------

def _stage1_kernel(patch_ref, w1_ref, b1_ref, pool_ref, g3_ref, g5_ref, g7_ref,
                   u3_ref, u5_ref, u7_ref):
    """Per sample: fused conv1 (one im2col matmul for all 3 branches) + folded
    BN1 + ReLU, pool1 as one small constant matmul, then per-branch 0/1 gather
    matmuls that emit the conv2 im2col patches in (q, block)-row order."""
    z = jnp.dot(patch_ref[0], w1_ref[...],
                preferred_element_type=jnp.float32)              # (256, 96)
    z = jnp.maximum(z + b1_ref[...], 0.0)
    pooled = jnp.dot(pool_ref[...], z,
                     preferred_element_type=jnp.float32)         # (25, 96)
    u3_ref[0] = jnp.dot(g3_ref[...], pooled[:, 0:C1],
                        preferred_element_type=jnp.float32)      # (108, 32)
    u5_ref[0] = jnp.dot(g5_ref[...], pooled[:, C1:2 * C1],
                        preferred_element_type=jnp.float32)      # (252, 32)
    u7_ref[0] = jnp.dot(g7_ref[...], pooled[:, 2 * C1:3 * C1],
                        preferred_element_type=jnp.float32)      # (468, 32)


def _stage2_kernel(p3_ref, p5_ref, p7_ref,
                   w3_ref, b3_ref, a3_ref,
                   w5_ref, b5_ref, a5_ref,
                   w7_ref, b7_ref, a7_ref,
                   f1b_ref, f2w_ref, f2b_ref, out_ref):
    """Per sample, per branch: conv2 matmul + folded BN2 + ReLU + fused
    pool2/GAP (mean over the 9 positions) + per-branch fc1 block; then ReLU
    and fc2 -> logits."""
    h = f1b_ref[...]                                             # (1, 128)
    for p_ref, w_ref, b_ref, a_ref in ((p3_ref, w3_ref, b3_ref, a3_ref),
                                       (p5_ref, w5_ref, b5_ref, a5_ref),
                                       (p7_ref, w7_ref, b7_ref, a7_ref)):
        c2 = jnp.dot(p_ref[0], w_ref[...],
                     preferred_element_type=jnp.float32)         # (9, 64)
        c2 = jnp.maximum(c2 + b_ref[...], 0.0)
        feat = jnp.sum(c2, axis=0, keepdims=True) * (1.0 / Q)    # (1, 64)
        h = h + jnp.dot(feat, a_ref[...],
                        preferred_element_type=jnp.float32)      # (1, 128)
    h = jnp.maximum(h, 0.0)
    out_ref[0] = (jnp.dot(h, f2w_ref[...], preferred_element_type=jnp.float32)
                  + f2b_ref[...]).astype(out_ref.dtype)          # (1, 3)


def _const_spec(arr):
    nd = arr.ndim
    return pl.BlockSpec(arr.shape, lambda b: (0,) * nd)


# --------------------- constant pooling / gather matrices -------------------

def _build_pool1():
    """AvgPool2d(3,3) on the 16x16 conv1 map -> 5x5, as a (25, 256) matmul."""
    m = np.zeros((NPOOL, P1), np.float32)
    for a in range(HP):
        for b in range(HP):
            for dh in range(3):
                for dw in range(3):
                    m[a * HP + b, (3 * a + dh) * W + (3 * b + dw)] = 1.0 / 9.0
    return m


def _build_gather(k):
    """0/1 gather: (Q*B, 25) mapping the pooled 5x5 map to the conv2 im2col
    patch rows; rows ordered (q-major, block-minor) so a row-major reshape of
    the (Q*B, 32) result is the (Q, B*32) zero-padded wide patch matrix."""
    pad = k // 2
    blocks = BLK[k]
    g = np.zeros((Q * blocks, NPOOL), np.float32)
    for i in range(3):
        for j in range(3):
            q = i * 3 + j
            for kh in range(k):
                for kw in range(k):
                    a = i + kh - pad
                    b = j + kw - pad
                    if 0 <= a < HP and 0 <= b < HP:
                        g[q * blocks + kh * k + kw, a * HP + b] = 1.0
    return g


# -------------------- one-time parameter folding (hoisted) ------------------

def prepare_params(p):
    prep = {
        "pool1": jnp.asarray(_build_pool1()),
        "fc1b": p["fc1_b"].reshape(1, -1),
        "fc2w": p["fc2_w"].T,                                    # (128, 3)
        "fc2b": p["fc2_b"].reshape(1, -1),
    }

    # Fused conv1: embed each branch's folded kxk weight into the 7x7 patch
    # layout (the kxk window sits centered inside the 7x7 superset window).
    w1_cols, b1_cols = [], []
    for bi, k in enumerate(KS, start=1):
        off = (K7 - k) // 2
        s1 = p[f"b{bi}_bn1_g"] / jnp.sqrt(p[f"b{bi}_bn1_v"] + EPS)
        w1 = jnp.transpose(p[f"b{bi}_conv1_w"], (2, 3, 1, 0))    # (k,k,Cin,32)
        w1 = jnp.pad(w1, ((off, off), (off, off), (0, 0), (0, 0)))
        w1_cols.append(w1.reshape(CK7, C1) * s1[None, :])
        b1_cols.append((p[f"b{bi}_conv1_b"] - p[f"b{bi}_bn1_m"]) * s1
                       + p[f"b{bi}_bn1_b"])
    w1_all = jnp.concatenate(w1_cols, axis=1)                    # (147, 96)
    prep["w1_all"] = jnp.pad(w1_all, ((0, CK7P - CK7), (0, 0)))  # (256, 96)
    prep["b1_all"] = jnp.concatenate(b1_cols).reshape(1, 3 * C1)

    for bi, k in enumerate(KS, start=1):
        ck2 = k * k * C1
        ck2p = BLK[k] * C1
        s2 = p[f"b{bi}_bn2_g"] / jnp.sqrt(p[f"b{bi}_bn2_v"] + EPS)
        w2 = jnp.transpose(p[f"b{bi}_conv2_w"], (2, 3, 1, 0)).reshape(ck2, C2)
        w2 = w2 * s2[None, :]
        prep[f"w2_{k}"] = jnp.pad(w2, ((0, ck2p - ck2), (0, 0)))  # (B*32, 64)
        prep[f"b2_{k}"] = ((p[f"b{bi}_conv2_b"] - p[f"b{bi}_bn2_m"]) * s2
                           + p[f"b{bi}_bn2_b"]).reshape(1, C2)
        prep[f"fc1w_{k}"] = p["fc1_w"][:, C2 * (bi - 1): C2 * bi].T   # (64,128)
        prep[f"g_{k}"] = jnp.asarray(_build_gather(k))
    return prep


# ------------------------------ forward pass ---------------------------------

def multiscale_forward(x, prep):
    n = x.shape[0]
    assert x.shape[1:] == (C_IN, H, W), "constant pooling maps assume 3x16x16"

    # Host-side: ONE k=7 im2col (the k=3/k=5 windows are sub-windows).
    x_cl = jnp.transpose(x, (0, 2, 3, 1))
    xp = jnp.pad(x_cl, ((0, 0), (3, 3), (3, 3), (0, 0)))
    idx = np.arange(H)[:, None] + np.arange(K7)[None, :]              # (16, 7)
    pk = xp[:, idx[:, None, :, None], idx[None, :, None, :], :]       # (n,16,16,7,7,3)
    patches = pk.reshape(n, P1, CK7)
    patches = jnp.pad(patches, ((0, 0), (0, 0), (0, CK7P - CK7)))     # (n,256,256)

    cparams = pltpu.CompilerParams(dimension_semantics=("parallel",),
                                   vmem_limit_bytes=32 * 1024 * 1024)

    # ----- stage 1: conv1 (fused) + BN1 + ReLU + pool1 + conv2 patch gather --
    s1_consts = [prep["w1_all"], prep["b1_all"], prep["pool1"],
                 prep["g_3"], prep["g_5"], prep["g_7"]]
    u_shapes = tuple(jax.ShapeDtypeStruct((n, Q * BLK[k], C1), jnp.float32)
                     for k in KS)
    u3, u5, u7 = pl.pallas_call(
        _stage1_kernel,
        grid=(n,),
        in_specs=[pl.BlockSpec((1, P1, CK7P), lambda b: (b, 0, 0))]
                 + [_const_spec(c) for c in s1_consts],
        out_specs=tuple(pl.BlockSpec((1, Q * BLK[k], C1), lambda b: (b, 0, 0))
                        for k in KS),
        out_shape=u_shapes,
        compiler_params=cparams,
    )(patches, *s1_consts)

    # Free row-major reshape (HBM bitcast): (n, 9*B, 32) -> (n, 9, B*32) is the
    # zero-padded, 128-aligned conv2 im2col patch matrix per branch.
    wides = [u.reshape(n, Q, BLK[k] * C1) for u, k in zip((u3, u5, u7), KS)]

    # ----- stage 2: conv2 + BN2 + ReLU + pool2/GAP + fc1 + ReLU + fc2 --------
    s2_consts = []
    for k in KS:
        s2_consts += [prep[f"w2_{k}"], prep[f"b2_{k}"], prep[f"fc1w_{k}"]]
    s2_consts += [prep["fc1b"], prep["fc2w"], prep["fc2b"]]

    out = pl.pallas_call(
        _stage2_kernel,
        grid=(n,),
        in_specs=[pl.BlockSpec((1, Q, BLK[k] * C1), lambda b: (b, 0, 0))
                  for k in KS]
                 + [_const_spec(c) for c in s2_consts],
        out_specs=pl.BlockSpec((1, 1, NUM_CLASSES), lambda b: (b, 0, 0)),
        out_shape=jax.ShapeDtypeStruct((n, 1, NUM_CLASSES), jnp.float32),
        compiler_params=cparams,
    )(*wides, *s2_consts)
    return out.reshape(n, NUM_CLASSES)


# --------------------------- deterministic params ---------------------------

def init_params(key):
    keys = jax.random.split(key, 64)
    it = iter(keys)

    def nrm(shape, scale=0.05):
        return jax.random.normal(next(it), shape, jnp.float32) * scale

    def uni(shape, lo=0.5, hi=1.5):
        return jax.random.uniform(next(it), shape, jnp.float32, lo, hi)

    p = {}
    for bi, k in enumerate(KS, start=1):
        p[f"b{bi}_conv1_w"] = nrm((C1, C_IN, k, k))
        p[f"b{bi}_conv1_b"] = nrm((C1,))
        p[f"b{bi}_bn1_g"] = uni((C1,))
        p[f"b{bi}_bn1_b"] = nrm((C1,))
        p[f"b{bi}_bn1_m"] = nrm((C1,))
        p[f"b{bi}_bn1_v"] = uni((C1,))
        p[f"b{bi}_conv2_w"] = nrm((C2, C1, k, k))
        p[f"b{bi}_conv2_b"] = nrm((C2,))
        p[f"b{bi}_bn2_g"] = uni((C2,))
        p[f"b{bi}_bn2_b"] = nrm((C2,))
        p[f"b{bi}_bn2_m"] = nrm((C2,))
        p[f"b{bi}_bn2_v"] = uni((C2,))
    p["fc1_w"] = nrm((128, 3 * C2))
    p["fc1_b"] = nrm((128,))
    p["fc2_w"] = nrm((NUM_CLASSES, 128))
    p["fc2_b"] = nrm((NUM_CLASSES,))
    return p


# ------------------------------ pure-JAX ref ---------------------------------

def reference_forward(x, p):
    def bn(y, g, b, m, v):
        return ((y - m[None, :, None, None])
                / jnp.sqrt(v + EPS)[None, :, None, None]
                * g[None, :, None, None] + b[None, :, None, None])

    def avgpool3(y):
        n, c, hh, ww = y.shape
        ho, wo = hh // 3, ww // 3
        y = y[:, :, :ho * 3, :wo * 3].reshape(n, c, ho, 3, wo, 3)
        return y.mean(axis=(3, 5))

    feats = []
    for bi, k in enumerate(KS, start=1):
        pad = k // 2
        y = lax.conv_general_dilated(
            x, p[f"b{bi}_conv1_w"], (1, 1), [(pad, pad), (pad, pad)],
            dimension_numbers=("NCHW", "OIHW", "NCHW"),
            precision=lax.Precision.HIGHEST)
        y = y + p[f"b{bi}_conv1_b"][None, :, None, None]
        y = jnp.maximum(bn(y, p[f"b{bi}_bn1_g"], p[f"b{bi}_bn1_b"],
                           p[f"b{bi}_bn1_m"], p[f"b{bi}_bn1_v"]), 0.0)
        y = avgpool3(y)
        y = lax.conv_general_dilated(
            y, p[f"b{bi}_conv2_w"], (1, 1), [(pad, pad), (pad, pad)],
            dimension_numbers=("NCHW", "OIHW", "NCHW"),
            precision=lax.Precision.HIGHEST)
        y = y + p[f"b{bi}_conv2_b"][None, :, None, None]
        y = jnp.maximum(bn(y, p[f"b{bi}_bn2_g"], p[f"b{bi}_bn2_b"],
                           p[f"b{bi}_bn2_m"], p[f"b{bi}_bn2_v"]), 0.0)
        y = avgpool3(y)                      # (n, 64, 1, 1)
        feats.append(y.mean(axis=(2, 3)))    # AdaptiveAvgPool(1,1) + flatten
    feat = jnp.concatenate(feats, axis=1)    # (n, 192)
    h = jnp.maximum(jnp.dot(feat, p["fc1_w"].T,
                            precision=lax.Precision.HIGHEST) + p["fc1_b"], 0.0)
    # Dropout layers are identity in eval mode.
    return jnp.dot(h, p["fc2_w"].T,
                   precision=lax.Precision.HIGHEST) + p["fc2_b"]


# ---------------------------------- main -------------------------------------

if __name__ == "__main__":
    key = jax.random.PRNGKey(0)
    kx, kp = jax.random.split(key)
    x = jax.random.normal(kx, (2, C_IN, H, W), jnp.float32)   # NCHW
    params = init_params(kp)

    prep = prepare_params(params)               # one-time folding (hoisted)
    fwd = jax.jit(multiscale_forward)

    out = jax.block_until_ready(fwd(x, prep))
    ref = jax.block_until_ready(reference_forward(x, params))

    assert out.shape == (2, NUM_CLASSES)
    assert jnp.allclose(out, ref, atol=1e-3, rtol=1e-3), (out, ref)

    print("KERNEL_OK")
</pallas_src>

<mosaic_0001>
module attributes {stable_mosaic.version = 11 : i64} {
  func.func @_stage1_kernel(%arg0: i32, %arg1: memref<1x256x256xf32, #tpu.memory_space<vmem>>, %arg2: memref<256x96xf32, #tpu.memory_space<vmem>>, %arg3: memref<1x96xf32, #tpu.memory_space<vmem>>, %arg4: memref<25x256xf32, #tpu.memory_space<vmem>>, %arg5: memref<108x25xf32, #tpu.memory_space<vmem>>, %arg6: memref<252x25xf32, #tpu.memory_space<vmem>>, %arg7: memref<468x25xf32, #tpu.memory_space<vmem>>, %arg8: memref<1x108x32xf32, #tpu.memory_space<vmem>>, %arg9: memref<1x252x32xf32, #tpu.memory_space<vmem>>, %arg10: memref<1x468x32xf32, #tpu.memory_space<vmem>>) attributes {dimension_semantics = [#tpu.dimension_semantics<parallel>], iteration_bounds = array<i64: 2>, scalar_prefetch = 0 : i64, scratch_operands = 0 : i64, tpu.core_type = #tpu.core_type<tc>, window_params = [{transform_indices = @transform_0, window_bounds = array<i64: 1, 256, 256>}, {pipeline_mode = #tpu.pipeline_mode<synchronous>, transform_indices = @transform_1, window_bounds = array<i64: 256, 96>}, {pipeline_mode = #tpu.pipeline_mode<synchronous>, transform_indices = @transform_2, window_bounds = array<i64: 1, 96>}, {pipeline_mode = #tpu.pipeline_mode<synchronous>, transform_indices = @transform_3, window_bounds = array<i64: 25, 256>}, {pipeline_mode = #tpu.pipeline_mode<synchronous>, transform_indices = @transform_4, window_bounds = array<i64: 108, 25>}, {pipeline_mode = #tpu.pipeline_mode<synchronous>, transform_indices = @transform_5, window_bounds = array<i64: 252, 25>}, {pipeline_mode = #tpu.pipeline_mode<synchronous>, transform_indices = @transform_6, window_bounds = array<i64: 468, 25>}, {transform_indices = @transform_7, window_bounds = array<i64: 1, 108, 32>}, {transform_indices = @transform_8, window_bounds = array<i64: 1, 252, 32>}, {transform_indices = @transform_9, window_bounds = array<i64: 1, 468, 32>}]} {
    %c0 = arith.constant 0 : index
    %c0_0 = arith.constant 0 : index
    %c0_1 = arith.constant 0 : index
    %0 = vector.load %arg1[%c0, %c0_0, %c0_1] : memref<1x256x256xf32, #tpu.memory_space<vmem>>, vector<1x256x256xf32>
    %1 = vector.shape_cast %0 : vector<1x256x256xf32> to vector<256x256xf32>
    %c0_2 = arith.constant 0 : index
    %c0_3 = arith.constant 0 : index
    %2 = vector.load %arg2[%c0_2, %c0_3] : memref<256x96xf32, #tpu.memory_space<vmem>>, vector<256x96xf32>
    %cst = arith.constant dense<0.000000e+00> : vector<256x96xf32>
    %3 = tpu.matmul %1, %2, %cst {dimension_numbers = #tpu.dot_dimension_numbers<[1], [0], [0], [1], [0, 0, 1, 1], [], []>} : vector<256x256xf32>, vector<256x96xf32>, vector<256x96xf32> -> vector<256x96xf32>
    %c0_4 = arith.constant 0 : index
    %c0_5 = arith.constant 0 : index
    %4 = vector.load %arg3[%c0_4, %c0_5] : memref<1x96xf32, #tpu.memory_space<vmem>>, vector<1x96xf32>
    %5 = vector.broadcast %4 : vector<1x96xf32> to vector<256x96xf32>
    %6 = arith.addf %3, %5 : vector<256x96xf32>
    %cst_6 = arith.constant 0.000000e+00 : f32
    %7 = vector.broadcast %cst_6 : f32 to vector<256x96xf32>
    %8 = arith.maximumf %6, %7 : vector<256x96xf32>
    %c0_7 = arith.constant 0 : index
    %c0_8 = arith.constant 0 : index
    %9 = vector.load %arg4[%c0_7, %c0_8] : memref<25x256xf32, #tpu.memory_space<vmem>>, vector<25x256xf32>
    %cst_9 = arith.constant dense<0.000000e+00> : vector<25x96xf32>
    %10 = tpu.matmul %9, %8, %cst_9 {dimension_numbers = #tpu.dot_dimension_numbers<[1], [0], [0], [1], [0, 0, 1, 1], [], []>} : vector<25x256xf32>, vector<256x96xf32>, vector<25x96xf32> -> vector<25x96xf32>
    %c0_10 = arith.constant 0 : index
    %c0_11 = arith.constant 0 : index
    %11 = vector.load %arg5[%c0_10, %c0_11] : memref<108x25xf32, #tpu.memory_space<vmem>>, vector<108x25xf32>
    %12 = vector.extract_strided_slice %10 {offsets = [0, 0], sizes = [25, 32], strides = [1, 1]} : vector<25x96xf32> to vector<25x32xf32>
    %cst_12 = arith.constant dense<0.000000e+00> : vector<108x32xf32>
    %13 = tpu.matmul %11, %12, %cst_12 {dimension_numbers = #tpu.dot_dimension_numbers<[1], [0], [0], [1], [0, 0, 1, 1], [], []>} : vector<108x25xf32>, vector<25x32xf32>, vector<108x32xf32> -> vector<108x32xf32>
    %c0_13 = arith.constant 0 : index
    %c0_14 = arith.constant 0 : index
    %c0_15 = arith.constant 0 : index
    %14 = vector.load %arg8[%c0_13, %c0_14, %c0_15] : memref<1x108x32xf32, #tpu.memory_space<vmem>>, vector<1x108x32xf32>
    %15 = vector.shape_cast %14 : vector<1x108x32xf32> to vector<108x32xf32>
    %16 = vector.shape_cast %13 : vector<108x32xf32> to vector<1x108x32xf32>
    tpu.vector_store %arg8[%c0_13, %c0_14, %c0_15], %16 {strides = array<i32>} : memref<1x108x32xf32, #tpu.memory_space<vmem>>, vector<1x108x32xf32>,
    %c0_16 = arith.constant 0 : index
    %c0_17 = arith.constant 0 : index
    %17 = vector.load %arg6[%c0_16, %c0_17] : memref<252x25xf32, #tpu.memory_space<vmem>>, vector<252x25xf32>
    %18 = vector.extract_strided_slice %10 {offsets = [0, 32], sizes = [25, 32], strides = [1, 1]} : vector<25x96xf32> to vector<25x32xf32>
    %cst_18 = arith.constant dense<0.000000e+00> : vector<252x32xf32>
    %19 = tpu.matmul %17, %18, %cst_18 {dimension_numbers = #tpu.dot_dimension_numbers<[1], [0], [0], [1], [0, 0, 1, 1], [], []>} : vector<252x25xf32>, vector<25x32xf32>, vector<252x32xf32> -> vector<252x32xf32>
    %c0_19 = arith.constant 0 : index
    %c0_20 = arith.constant 0 : index
    %c0_21 = arith.constant 0 : index
    %20 = vector.load %arg9[%c0_19, %c0_20, %c0_21] : memref<1x252x32xf32, #tpu.memory_space<vmem>>, vector<1x252x32xf32>
    %21 = vector.shape_cast %20 : vector<1x252x32xf32> to vector<252x32xf32>
    %22 = vector.shape_cast %19 : vector<252x32xf32> to vector<1x252x32xf32>
    tpu.vector_store %arg9[%c0_19, %c0_20, %c0_21], %22 {strides = array<i32>} : memref<1x252x32xf32, #tpu.memory_space<vmem>>, vector<1x252x32xf32>,
    %c0_22 = arith.constant 0 : index
    %c0_23 = arith.constant 0 : index
    %23 = vector.load %arg7[%c0_22, %c0_23] : memref<468x25xf32, #tpu.memory_space<vmem>>, vector<468x25xf32>
    %24 = vector.extract_strided_slice %10 {offsets = [0, 64], sizes = [25, 32], strides = [1, 1]} : vector<25x96xf32> to vector<25x32xf32>
    %cst_24 = arith.constant dense<0.000000e+00> : vector<468x32xf32>
    %25 = tpu.matmul %23, %24, %cst_24 {dimension_numbers = #tpu.dot_dimension_numbers<[1], [0], [0], [1], [0, 0, 1, 1], [], []>} : vector<468x25xf32>, vector<25x32xf32>, vector<468x32xf32> -> vector<468x32xf32>
    %c0_25 = arith.constant 0 : index
    %c0_26 = arith.constant 0 : index
    %c0_27 = arith.constant 0 : index
    %26 = vector.load %arg10[%c0_25, %c0_26, %c0_27] : memref<1x468x32xf32, #tpu.memory_space<vmem>>, vector<1x468x32xf32>
    %27 = vector.shape_cast %26 : vector<1x468x32xf32> to vector<468x32xf32>
    %28 = vector.shape_cast %25 : vector<468x32xf32> to vector<1x468x32xf32>
    tpu.vector_store %arg10[%c0_25, %c0_26, %c0_27], %28 {strides = array<i32>} : memref<1x468x32xf32, #tpu.memory_space<vmem>>, vector<1x468x32xf32>,
    return
  }
  func.func @transform_0(%arg0: i32) -> (i32, i32, i32) {
    %c0_i32 = arith.constant 0 : i32
    %c0_i32_0 = arith.constant 0 : i32
    %c0_i32_1 = arith.constant 0 : i32
    return %arg0, %c0_i32, %c0_i32_0 : i32, i32, i32
  }
  func.func @transform_1(%arg0: i32) -> (i32, i32) {
    %c0_i32 = arith.constant 0 : i32
    %c0_i32_0 = arith.constant 0 : i32
    %c0_i32_1 = arith.constant 0 : i32
    return %c0_i32, %c0_i32_0 : i32, i32
  }
  func.func @transform_2(%arg0: i32) -> (i32, i32) {
    %c0_i32 = arith.constant 0 : i32
    %c0_i32_0 = arith.constant 0 : i32
    %c0_i32_1 = arith.constant 0 : i32
    return %c0_i32, %c0_i32_0 : i32, i32
  }
  func.func @transform_3(%arg0: i32) -> (i32, i32) {
    %c0_i32 = arith.constant 0 : i32
    %c0_i32_0 = arith.constant 0 : i32
    %c0_i32_1 = arith.constant 0 : i32
    return %c0_i32, %c0_i32_0 : i32, i32
  }
  func.func @transform_4(%arg0: i32) -> (i32, i32) {
    %c0_i32 = arith.constant 0 : i32
    %c0_i32_0 = arith.constant 0 : i32
    %c0_i32_1 = arith.constant 0 : i32
    return %c0_i32, %c0_i32_0 : i32, i32
  }
  func.func @transform_5(%arg0: i32) -> (i32, i32) {
    %c0_i32 = arith.constant 0 : i32
    %c0_i32_0 = arith.constant 0 : i32
    %c0_i32_1 = arith.constant 0 : i32
    return %c0_i32, %c0_i32_0 : i32, i32
  }
  func.func @transform_6(%arg0: i32) -> (i32, i32) {
    %c0_i32 = arith.constant 0 : i32
    %c0_i32_0 = arith.constant 0 : i32
    %c0_i32_1 = arith.constant 0 : i32
    return %c0_i32, %c0_i32_0 : i32, i32
  }
  func.func @transform_7(%arg0: i32) -> (i32, i32, i32) {
    %c0_i32 = arith.constant 0 : i32
    %c0_i32_0 = arith.constant 0 : i32
    %c0_i32_1 = arith.constant 0 : i32
    return %arg0, %c0_i32, %c0_i32_0 : i32, i32, i32
  }
  func.func @transform_8(%arg0: i32) -> (i32, i32, i32) {
    %c0_i32 = arith.constant 0 : i32
    %c0_i32_0 = arith.constant 0 : i32
    %c0_i32_1 = arith.constant 0 : i32
    return %arg0, %c0_i32, %c0_i32_0 : i32, i32, i32
  }
  func.func @transform_9(%arg0: i32) -> (i32, i32, i32) {
    %c0_i32 = arith.constant 0 : i32
    %c0_i32_0 = arith.constant 0 : i32
    %c0_i32_1 = arith.constant 0 : i32
    return %arg0, %c0_i32, %c0_i32_0 : i32, i32, i32
  }
}

module attributes {stable_mosaic.version = 11 : i64} {
  func.func @_stage2_kernel(%arg0: i32, %arg1: memref<1x9x384xf32, #tpu.memory_space<vmem>>, %arg2: memref<1x9x896xf32, #tpu.memory_space<vmem>>, %arg3: memref<1x9x1664xf32, #tpu.memory_space<vmem>>, %arg4: memref<384x64xf32, #tpu.memory_space<vmem>>, %arg5: memref<1x64xf32, #tpu.memory_space<vmem>>, %arg6: memref<64x128xf32, #tpu.memory_space<vmem>>, %arg7: memref<896x64xf32, #tpu.memory_space<vmem>>, %arg8: memref<1x64xf32, #tpu.memory_space<vmem>>, %arg9: memref<64x128xf32, #tpu.memory_space<vmem>>, %arg10: memref<1664x64xf32, #tpu.memory_space<vmem>>, %arg11: memref<1x64xf32, #tpu.memory_space<vmem>>, %arg12: memref<64x128xf32, #tpu.memory_space<vmem>>, %arg13: memref<1x128xf32, #tpu.memory_space<vmem>>, %arg14: memref<128x3xf32, #tpu.memory_space<vmem>>, %arg15: memref<1x3xf32, #tpu.memory_space<vmem>>, %arg16: memref<1x1x3xf32, #tpu.memory_space<vmem>>) attributes {dimension_semantics = [#tpu.dimension_semantics<parallel>], iteration_bounds = array<i64: 2>, scalar_prefetch = 0 : i64, scratch_operands = 0 : i64, tpu.core_type = #tpu.core_type<tc>, window_params = [{transform_indices = @transform_0, window_bounds = array<i64: 1, 9, 384>}, {transform_indices = @transform_1, window_bounds = array<i64: 1, 9, 896>}, {transform_indices = @transform_2, window_bounds = array<i64: 1, 9, 1664>}, {pipeline_mode = #tpu.pipeline_mode<synchronous>, transform_indices = @transform_3, window_bounds = array<i64: 384, 64>}, {pipeline_mode = #tpu.pipeline_mode<synchronous>, transform_indices = @transform_4, window_bounds = array<i64: 1, 64>}, {pipeline_mode = #tpu.pipeline_mode<synchronous>, transform_indices = @transform_5, window_bounds = array<i64: 64, 128>}, {pipeline_mode = #tpu.pipeline_mode<synchronous>, transform_indices = @transform_6, window_bounds = array<i64: 896, 64>}, {pipeline_mode = #tpu.pipeline_mode<synchronous>, transform_indices = @transform_7, window_bounds = array<i64: 1, 64>}, {pipeline_mode = #tpu.pipeline_mode<synchronous>, transform_indices = @transform_8, window_bounds = array<i64: 64, 128>}, {pipeline_mode = #tpu.pipeline_mode<synchronous>, transform_indices = @transform_9, window_bounds = array<i64: 1664, 64>}, {pipeline_mode = #tpu.pipeline_mode<synchronous>, transform_indices = @transform_10, window_bounds = array<i64: 1, 64>}, {pipeline_mode = #tpu.pipeline_mode<synchronous>, transform_indices = @transform_11, window_bounds = array<i64: 64, 128>}, {pipeline_mode = #tpu.pipeline_mode<synchronous>, transform_indices = @transform_12, window_bounds = array<i64: 1, 128>}, {pipeline_mode = #tpu.pipeline_mode<synchronous>, transform_indices = @transform_13, window_bounds = array<i64: 128, 3>}, {pipeline_mode = #tpu.pipeline_mode<synchronous>, transform_indices = @transform_14, window_bounds = array<i64: 1, 3>}, {transform_indices = @transform_15, window_bounds = array<i64: 1, 1, 3>}]} {
    %c0 = arith.constant 0 : index
    %c0_0 = arith.constant 0 : index
    %0 = vector.load %arg13[%c0, %c0_0] : memref<1x128xf32, #tpu.memory_space<vmem>>, vector<1x128xf32>
    %c0_1 = arith.constant 0 : index
    %c0_2 = arith.constant 0 : index
    %c0_3 = arith.constant 0 : index
    %1 = vector.load %arg1[%c0_1, %c0_2, %c0_3] : memref<1x9x384xf32, #tpu.memory_space<vmem>>, vector<1x9x384xf32>
    %2 = vector.shape_cast %1 : vector<1x9x384xf32> to vector<9x384xf32>
    %c0_4 = arith.constant 0 : index
    %c0_5 = arith.constant 0 : index
    %3 = vector.load %arg4[%c0_4, %c0_5] : memref<384x64xf32, #tpu.memory_space<vmem>>, vector<384x64xf32>
    %cst = arith.constant dense<0.000000e+00> : vector<9x64xf32>
    %4 = tpu.matmul %2, %3, %cst {dimension_numbers = #tpu.dot_dimension_numbers<[1], [0], [0], [1], [0, 0, 1, 1], [], []>} : vector<9x384xf32>, vector<384x64xf32>, vector<9x64xf32> -> vector<9x64xf32>
    %c0_6 = arith.constant 0 : index
    %c0_7 = arith.constant 0 : index
    %5 = vector.load %arg5[%c0_6, %c0_7] : memref<1x64xf32, #tpu.memory_space<vmem>>, vector<1x64xf32>
    %6 = vector.broadcast %5 : vector<1x64xf32> to vector<9x64xf32>
    %7 = arith.addf %4, %6 : vector<9x64xf32>
    %cst_8 = arith.constant 0.000000e+00 : f32
    %8 = vector.broadcast %cst_8 : f32 to vector<9x64xf32>
    %9 = arith.maximumf %7, %8 : vector<9x64xf32>
    %cst_9 = arith.constant dense<0.000000e+00> : vector<64xf32>
    %10 = vector.multi_reduction <add>, %9, %cst_9 [0] : vector<9x64xf32> to vector<64xf32>
    %11 = vector.shape_cast %10 : vector<64xf32> to vector<1x64xf32>
    %cst_10 = arith.constant 0.111111112 : f32
    %12 = vector.broadcast %cst_10 : f32 to vector<1x64xf32>
    %13 = arith.mulf %11, %12 : vector<1x64xf32>
    %c0_11 = arith.constant 0 : index
    %c0_12 = arith.constant 0 : index
    %14 = vector.load %arg6[%c0_11, %c0_12] : memref<64x128xf32, #tpu.memory_space<vmem>>, vector<64x128xf32>
    %cst_13 = arith.constant dense<0.000000e+00> : vector<1x128xf32>
    %15 = tpu.matmul %13, %14, %cst_13 {dimension_numbers = #tpu.dot_dimension_numbers<[1], [0], [0], [1], [0, 0, 1, 1], [], []>} : vector<1x64xf32>, vector<64x128xf32>, vector<1x128xf32> -> vector<1x128xf32>
    %16 = arith.addf %0, %15 : vector<1x128xf32>
    %c0_14 = arith.constant 0 : index
    %c0_15 = arith.constant 0 : index
    %c0_16 = arith.constant 0 : index
    %17 = vector.load %arg2[%c0_14, %c0_15, %c0_16] : memref<1x9x896xf32, #tpu.memory_space<vmem>>, vector<1x9x896xf32>
    %18 = vector.shape_cast %17 : vector<1x9x896xf32> to vector<9x896xf32>
    %c0_17 = arith.constant 0 : index
    %c0_18 = arith.constant 0 : index
    %19 = vector.load %arg7[%c0_17, %c0_18] : memref<896x64xf32, #tpu.memory_space<vmem>>, vector<896x64xf32>
    %cst_19 = arith.constant dense<0.000000e+00> : vector<9x64xf32>
    %20 = tpu.matmul %18, %19, %cst_19 {dimension_numbers = #tpu.dot_dimension_numbers<[1], [0], [0], [1], [0, 0, 1, 1], [], []>} : vector<9x896xf32>, vector<896x64xf32>, vector<9x64xf32> -> vector<9x64xf32>
    %c0_20 = arith.constant 0 : index
    %c0_21 = arith.constant 0 : index
    %21 = vector.load %arg8[%c0_20, %c0_21] : memref<1x64xf32, #tpu.memory_space<vmem>>, vector<1x64xf32>
    %22 = vector.broadcast %21 : vector<1x64xf32> to vector<9x64xf32>
    %23 = arith.addf %20, %22 : vector<9x64xf32>
    %cst_22 = arith.constant 0.000000e+00 : f32
    %24 = vector.broadcast %cst_22 : f32 to vector<9x64xf32>
    %25 = arith.maximumf %23, %24 : vector<9x64xf32>
    %cst_23 = arith.constant dense<0.000000e+00> : vector<64xf32>
    %26 = vector.multi_reduction <add>, %25, %cst_23 [0] : vector<9x64xf32> to vector<64xf32>
    %27 = vector.shape_cast %26 : vector<64xf32> to vector<1x64xf32>
    %cst_24 = arith.constant 0.111111112 : f32
    %28 = vector.broadcast %cst_24 : f32 to vector<1x64xf32>
    %29 = arith.mulf %27, %28 : vector<1x64xf32>
    %c0_25 = arith.constant 0 : index
    %c0_26 = arith.constant 0 : index
    %30 = vector.load %arg9[%c0_25, %c0_26] : memref<64x128xf32, #tpu.memory_space<vmem>>, vector<64x128xf32>
    %cst_27 = arith.constant dense<0.000000e+00> : vector<1x128xf32>
    %31 = tpu.matmul %29, %30, %cst_27 {dimension_numbers = #tpu.dot_dimension_numbers<[1], [0], [0], [1], [0, 0, 1, 1], [], []>} : vector<1x64xf32>, vector<64x128xf32>, vector<1x128xf32> -> vector<1x128xf32>
    %32 = arith.addf %16, %31 : vector<1x128xf32>
    %c0_28 = arith.constant 0 : index
    %c0_29 = arith.constant 0 : index
    %c0_30 = arith.constant 0 : index
    %33 = vector.load %arg3[%c0_28, %c0_29, %c0_30] : memref<1x9x1664xf32, #tpu.memory_space<vmem>>, vector<1x9x1664xf32>
    %34 = vector.shape_cast %33 : vector<1x9x1664xf32> to vector<9x1664xf32>
    %c0_31 = arith.constant 0 : index
    %c0_32 = arith.constant 0 : index
    %35 = vector.load %arg10[%c0_31, %c0_32] : memref<1664x64xf32, #tpu.memory_space<vmem>>, vector<1664x64xf32>
    %cst_33 = arith.constant dense<0.000000e+00> : vector<9x64xf32>
    %36 = tpu.matmul %34, %35, %cst_33 {dimension_numbers = #tpu.dot_dimension_numbers<[1], [0], [0], [1], [0, 0, 1, 1], [], []>} : vector<9x1664xf32>, vector<1664x64xf32>, vector<9x64xf32> -> vector<9x64xf32>
    %c0_34 = arith.constant 0 : index
    %c0_35 = arith.constant 0 : index
    %37 = vector.load %arg11[%c0_34, %c0_35] : memref<1x64xf32, #tpu.memory_space<vmem>>, vector<1x64xf32>
    %38 = vector.broadcast %37 : vector<1x64xf32> to vector<9x64xf32>
    %39 = arith.addf %36, %38 : vector<9x64xf32>
    %cst_36 = arith.constant 0.000000e+00 : f32
    %40 = vector.broadcast %cst_36 : f32 to vector<9x64xf32>
    %41 = arith.maximumf %39, %40 : vector<9x64xf32>
    %cst_37 = arith.constant dense<0.000000e+00> : vector<64xf32>
    %42 = vector.multi_reduction <add>, %41, %cst_37 [0] : vector<9x64xf32> to vector<64xf32>
    %43 = vector.shape_cast %42 : vector<64xf32> to vector<1x64xf32>
    %cst_38 = arith.constant 0.111111112 : f32
    %44 = vector.broadcast %cst_38 : f32 to vector<1x64xf32>
    %45 = arith.mulf %43, %44 : vector<1x64xf32>
    %c0_39 = arith.constant 0 : index
    %c0_40 = arith.constant 0 : index
    %46 = vector.load %arg12[%c0_39, %c0_40] : memref<64x128xf32, #tpu.memory_space<vmem>>, vector<64x128xf32>
    %cst_41 = arith.constant dense<0.000000e+00> : vector<1x128xf32>
    %47 = tpu.matmul %45, %46, %cst_41 {dimension_numbers = #tpu.dot_dimension_numbers<[1], [0], [0], [1], [0, 0, 1, 1], [], []>} : vector<1x64xf32>, vector<64x128xf32>, vector<1x128xf32> -> vector<1x128xf32>
    %48 = arith.addf %32, %47 : vector<1x128xf32>
    %cst_42 = arith.constant 0.000000e+00 : f32
    %49 = vector.broadcast %cst_42 : f32 to vector<1x128xf32>
    %50 = arith.maximumf %48, %49 : vector<1x128xf32>
    %c0_43 = arith.constant 0 : index
    %c0_44 = arith.constant 0 : index
    %51 = vector.load %arg14[%c0_43, %c0_44] : memref<128x3xf32, #tpu.memory_space<vmem>>, vector<128x3xf32>
    %cst_45 = arith.constant dense<0.000000e+00> : vector<1x3xf32>
    %52 = tpu.matmul %50, %51, %cst_45 {dimension_numbers = #tpu.dot_dimension_numbers<[1], [0], [0], [1], [0, 0, 1, 1], [], []>} : vector<1x128xf32>, vector<128x3xf32>, vector<1x3xf32> -> vector<1x3xf32>
    %c0_46 = arith.constant 0 : index
    %c0_47 = arith.constant 0 : index
    %53 = vector.load %arg15[%c0_46, %c0_47] : memref<1x3xf32, #tpu.memory_space<vmem>>, vector<1x3xf32>
    %54 = arith.addf %52, %53 : vector<1x3xf32>
    %c0_48 = arith.constant 0 : index
    %c0_49 = arith.constant 0 : index
    %c0_50 = arith.constant 0 : index
    %55 = vector.load %arg16[%c0_48, %c0_49, %c0_50] : memref<1x1x3xf32, #tpu.memory_space<vmem>>, vector<1x1x3xf32>
    %56 = vector.shape_cast %55 : vector<1x1x3xf32> to vector<1x3xf32>
    %57 = vector.shape_cast %54 : vector<1x3xf32> to vector<1x1x3xf32>
    tpu.vector_store %arg16[%c0_48, %c0_49, %c0_50], %57 {strides = array<i32>} : memref<1x1x3xf32, #tpu.memory_space<vmem>>, vector<1x1x3xf32>,
    return
  }
  func.func @transform_0(%arg0: i32) -> (i32, i32, i32) {
    %c0_i32 = arith.constant 0 : i32
    %c0_i32_0 = arith.constant 0 : i32
    %c0_i32_1 = arith.constant 0 : i32
    return %arg0, %c0_i32, %c0_i32_0 : i32, i32, i32
  }
  func.func @transform_1(%arg0: i32) -> (i32, i32, i32) {
    %c0_i32 = arith.constant 0 : i32
    %c0_i32_0 = arith.constant 0 : i32
    %c0_i32_1 = arith.constant 0 : i32
    return %arg0, %c0_i32, %c0_i32_0 : i32, i32, i32
  }
  func.func @transform_2(%arg0: i32) -> (i32, i32, i32) {
    %c0_i32 = arith.constant 0 : i32
    %c0_i32_0 = arith.constant 0 : i32
    %c0_i32_1 = arith.constant 0 : i32
    return %arg0, %c0_i32, %c0_i32_0 : i32, i32, i32
  }
  func.func @transform_3(%arg0: i32) -> (i32, i32) {
    %c0_i32 = arith.constant 0 : i32
    %c0_i32_0 = arith.constant 0 : i32
    %c0_i32_1 = arith.constant 0 : i32
    return %c0_i32, %c0_i32_0 : i32, i32
  }
  func.func @transform_4(%arg0: i32) -> (i32, i32) {
    %c0_i32 = arith.constant 0 : i32
    %c0_i32_0 = arith.constant 0 : i32
    %c0_i32_1 = arith.constant 0 : i32
    return %c0_i32, %c0_i32_0 : i32, i32
  }
  func.func @transform_5(%arg0: i32) -> (i32, i32) {
    %c0_i32 = arith.constant 0 : i32
    %c0_i32_0 = arith.constant 0 : i32
    %c0_i32_1 = arith.constant 0 : i32
    return %c0_i32, %c0_i32_0 : i32, i32
  }
  func.func @transform_6(%arg0: i32) -> (i32, i32) {
    %c0_i32 = arith.constant 0 : i32
    %c0_i32_0 = arith.constant 0 : i32
    %c0_i32_1 = arith.constant 0 : i32
    return %c0_i32, %c0_i32_0 : i32, i32
  }
  func.func @transform_7(%arg0: i32) -> (i32, i32) {
    %c0_i32 = arith.constant 0 : i32
    %c0_i32_0 = arith.constant 0 : i32
    %c0_i32_1 = arith.constant 0 : i32
    return %c0_i32, %c0_i32_0 : i32, i32
  }
  func.func @transform_8(%arg0: i32) -> (i32, i32) {
    %c0_i32 = arith.constant 0 : i32
    %c0_i32_0 = arith.constant 0 : i32
    %c0_i32_1 = arith.constant 0 : i32
    return %c0_i32, %c0_i32_0 : i32, i32
  }
  func.func @transform_9(%arg0: i32) -> (i32, i32) {
    %c0_i32 = arith.constant 0 : i32
    %c0_i32_0 = arith.constant 0 : i32
    %c0_i32_1 = arith.constant 0 : i32
    return %c0_i32, %c0_i32_0 : i32, i32
  }
  func.func @transform_10(%arg0: i32) -> (i32, i32) {
    %c0_i32 = arith.constant 0 : i32
    %c0_i32_0 = arith.constant 0 : i32
    %c0_i32_1 = arith.constant 0 : i32
    return %c0_i32, %c0_i32_0 : i32, i32
  }
  func.func @transform_11(%arg0: i32) -> (i32, i32) {
    %c0_i32 = arith.constant 0 : i32
    %c0_i32_0 = arith.constant 0 : i32
    %c0_i32_1 = arith.constant 0 : i32
    return %c0_i32, %c0_i32_0 : i32, i32
  }
  func.func @transform_12(%arg0: i32) -> (i32, i32) {
    %c0_i32 = arith.constant 0 : i32
    %c0_i32_0 = arith.constant 0 : i32
    %c0_i32_1 = arith.constant 0 : i32
    return %c0_i32, %c0_i32_0 : i32, i32
  }
  func.func @transform_13(%arg0: i32) -> (i32, i32) {
    %c0_i32 = arith.constant 0 : i32
    %c0_i32_0 = arith.constant 0 : i32
    %c0_i32_1 = arith.constant 0 : i32
    return %c0_i32, %c0_i32_0 : i32, i32
  }
  func.func @transform_14(%arg0: i32) -> (i32, i32) {
    %c0_i32 = arith.constant 0 : i32
    %c0_i32_0 = arith.constant 0 : i32
    %c0_i32_1 = arith.constant 0 : i32
    return %c0_i32, %c0_i32_0 : i32, i32
  }
  func.func @transform_15(%arg0: i32) -> (i32, i32, i32) {
    %c0_i32 = arith.constant 0 : i32
    %c0_i32_0 = arith.constant 0 : i32
    %c0_i32_1 = arith.constant 0 : i32
    return %arg0, %c0_i32, %c0_i32_0 : i32, i32, i32
  }
}

</mosaic_0001>

<llo_original>
// kernel: multiscale_forward.2
$region0: #{multiscale_forward.2}
  #allocation0 [shape = 'u32[]', space=smem, size = 0x4, offset = 0x4, fixed_abs, tag = 'smem constant byte address 0x4 - core index']
  #allocation1 [shape = 'u32[144,128]{1,0:T(1,128)}', space=vmem, size = 0x12000, scoped, tag = 'internal scratch']
  %s0 = inlined_call_operand.vmem [shape: f32[2,256,256], index: 0, kind: input, shape index: {}]
  %s1 = inlined_call_operand.vmem [shape: f32[256,96], index: 1, kind: input, shape index: {}]
  %s2 = inlined_call_operand.vmem [shape: f32[1,96], index: 2, kind: input, shape index: {}]
  %s3 = inlined_call_operand.vmem [shape: f32[25,256], index: 3, kind: input, shape index: {}]
  %s4 = inlined_call_operand.vmem [shape: f32[108,25], index: 4, kind: input, shape index: {}]
  %s5 = inlined_call_operand.vmem [shape: f32[252,25], index: 5, kind: input, shape index: {}]
  %s6 = inlined_call_operand.vmem [shape: f32[468,25], index: 6, kind: input, shape index: {}]
  %s7 = inlined_call_operand.vmem [shape: f32[2,108,32], index: 7, kind: output, shape index: {0}]
  %s8 = inlined_call_operand.vmem [shape: f32[2,252,32], index: 8, kind: output, shape index: {1}]
  %s9 = inlined_call_operand.vmem [shape: f32[2,468,32], index: 9, kind: output, shape index: {2}]
  %10 = xla_tuple %s7, %s8, %s9
  %s11 = sld [smem:[#allocation0]]
  $region77: #{multiscale_forward.2} parent=0
    _
  %s13 = ssub.s32 1, %s11
  %s14 = scalar_select 0, %s13, %s11
  loop: start=0, step=1, limit=4
  $region2: #{multiscale_forward.2} parent=0 // loop_pre_header
    _
  $region3: #{multiscale_forward.2} parent=0 // loop_header
    %s16 = sphi 0, %s20
    %p17 = scmp.ge.s32.totalorder %s16, 4
    %s26 = sphi 0, %s28
    %s29 = sphi 0, %s26
    %s30 = sphi 0, %s29
    %s46 = sphi 0, %s30
    %s50 = sphi 0, %s50
    %s52 = sphi 0, %s50
    %s53 = sphi 0, %s52
    %s67 = sphi 0, %s53
    %s71 = sphi 0, %s71
    %s73 = sphi 0, %s71
    %s74 = sphi 0, %s73
    %s88 = sphi 0, %s74
    %s92 = sphi 0, %s92
    %s94 = sphi 0, %s92
    %s95 = sphi 0, %s94
    %s109 = sphi 0, %s95
    %s113 = sphi 0, %s113
    %s115 = sphi 0, %s113
    %s116 = sphi 0, %s115
    %s130 = sphi 0, %s116
    %s134 = sphi 0, %s134
    %s136 = sphi 0, %s134
    %s137 = sphi 0, %s136
    %s151 = sphi 0, %s137
    %s155 = sphi 0, %s155
    %s157 = sphi 0, %s155
    %s158 = sphi 0, %s157
    %s172 = sphi 0, %s158
    %s178 = sphi 0, %s180
    %s181 = sphi 0, %s178
    %s182 = sphi 0, %s181
    %s198 = sphi 0, %s182
    %s204 = sphi 0, %s206
    %s207 = sphi 0, %s204
    %s208 = sphi 0, %s207
    %s224 = sphi 0, %s208
    %s230 = sphi 0, %s232
    %s233 = sphi 0, %s230
    %s234 = sphi 0, %s233
    %s250 = sphi 0, %s234
  $region4: #{multiscale_forward.2} parent=0 // loop_header_branch
    %19 = sbr.rel (%p17) target = $region8
  $region5: #{multiscale_forward.2} parent=0 // loop_body
    %s21 = ssub.s32 %s16, 1
    %s22 = ssub.s32 %s16, 2
    %s23 = sadd.s32 %s16, 1
    %s24 = ssub.s32 %s16, %s23
    %p25 = scmp.eq.s32.totalorder %s24, 0
    %s27 = sadd.s32 %s26, 1
    %s28 = scalar_select %p25, %s26, %s27
    %p31 = pneg %p25
    %p32 = scmp.eq.s32.totalorder %s16, 1
    %p33 = por %p31, %p32
    %p34 = scmp.ne.s32.totalorder %s26, %s29
    %p35 = scmp.eq.s32.totalorder %s16, 0
    %p36 = por %p34, %p35
    %p37 = scmp.ne.s32.totalorder %s26, %s29
    %p38 = scmp.eq.s32.totalorder %s21, 1
    %p39 = por %p37, %p38
    %p40 = scmp.ne.s32.totalorder %s29, %s30
    %p41 = scmp.eq.s32.totalorder %s21, 0
    %p42 = por %p40, %p41
    %p43 = scmp.ne.s32.totalorder %s29, %s30
    %p44 = scmp.eq.s32.totalorder %s22, 1
    %p45 = por %p43, %p44
    %p47 = scmp.ne.s32.totalorder %s30, %s46
    %p48 = scmp.eq.s32.totalorder %s22, 0
    %p49 = por %p47, %p48
    %s51 = sadd.s32 %s50, 1
    %p54 = scmp.eq.s32.totalorder %s16, 1
    %p55 = scmp.ne.s32.totalorder %s50, %s52
    %p56 = scmp.eq.s32.totalorder %s16, 0
    %p57 = por %p55, %p56
    %p58 = scmp.ne.s32.totalorder %s50, %s52
    %p59 = scmp.eq.s32.totalorder %s21, 1
    %p60 = por %p58, %p59
    %p61 = scmp.ne.s32.totalorder %s52, %s53
    %p62 = scmp.eq.s32.totalorder %s21, 0
    %p63 = por %p61, %p62
    %p64 = scmp.ne.s32.totalorder %s52, %s53
    %p65 = scmp.eq.s32.totalorder %s22, 1
    %p66 = por %p64, %p65
    %p68 = scmp.ne.s32.totalorder %s53, %s67
    %p69 = scmp.eq.s32.totalorder %s22, 0
    %p70 = por %p68, %p69
    %s72 = sadd.s32 %s71, 1
    %p75 = scmp.eq.s32.totalorder %s16, 1
    %p76 = scmp.ne.s32.totalorder %s71, %s73
    %p77 = scmp.eq.s32.totalorder %s16, 0
    %p78 = por %p76, %p77
    %p79 = scmp.ne.s32.totalorder %s71, %s73
    %p80 = scmp.eq.s32.totalorder %s21, 1
    %p81 = por %p79, %p80
    %p82 = scmp.ne.s32.totalorder %s73, %s74
    %p83 = scmp.eq.s32.totalorder %s21, 0
    %p84 = por %p82, %p83
    %p85 = scmp.ne.s32.totalorder %s73, %s74
    %p86 = scmp.eq.s32.totalorder %s22, 1
    %p87 = por %p85, %p86
    %p89 = scmp.ne.s32.totalorder %s74, %s88
    %p90 = scmp.eq.s32.totalorder %s22, 0
    %p91 = por %p89, %p90
    %s93 = sadd.s32 %s92, 1
    %p96 = scmp.eq.s32.totalorder %s16, 1
    %p97 = scmp.ne.s32.totalorder %s92, %s94
    %p98 = scmp.eq.s32.totalorder %s16, 0
    %p99 = por %p97, %p98
    %p100 = scmp.ne.s32.totalorder %s92, %s94
    %p101 = scmp.eq.s32.totalorder %s21, 1
    %p102 = por %p100, %p101
    %p103 = scmp.ne.s32.totalorder %s94, %s95
    %p104 = scmp.eq.s32.totalorder %s21, 0
    %p105 = por %p103, %p104
    %p106 = scmp.ne.s32.totalorder %s94, %s95
    %p107 = scmp.eq.s32.totalorder %s22, 1
    %p108 = por %p106, %p107
    %p110 = scmp.ne.s32.totalorder %s95, %s109
    %p111 = scmp.eq.s32.totalorder %s22, 0
    %p112 = por %p110, %p111
    %s114 = sadd.s32 %s113, 1
    %p117 = scmp.eq.s32.totalorder %s16, 1
    %p118 = scmp.ne.s32.totalorder %s113, %s115
    %p119 = scmp.eq.s32.totalorder %s16, 0
    %p120 = por %p118, %p119
    %p121 = scmp.ne.s32.totalorder %s113, %s115
    %p122 = scmp.eq.s32.totalorder %s21, 1
    %p123 = por %p121, %p122
    %p124 = scmp.ne.s32.totalorder %s115, %s116
    %p125 = scmp.eq.s32.totalorder %s21, 0
    %p126 = por %p124, %p125
    %p127 = scmp.ne.s32.totalorder %s115, %s116
    %p128 = scmp.eq.s32.totalorder %s22, 1
    %p129 = por %p127, %p128
    %p131 = scmp.ne.s32.totalorder %s116, %s130
    %p132 = scmp.eq.s32.totalorder %s22, 0
    %p133 = por %p131, %p132
    %s135 = sadd.s32 %s134, 1
    %p138 = scmp.eq.s32.totalorder %s16, 1
    %p139 = scmp.ne.s32.totalorder %s134, %s136
    %p140 = scmp.eq.s32.totalorder %s16, 0
    %p141 = por %p139, %p140
    %p142 = scmp.ne.s32.totalorder %s134, %s136
    %p143 = scmp.eq.s32.totalorder %s21, 1
    %p144 = por %p142, %p143
    %p145 = scmp.ne.s32.totalorder %s136, %s137
    %p146 = scmp.eq.s32.totalorder %s21, 0
    %p147 = por %p145, %p146
    %p148 = scmp.ne.s32.totalorder %s136, %s137
    %p149 = scmp.eq.s32.totalorder %s22, 1
    %p150 = por %p148, %p149
    %p152 = scmp.ne.s32.totalorder %s137, %s151
    %p153 = scmp.eq.s32.totalorder %s22, 0
    %p154 = por %p152, %p153
    %s156 = sadd.s32 %s155, 1
    %p159 = scmp.eq.s32.totalorder %s16, 1
    %p160 = scmp.ne.s32.totalorder %s155, %s157
    %p161 = scmp.eq.s32.totalorder %s16, 0
    %p162 = por %p160, %p161
    %p163 = scmp.ne.s32.totalorder %s155, %s157
    %p164 = scmp.eq.s32.totalorder %s21, 1
    %p165 = por %p163, %p164
    %p166 = scmp.ne.s32.totalorder %s157, %s158
    %p167 = scmp.eq.s32.totalorder %s21, 0
    %p168 = por %p166, %p167
    %p169 = scmp.ne.s32.totalorder %s157, %s158
    %p170 = scmp.eq.s32.totalorder %s22, 1
    %p171 = por %p169, %p170
    %p173 = scmp.ne.s32.totalorder %s158, %s172
    %p174 = scmp.eq.s32.totalorder %s22, 0
    %p175 = por %p173, %p174
    %s176 = ssub.s32 %s16, %s23
    %p177 = scmp.eq.s32.totalorder %s176, 0
    %s179 = sadd.s32 %s178, 1
    %s180 = scalar_select %p177, %s178, %s179
    %p183 = pneg %p177
    %p184 = scmp.eq.s32.totalorder %s16, 1
    %p185 = por %p183, %p184
    %p186 = scmp.ne.s32.totalorder %s178, %s181
    %p187 = scmp.eq.s32.totalorder %s16, 0
    %p188 = por %p186, %p187
    %p189 = scmp.ne.s32.totalorder %s178, %s181
    %p190 = scmp.eq.s32.totalorder %s21, 1
    %p191 = por %p189, %p190
    %p192 = scmp.ne.s32.totalorder %s181, %s182
    %p193 = scmp.eq.s32.totalorder %s21, 0
    %p194 = por %p192, %p193
    %p195 = scmp.ne.s32.totalorder %s181, %s182
    %p196 = scmp.eq.s32.totalorder %s22, 1
    %p197 = por %p195, %p196
    %p199 = scmp.ne.s32.totalorder %s182, %s198
    %p200 = scmp.eq.s32.totalorder %s22, 0
    %p201 = por %p199, %p200
    %s202 = ssub.s32 %s16, %s23
    %p203 = scmp.eq.s32.totalorder %s202, 0
    %s205 = sadd.s32 %s204, 1
    %s206 = scalar_select %p203, %s204, %s205
    %p209 = pneg %p203
    %p210 = scmp.eq.s32.totalorder %s16, 1
    %p211 = por %p209, %p210
    %p212 = scmp.ne.s32.totalorder %s204, %s207
    %p213 = scmp.eq.s32.totalorder %s16, 0
    %p214 = por %p212, %p213
    %p215 = scmp.ne.s32.totalorder %s204, %s207
    %p216 = scmp.eq.s32.totalorder %s21, 1
    %p217 = por %p215, %p216
    %p218 = scmp.ne.s32.totalorder %s207, %s208
    %p219 = scmp.eq.s32.totalorder %s21, 0
    %p220 = por %p218, %p219
    %p221 = scmp.ne.s32.totalorder %s207, %s208
    %p222 = scmp.eq.s32.totalorder %s22, 1
    %p223 = por %p221, %p222
    %p225 = scmp.ne.s32.totalorder %s208, %s224
    %p226 = scmp.eq.s32.totalorder %s22, 0
    %p227 = por %p225, %p226
    %s228 = ssub.s32 %s16, %s23
    %p229 = scmp.eq.s32.totalorder %s228, 0
    %s231 = sadd.s32 %s230, 1
    %s232 = scalar_select %p229, %s230, %s231
    %p235 = pneg %p229
    %p236 = scmp.eq.s32.totalorder %s16, 1
    %p237 = por %p235, %p236
    %p238 = scmp.ne.s32.totalorder %s230, %s233
    %p239 = scmp.eq.s32.totalorder %s16, 0
    %p240 = por %p238, %p239
    %p241 = scmp.ne.s32.totalorder %s230, %s233
    %p242 = scmp.eq.s32.totalorder %s21, 1
    %p243 = por %p241, %p242
    %p244 = scmp.ne.s32.totalorder %s233, %s234
    %p245 = scmp.eq.s32.totalorder %s21, 0
    %p246 = por %p244, %p245
    %p247 = scmp.ne.s32.totalorder %s233, %s234
    %p248 = scmp.eq.s32.totalorder %s22, 1
    %p249 = por %p247, %p248
    %p251 = scmp.ne.s32.totalorder %s234, %s250
    %p252 = scmp.eq.s32.totalorder %s22, 0
    %p253 = por %p251, %p252
    %p254 = scmp.le.s32.totalorder 1, %s16
    %p255 = scmp.lt.s32.totalorder %s16, 3
    %p256 = pnand %p254, %p255
    %p257 = pneg %p256
    // Predicated region
    $region9: #{multiscale_forward.2} parent=5 // pred_check
      _
    $region10: #{multiscale_forward.2} parent=5 // pred_check_branch
      %259 = sbr.rel (%p256) target = $region12
    $region11: #{multiscale_forward.2} parent=5 // pred_region
      %s260 = ssub.s32 %s16, 1
      // Predicated region
      $region13: #{multiscale_forward.2} parent=11 // pred_check
        %p261 = pneg %p63
      $region14: #{multiscale_forward.2} parent=11 // pred_check_branch
        %263 = sbr.rel (%p261) target = $region16
      $region15: #{multiscale_forward.2} parent=11 // pred_region
        _
      $region16: #{multiscale_forward.2} parent=11 // pred_fallthru
        _
      // Predicated region
      $region17: #{multiscale_forward.2} parent=11 // pred_check
        %p264 = pneg %p84
      $region18: #{multiscale_forward.2} parent=11 // pred_check_branch
        %266 = sbr.rel (%p264) target = $region20
      $region19: #{multiscale_forward.2} parent=11 // pred_region
        _
      $region20: #{multiscale_forward.2} parent=11 // pred_fallthru
        _
      // Predicated region
      $region21: #{multiscale_forward.2} parent=11 // pred_check
        %p267 = pneg %p105
      $region22: #{multiscale_forward.2} parent=11 // pred_check_branch
        %269 = sbr.rel (%p267) target = $region24
      $region23: #{multiscale_forward.2} parent=11 // pred_region
        _
      $region24: #{multiscale_forward.2} parent=11 // pred_fallthru
        _
      // Predicated region
      $region25: #{multiscale_forward.2} parent=11 // pred_check
        %p270 = pneg %p126
      $region26: #{multiscale_forward.2} parent=11 // pred_check_branch
        %272 = sbr.rel (%p270) target = $region28
      $region27: #{multiscale_forward.2} parent=11 // pred_region
        _
      $region28: #{multiscale_forward.2} parent=11 // pred_fallthru
        _
      // Predicated region
      $region29: #{multiscale_forward.2} parent=11 // pred_check
        %p273 = pneg %p147
      $region30: #{multiscale_forward.2} parent=11 // pred_check_branch
        %275 = sbr.rel (%p273) target = $region32
      $region31: #{multiscale_forward.2} parent=11 // pred_region
        _
      $region32: #{multiscale_forward.2} parent=11 // pred_fallthru
        _
      // Predicated region
      $region33: #{multiscale_forward.2} parent=11 // pred_check
        %p276 = pneg %p168
      $region34: #{multiscale_forward.2} parent=11 // pred_check_branch
        %278 = sbr.rel (%p276) target = $region36
      $region35: #{multiscale_forward.2} parent=11 // pred_region
        _
      $region36: #{multiscale_forward.2} parent=11 // pred_fallthru
        _
    $region12: #{multiscale_forward.2} parent=5 // pred_fallthru
      _
    %p279 = scmp.lt.s32.totalorder %s16, 2
    // Predicated region
    $region37: #{multiscale_forward.2} parent=5 // pred_check
      %p280 = pneg %p279
    $region38: #{multiscale_forward.2} parent=5 // pred_check_branch
      %282 = sbr.rel (%p280) target = $region40
    $region39: #{multiscale_forward.2} parent=5 // pred_region
      // Predicated region
      $region41: #{multiscale_forward.2} parent=39 // pred_check
        %p283 = pneg %p36
      $region42: #{multiscale_forward.2} parent=39 // pred_check_branch
        %285 = sbr.rel (%p283) target = $region44
      $region43: #{multiscale_forward.2} parent=39 // pred_region
        %p286 = scmp.lt.s32.totalorder %s16, 1
        %s287 = scalar_select %p286, %s16, 1
        %s288 = smul.addr %s287, 64
        %s289 = smul.addr %s288, 8
        %s290 = scalar_lea.vmem %s0, %s289
      $region44: #{multiscale_forward.2} parent=39 // pred_fallthru
        _
    $region40: #{multiscale_forward.2} parent=5 // pred_fallthru
      _
    %p291 = scmp.le.s32.totalorder 1, %s16
    %p292 = scmp.lt.s32.totalorder %s16, 3
    %p293 = pnand %p291, %p292
    %p294 = pneg %p293
    // Predicated region
    $region45: #{multiscale_forward.2} parent=5 // pred_check
      _
    $region46: #{multiscale_forward.2} parent=5 // pred_check_branch
      %296 = sbr.rel (%p293) target = $region48
    $region47: #{multiscale_forward.2} parent=5 // pred_region
      %s297 = ssub.s32 %s16, 1
      %p298 = scmp.lt.s32.totalorder %s21, 1
      %s299 = scalar_select %p298, %s21, 1
      %s300 = smul.addr %s299, 64
      %s301 = smul.addr %s300, 8
      %s302 = scalar_lea.vmem %s0, %s301
      %p303 = pneg %p42
      %p304 = pneg %p39
      %p305 = pneg %p63
      %p306 = pneg %p60
      %p307 = pneg %p84
      %p308 = pneg %p81
      %p309 = pneg %p105
      %p310 = pneg %p102
      %p311 = pneg %p126
      %p312 = pneg %p123
      %p313 = pneg %p147
      %p314 = pneg %p144
      %p315 = pneg %p168
      %p316 = pneg %p165
      %p317 = pneg %p194
      %p318 = pneg %p191
      %p319 = scmp.lt.s32.totalorder %s21, 1
      %s320 = scalar_select %p319, %s21, 1
      %s321 = smul.addr %s320, 14
      %s322 = smul.addr %s321, 8
      %s323 = scalar_lea.vmem %s7, %s322
      %p324 = pneg %p220
      %p325 = pneg %p217
      %p326 = scmp.lt.s32.totalorder %s21, 1
      %s327 = scalar_select %p326, %s21, 1
      %s328 = smul.addr %s327, 32
      %s329 = smul.addr %s328, 8
      %s330 = scalar_lea.vmem %s8, %s329
      %p331 = pneg %p246
      %p332 = pneg %p243
      %p333 = scmp.lt.s32.totalorder %s21, 1
      %s334 = scalar_select %p333, %s21, 1
      %s335 = smul.addr %s334, 59
      %s336 = smul.addr %s335, 8
      %s337 = scalar_lea.vmem %s9, %s336
      %p338 = scmp.lt.s32.totalorder %s21, 1
      %s339 = scalar_select %p338, %s21, 1
      %s340 = smul.addr %s339, 64
      %s341 = smul.addr %s340, 8
      %s342 = scalar_lea.vmem %s0, %s341
      %p343 = scmp.lt.s32.totalorder %s21, 1
      %s344 = scalar_select %p343, %s21, 1
      %s345 = smul.addr %s344, 14
      %s346 = smul.addr %s345, 8
      %s347 = scalar_lea.vmem %s7, %s346
      %p348 = scmp.lt.s32.totalorder %s21, 1
      %s349 = scalar_select %p348, %s21, 1
      %s350 = smul.addr %s349, 32
      %s351 = smul.addr %s350, 8
      %s352 = scalar_lea.vmem %s8, %s351
      %p353 = scmp.lt.s32.totalorder %s21, 1
      %s354 = scalar_select %p353, %s21, 1
      %s355 = smul.addr %s354, 59
      %s356 = smul.addr %s355, 8
      %s357 = scalar_lea.vmem %s9, %s356
      %v358 = vld [vmem:[%s342] sm:$0xff]
      %v359 = vld [vmem:[%s342 + $0x8] sm:$0xff]
      %v360 = vld [vmem:[%s342 + $0x10] sm:$0xff]
      %v361 = vld [vmem:[%s342 + $0x18] sm:$0xff]
      %v362 = vld [vmem:[%s342 + $0x20] sm:$0xff]
      %v363 = vld [vmem:[%s342 + $0x28] sm:$0xff]
      %v364 = vld [vmem:[%s342 + $0x30] sm:$0xff]
      %v365 = vld [vmem:[%s342 + $0x38] sm:$0xff]
      %v366 = vld [vmem:[%s342 + $0x40] sm:$0xff]
      %v367 = vld [vmem:[%s342 + $0x48] sm:$0xff]
      %v368 = vld [vmem:[%s342 + $0x50] sm:$0xff]
      %v369 = vld [vmem:[%s342 + $0x58] sm:$0xff]
      %v370 = vld [vmem:[%s342 + $0x60] sm:$0xff]
      %v371 = vld [vmem:[%s342 + $0x68] sm:$0xff]
      %v372 = vld [vmem:[%s342 + $0x70] sm:$0xff]
      %v373 = vld [vmem:[%s342 + $0x78] sm:$0xff]
      %v374 = vld [vmem:[%s342 + $0x80] sm:$0xff]
      %v375 = vld [vmem:[%s342 + $0x88] sm:$0xff]
      %v376 = vld [vmem:[%s342 + $0x90] sm:$0xff]
      %v377 = vld [vmem:[%s342 + $0x98] sm:$0xff]
      %v378 = vld [vmem:[%s342 + $0xa0] sm:$0xff]
      %v379 = vld [vmem:[%s342 + $0xa8] sm:$0xff]
      %v380 = vld [vmem:[%s342 + $0xb0] sm:$0xff]
      %v381 = vld [vmem:[%s342 + $0xb8] sm:$0xff]
      %v382 = vld [vmem:[%s342 + $0xc0] sm:$0xff]
      %v383 = vld [vmem:[%s342 + $0xc8] sm:$0xff]
      %v384 = vld [vmem:[%s342 + $0xd0] sm:$0xff]
      %v385 = vld [vmem:[%s342 + $0xd8] sm:$0xff]
      %v386 = vld [vmem:[%s342 + $0xe0] sm:$0xff]
      %v387 = vld [vmem:[%s342 + $0xe8] sm:$0xff]
      %v388 = vld [vmem:[%s342 + $0xf0] sm:$0xff]
      %v389 = vld [vmem:[%s342 + $0xf8] sm:$0xff]
      %v390 = vld [vmem:[%s342 + $0x100] sm:$0xff]
      %v391 = vld [vmem:[%s342 + $0x108] sm:$0xff]
      %v392 = vld [vmem:[%s342 + $0x110] sm:$0xff]
      %v393 = vld [vmem:[%s342 + $0x118] sm:$0xff]
      %v394 = vld [vmem:[%s342 + $0x120] sm:$0xff]
      %v395 = vld [vmem:[%s342 + $0x128] sm:$0xff]
      %v396 = vld [vmem:[%s342 + $0x130] sm:$0xff]
      %v397 = vld [vmem:[%s342 + $0x138] sm:$0xff]
      %v398 = vld [vmem:[%s342 + $0x140] sm:$0xff]
      %v399 = vld [vmem:[%s342 + $0x148] sm:$0xff]
      %v400 = vld [vmem:[%s342 + $0x150] sm:$0xff]
      %v401 = vld [vmem:[%s342 + $0x158] sm:$0xff]
      %v402 = vld [vmem:[%s342 + $0x160] sm:$0xff]
      %v403 = vld [vmem:[%s342 + $0x168] sm:$0xff]
      %v404 = vld [vmem:[%s342 + $0x170] sm:$0xff]
      %v405 = vld [vmem:[%s342 + $0x178] sm:$0xff]
      %v406 = vld [vmem:[%s342 + $0x180] sm:$0xff]
      %v407 = vld [vmem:[%s342 + $0x188] sm:$0xff]
      %v408 = vld [vmem:[%s342 + $0x190] sm:$0xff]
      %v409 = vld [vmem:[%s342 + $0x198] sm:$0xff]
      %v410 = vld [vmem:[%s342 + $0x1a0] sm:$0xff]
      %v411 = vld [vmem:[%s342 + $0x1a8] sm:$0xff]
      %v412 = vld [vmem:[%s342 + $0x1b0] sm:$0xff]
      %v413 = vld [vmem:[%s342 + $0x1b8] sm:$0xff]
      %v414 = vld [vmem:[%s342 + $0x1c0] sm:$0xff]
      %v415 = vld [vmem:[%s342 + $0x1c8] sm:$0xff]
      %v416 = vld [vmem:[%s342 + $0x1d0] sm:$0xff]
      %v417 = vld [vmem:[%s342 + $0x1d8] sm:$0xff]
      %v418 = vld [vmem:[%s342 + $0x1e0] sm:$0xff]
      %v419 = vld [vmem:[%s342 + $0x1e8] sm:$0xff]
      %v420 = vld [vmem:[%s342 + $0x1f0] sm:$0xff]
      %v421 = vld [vmem:[%s342 + $0x1f8] sm:$0xff]
      %v422 = vld [vmem:[%s1] sm:$0xff]
      %v423 = vld [vmem:[%s1 + $0x8] sm:$0xff]
      %v424 = vld [vmem:[%s1 + $0x10] sm:$0xff]
      %v425 = vld [vmem:[%s1 + $0x18] sm:$0xff]
      %v426 = vld [vmem:[%s1 + $0x20] sm:$0xff]
      %v427 = vld [vmem:[%s1 + $0x28] sm:$0xff]
      %v428 = vld [vmem:[%s1 + $0x30] sm:$0xff]
      %v429 = vld [vmem:[%s1 + $0x38] sm:$0xff]
      %v430 = vld [vmem:[%s1 + $0x40] sm:$0xff]
      %v431 = vld [vmem:[%s1 + $0x48] sm:$0xff]
      %v432 = vld [vmem:[%s1 + $0x50] sm:$0xff]
      %v433 = vld [vmem:[%s1 + $0x58] sm:$0xff]
      %v434 = vld [vmem:[%s1 + $0x60] sm:$0xff]
      %v435 = vld [vmem:[%s1 + $0x68] sm:$0xff]
      %v436 = vld [vmem:[%s1 + $0x70] sm:$0xff]
      %v437 = vld [vmem:[%s1 + $0x78] sm:$0xff]
      %v438 = vld [vmem:[%s1 + $0x80] sm:$0xff]
      %v439 = vld [vmem:[%s1 + $0x88] sm:$0xff]
      %v440 = vld [vmem:[%s1 + $0x90] sm:$0xff]
      %v441 = vld [vmem:[%s1 + $0x98] sm:$0xff]
      %v442 = vld [vmem:[%s1 + $0xa0] sm:$0xff]
      %v443 = vld [vmem:[%s1 + $0xa8] sm:$0xff]
      %v444 = vld [vmem:[%s1 + $0xb0] sm:$0xff]
      %v445 = vld [vmem:[%s1 + $0xb8] sm:$0xff]
      %v446 = vld [vmem:[%s1 + $0xc0] sm:$0xff]
      %v447 = vld [vmem:[%s1 + $0xc8] sm:$0xff]
      %v448 = vld [vmem:[%s1 + $0xd0] sm:$0xff]
      %v449 = vld [vmem:[%s1 + $0xd8] sm:$0xff]
      %v450 = vld [vmem:[%s1 + $0xe0] sm:$0xff]
      %v451 = vld [vmem:[%s1 + $0xe8] sm:$0xff]
      %v452 = vld [vmem:[%s1 + $0xf0] sm:$0xff]
      %v453 = vld [vmem:[%s1 + $0xf8] sm:$0xff]
      %v454 = vld [vmem:[%s2] sm:$0x1]
      %v456 = vlaneseq
      %v457 = vshrl.u32 %v456, 7
      %v458 = vsub.s32 0, %v457
      %v459 = vrot.slane %v454, %v458
      %461 = vmatprep.subr.mxu0 0.0
      %462 = vmatpush1.msra.mxu0 %v437
      %463 = vmatprep.subr.mxu0 0.0
      %464 = vmatpush1.msra.mxu0 %v436
      %465 = vmatprep.subr.mxu0 0.0
      %466 = vmatpush1.msra.mxu0 %v435
      %467 = vmatprep.subr.mxu0 0.0
      %468 = vmatpush1.msra.mxu0 %v434
      %469 = vmatprep.subr.mxu0 0.0
      %470 = vmatpush1.msra.mxu0 %v433
      %471 = vmatprep.subr.mxu0 0.0
      %472 = vmatpush1.msra.mxu0 %v432
      %473 = vmatprep.subr.mxu0 0.0
      %474 = vmatpush1.msra.mxu0 %v431
      %475 = vmatprep.subr.mxu0 0.0
      %476 = vmatpush1.msra.mxu0 %v430
      %477 = vmatprep.subr.mxu0 0.0
      %478 = vmatpush1.msra.mxu0 %v429
      %479 = vmatprep.subr.mxu0 0.0
      %480 = vmatpush1.msra.mxu0 %v428
      %481 = vmatprep.subr.mxu0 0.0
      %482 = vmatpush1.msra.mxu0 %v427
      %483 = vmatprep.subr.mxu0 0.0
      %484 = vmatpush1.msra.mxu0 %v426
      %485 = vmatprep.subr.mxu0 0.0
      %486 = vmatpush1.msra.mxu0 %v425
      %487 = vmatprep.subr.mxu0 0.0
      %488 = vmatpush1.msra.mxu0 %v424
      %489 = vmatprep.subr.mxu0 0.0
      %490 = vmatpush1.msra.mxu0 %v423
      %491 = vmatprep.subr.mxu0 0.0
      %492 = vmatpush1.msra.mxu0 %v422
      %493 = vmatprep.subr.mxu0 0.0
      %494 = vmatpush2.msra.mxu0 %v453
      %495 = vmatprep.subr.mxu0 0.0
      %496 = vmatpush2.msra.mxu0 %v452
      %497 = vmatprep.subr.mxu0 0.0
      %498 = vmatpush2.msra.mxu0 %v451
      %499 = vmatprep.subr.mxu0 0.0
      %500 = vmatpush2.msra.mxu0 %v450
      %501 = vmatprep.subr.mxu0 0.0
      %502 = vmatpush2.msra.mxu0 %v449
      %503 = vmatprep.subr.mxu0 0.0
      %504 = vmatpush2.msra.mxu0 %v448
      %505 = vmatprep.subr.mxu0 0.0
      %506 = vmatpush2.msra.mxu0 %v447
      %507 = vmatprep.subr.mxu0 0.0
      %508 = vmatpush2.msra.mxu0 %v446
      %509 = vmatprep.subr.mxu0 0.0
      %510 = vmatpush2.msra.mxu0 %v445
      %511 = vmatprep.subr.mxu0 0.0
      %512 = vmatpush2.msra.mxu0 %v444
      %513 = vmatprep.subr.mxu0 0.0
      %514 = vmatpush2.msra.mxu0 %v443
      %515 = vmatprep.subr.mxu0 0.0
      %516 = vmatpush2.msra.mxu0 %v442
      %517 = vmatprep.subr.mxu0 0.0
      %518 = vmatpush2.msra.mxu0 %v441
      %519 = vmatprep.subr.mxu0 0.0
      %520 = vmatpush2.msra.mxu0 %v440
      %521 = vmatprep.subr.mxu0 0.0
      %522 = vmatpush2.msra.mxu0 %v439
      %523 = vmatprep.subr.mxu0 0.0
      %524 = vmatpush2.msra.mxu0 %v438
      %525 = vmatprep.mubr.f32.mxu0 %v359
      %526 = vmatmul.mubr.f32.gmra.mxu0 %v358
      %v527 = vpop.f32.mrf.mxu0
      %v528 = vadd.f32 %v459, %v527
      %v529 = vpop.f32.mrf.mxu0
      %530 = vmatprep.mubr.f32.mxu0 %v361
      %531 = vmatmul.mubr.f32.gmra.mxu0 %v360
      %v532 = vpop.f32.mrf.mxu0
      %v533 = vadd.f32 %v459, %v532
      %v534 = vpop.f32.mrf.mxu0
      %535 = vmatprep.mubr.f32.mxu0 %v363
      %536 = vmatmul.mubr.f32.gmra.mxu0 %v362
      %v537 = vpop.f32.mrf.mxu0
      %v538 = vadd.f32 %v459, %v537
      %v539 = vpop.f32.mrf.mxu0
      %540 = vmatprep.mubr.f32.mxu0 %v365
      %541 = vmatmul.mubr.f32.gmra.mxu0 %v364
      %v542 = vpop.f32.mrf.mxu0
      %v543 = vadd.f32 %v459, %v542
      %v544 = vpop.f32.mrf.mxu0
      %545 = vmatprep.mubr.f32.mxu0 %v367
      %546 = vmatmul.mubr.f32.gmra.mxu0 %v366
      %v547 = vpop.f32.mrf.mxu0
      %v548 = vadd.f32 %v459, %v547
      %v549 = vpop.f32.mrf.mxu0
      %550 = vmatprep.mubr.f32.mxu0 %v369
      %551 = vmatmul.mubr.f32.gmra.mxu0 %v368
      %v552 = vpop.f32.mrf.mxu0
      %v553 = vadd.f32 %v459, %v552
      %v554 = vpop.f32.mrf.mxu0
      %555 = vmatprep.mubr.f32.mxu0 %v371
      %556 = vmatmul.mubr.f32.gmra.mxu0 %v370
      %v557 = vpop.f32.mrf.mxu0
      %v558 = vadd.f32 %v459, %v557
      %v559 = vpop.f32.mrf.mxu0
      %560 = vmatprep.mubr.f32.mxu0 %v373
      %561 = vmatmul.mubr.f32.gmra.mxu0 %v372
      %v562 = vpop.f32.mrf.mxu0
      %v563 = vadd.f32 %v459, %v562
      %v564 = vpop.f32.mrf.mxu0
      %565 = vmatprep.mubr.f32.mxu0 %v375
      %566 = vmatmul.mubr.f32.gmra.mxu0 %v374
      %v567 = vpop.f32.mrf.mxu0
      %v568 = vadd.f32 %v459, %v567
      %v569 = vpop.f32.mrf.mxu0
      %570 = vmatprep.mubr.f32.mxu0 %v377
      %571 = vmatmul.mubr.f32.gmra.mxu0 %v376
      %v572 = vpop.f32.mrf.mxu0
      %v573 = vadd.f32 %v459, %v572
      %v574 = vpop.f32.mrf.mxu0
      %575 = vmatprep.mubr.f32.mxu0 %v379
      %576 = vmatmul.mubr.f32.gmra.mxu0 %v378
      %v577 = vpop.f32.mrf.mxu0
      %v578 = vadd.f32 %v459, %v577
      %v579 = vpop.f32.mrf.mxu0
      %580 = vmatprep.mubr.f32.mxu0 %v381
      %581 = vmatmul.mubr.f32.gmra.mxu0 %v380
      %v582 = vpop.f32.mrf.mxu0
      %v583 = vadd.f32 %v459, %v582
      %v584 = vpop.f32.mrf.mxu0
      %585 = vmatprep.mubr.f32.mxu0 %v383
      %586 = vmatmul.mubr.f32.gmra.mxu0 %v382
      %v587 = vpop.f32.mrf.mxu0
      %v588 = vadd.f32 %v459, %v587
      %v589 = vpop.f32.mrf.mxu0
      %590 = vmatprep.mubr.f32.mxu0 %v385
      %591 = vmatmul.mubr.f32.gmra.mxu0 %v384
      %v592 = vpop.f32.mrf.mxu0
      %v593 = vadd.f32 %v459, %v592
      %v594 = vpop.f32.mrf.mxu0
      %595 = vmatprep.mubr.f32.mxu0 %v387
      %596 = vmatmul.mubr.f32.gmra.mxu0 %v386
      %v597 = vpop.f32.mrf.mxu0
      %v598 = vadd.f32 %v459, %v597
      %v599 = vpop.f32.mrf.mxu0
      %600 = vmatprep.mubr.f32.mxu0 %v389
      %601 = vmatmul.mubr.f32.gmra.mxu0 %v388
      %v602 = vpop.f32.mrf.mxu0
      %v603 = vadd.f32 %v459, %v602
      %v604 = vpop.f32.mrf.mxu0
      %605 = vmatprep.mubr.f32.mxu0 %v391
      %606 = vmatmul.mubr.f32.gmra.mxu0 %v390
      %v607 = vpop.f32.mrf.mxu0
      %v608 = vadd.f32 %v459, %v607
      %v609 = vpop.f32.mrf.mxu0
      %610 = vmatprep.mubr.f32.mxu0 %v393
      %611 = vmatmul.mubr.f32.gmra.mxu0 %v392
      %v612 = vpop.f32.mrf.mxu0
      %v613 = vadd.f32 %v459, %v612
      %v614 = vpop.f32.mrf.mxu0
      %615 = vmatprep.mubr.f32.mxu0 %v395
      %616 = vmatmul.mubr.f32.gmra.mxu0 %v394
      %v617 = vpop.f32.mrf.mxu0
      %v618 = vadd.f32 %v459, %v617
      %v619 = vpop.f32.mrf.mxu0
      %620 = vmatprep.mubr.f32.mxu0 %v397
      %621 = vmatmul.mubr.f32.gmra.mxu0 %v396
      %v622 = vpop.f32.mrf.mxu0
      %v623 = vadd.f32 %v459, %v622
      %v624 = vpop.f32.mrf.mxu0
      %625 = vmatprep.mubr.f32.mxu0 %v399
      %626 = vmatmul.mubr.f32.gmra.mxu0 %v398
      %v627 = vpop.f32.mrf.mxu0
      %v628 = vadd.f32 %v459, %v627
      %v629 = vpop.f32.mrf.mxu0
      %630 = vmatprep.mubr.f32.mxu0 %v401
      %631 = vmatmul.mubr.f32.gmra.mxu0 %v400
      %v632 = vpop.f32.mrf.mxu0
      %v633 = vadd.f32 %v459, %v632
      %v634 = vpop.f32.mrf.mxu0
      %635 = vmatprep.mubr.f32.mxu0 %v403
      %636 = vmatmul.mubr.f32.gmra.mxu0 %v402
      %v637 = vpop.f32.mrf.mxu0
      %v638 = vadd.f32 %v459, %v637
      %v639 = vpop.f32.mrf.mxu0
      %640 = vmatprep.mubr.f32.mxu0 %v405
      %641 = vmatmul.mubr.f32.gmra.mxu0 %v404
      %v642 = vpop.f32.mrf.mxu0
      %v643 = vadd.f32 %v459, %v642
      %v644 = vpop.f32.mrf.mxu0
      %645 = vmatprep.mubr.f32.mxu0 %v407
      %646 = vmatmul.mubr.f32.gmra.mxu0 %v406
      %v647 = vpop.f32.mrf.mxu0
      %v648 = vadd.f32 %v459, %v647
      %v649 = vpop.f32.mrf.mxu0
      %650 = vmatprep.mubr.f32.mxu0 %v409
      %651 = vmatmul.mubr.f32.gmra.mxu0 %v408
      %v652 = vpop.f32.mrf.mxu0
      %v653 = vadd.f32 %v459, %v652
      %v654 = vpop.f32.mrf.mxu0
      %655 = vmatprep.mubr.f32.mxu0 %v411
      %656 = vmatmul.mubr.f32.gmra.mxu0 %v410
      %v657 = vpop.f32.mrf.mxu0
      %v658 = vadd.f32 %v459, %v657
      %v659 = vpop.f32.mrf.mxu0
      %660 = vmatprep.mubr.f32.mxu0 %v413
      %661 = vmatmul.mubr.f32.gmra.mxu0 %v412
      %v662 = vpop.f32.mrf.mxu0
      %v663 = vadd.f32 %v459, %v662
      %v664 = vpop.f32.mrf.mxu0
      %665 = vmatprep.mubr.f32.mxu0 %v415
      %666 = vmatmul.mubr.f32.gmra.mxu0 %v414
      %v667 = vpop.f32.mrf.mxu0
      %v668 = vadd.f32 %v459, %v667
      %v669 = vpop.f32.mrf.mxu0
      %670 = vmatprep.mubr.f32.mxu0 %v417
      %671 = vmatmul.mubr.f32.gmra.mxu0 %v416
      %v672 = vpop.f32.mrf.mxu0
      %v673 = vadd.f32 %v459, %v672
      %v674 = vpop.f32.mrf.mxu0
      %675 = vmatprep.mubr.f32.mxu0 %v419
      %676 = vmatmul.mubr.f32.gmra.mxu0 %v418
      %v677 = vpop.f32.mrf.mxu0
      %v678 = vadd.f32 %v459, %v677
      %v679 = vpop.f32.mrf.mxu0
      %680 = vmatprep.mubr.f32.mxu0 %v421
      %681 = vmatmul.mubr.f32.gmra.mxu0 %v420
      %v682 = vpop.f32.mrf.mxu0
      %v683 = vadd.f32 %v459, %v682
      %v684 = vpop.f32.mrf.mxu0
      %685 = vdwg.mxu0
      %v686 = vmax.f32 %v528, 0.0
      %v687 = vmax.f32 %v533, 0.0
      %v688 = vmax.f32 %v538, 0.0
      %v689 = vmax.f32 %v543, 0.0
      %v690 = vmax.f32 %v548, 0.0
      %v691 = vmax.f32 %v553, 0.0
      %v692 = vmax.f32 %v558, 0.0
      %v693 = vmax.f32 %v563, 0.0
      %v694 = vmax.f32 %v568, 0.0
      %v695 = vmax.f32 %v573, 0.0
      %v696 = vmax.f32 %v578, 0.0
      %v697 = vmax.f32 %v583, 0.0
      %v698 = vmax.f32 %v588, 0.0
      %v699 = vmax.f32 %v593, 0.0
      %v700 = vmax.f32 %v598, 0.0
      %v701 = vmax.f32 %v603, 0.0
      %v702 = vmax.f32 %v608, 0.0
      %v703 = vmax.f32 %v613, 0.0
      %v704 = vmax.f32 %v618, 0.0
      %v705 = vmax.f32 %v623, 0.0
      %v706 = vmax.f32 %v628, 0.0
      %v707 = vmax.f32 %v633, 0.0
      %v708 = vmax.f32 %v638, 0.0
      %v709 = vmax.f32 %v643, 0.0
      %v710 = vmax.f32 %v648, 0.0
      %v711 = vmax.f32 %v653, 0.0
      %v712 = vmax.f32 %v658, 0.0
      %v713 = vmax.f32 %v663, 0.0
      %v714 = vmax.f32 %v668, 0.0
      %v715 = vmax.f32 %v673, 0.0
      %v716 = vmax.f32 %v678, 0.0
      %v717 = vmax.f32 %v683, 0.0
      %v718 = vld [vmem:[%s3] sm:$0xff]
      %v719 = vld [vmem:[%s3 + $0x8] sm:$0xff]
      %v720 = vld [vmem:[%s3 + $0x10] sm:$0xff]
      %v721 = vld [vmem:[%s3 + $0x18] sm:$0xff]
      %v722 = vld [vmem:[%s3 + $0x20] sm:$0xff]
      %v723 = vld [vmem:[%s3 + $0x28] sm:$0xff]
      %v724 = vld [vmem:[%s3 + $0x30] sm:$0x1]
      %v725 = vld [vmem:[%s3 + $0x38] sm:$0x1]
      %726 = vmatprep.subr.mxu0 0.0
      %727 = vmatpush1.msra.mxu0 %v701
      %728 = vmatprep.subr.mxu0 0.0
      %729 = vmatpush1.msra.mxu0 %v700
      %730 = vmatprep.subr.mxu0 0.0
      %731 = vmatpush1.msra.mxu0 %v699
      %732 = vmatprep.subr.mxu0 0.0
      %733 = vmatpush1.msra.mxu0 %v698
      %734 = vmatprep.subr.mxu0 0.0
      %735 = vmatpush1.msra.mxu0 %v697
      %736 = vmatprep.subr.mxu0 0.0
      %737 = vmatpush1.msra.mxu0 %v696
      %738 = vmatprep.subr.mxu0 0.0
      %739 = vmatpush1.msra.mxu0 %v695
      %740 = vmatprep.subr.mxu0 0.0
      %741 = vmatpush1.msra.mxu0 %v694
      %742 = vmatprep.subr.mxu0 0.0
      %743 = vmatpush1.msra.mxu0 %v693
      %744 = vmatprep.subr.mxu0 0.0
      %745 = vmatpush1.msra.mxu0 %v692
      %746 = vmatprep.subr.mxu0 0.0
      %747 = vmatpush1.msra.mxu0 %v691
      %748 = vmatprep.subr.mxu0 0.0
      %749 = vmatpush1.msra.mxu0 %v690
      %750 = vmatprep.subr.mxu0 0.0
      %751 = vmatpush1.msra.mxu0 %v689
      %752 = vmatprep.subr.mxu0 0.0
      %753 = vmatpush1.msra.mxu0 %v688
      %754 = vmatprep.subr.mxu0 0.0
      %755 = vmatpush1.msra.mxu0 %v687
      %756 = vmatprep.subr.mxu0 0.0
      %757 = vmatpush1.msra.mxu0 %v686
      %758 = vmatprep.subr.mxu0 0.0
      %759 = vmatpush2.msra.mxu0 %v717
      %760 = vmatprep.subr.mxu0 0.0
      %761 = vmatpush2.msra.mxu0 %v716
      %762 = vmatprep.subr.mxu0 0.0
      %763 = vmatpush2.msra.mxu0 %v715
      %764 = vmatprep.subr.mxu0 0.0
      %765 = vmatpush2.msra.mxu0 %v714
      %766 = vmatprep.subr.mxu0 0.0
      %767 = vmatpush2.msra.mxu0 %v713
      %768 = vmatprep.subr.mxu0 0.0
      %769 = vmatpush2.msra.mxu0 %v712
      %770 = vmatprep.subr.mxu0 0.0
      %771 = vmatpush2.msra.mxu0 %v711
      %772 = vmatprep.subr.mxu0 0.0
      %773 = vmatpush2.msra.mxu0 %v710
      %774 = vmatprep.subr.mxu0 0.0
      %775 = vmatpush2.msra.mxu0 %v709
      %776 = vmatprep.subr.mxu0 0.0
      %777 = vmatpush2.msra.mxu0 %v708
      %778 = vmatprep.subr.mxu0 0.0
      %779 = vmatpush2.msra.mxu0 %v707
      %780 = vmatprep.subr.mxu0 0.0
      %781 = vmatpush2.msra.mxu0 %v706
      %782 = vmatprep.subr.mxu0 0.0
      %783 = vmatpush2.msra.mxu0 %v705
      %784 = vmatprep.subr.mxu0 0.0
      %785 = vmatpush2.msra.mxu0 %v704
      %786 = vmatprep.subr.mxu0 0.0
      %787 = vmatpush2.msra.mxu0 %v703
      %788 = vmatprep.subr.mxu0 0.0
      %789 = vmatpush2.msra.mxu0 %v702
      %790 = vmatprep.mubr.f32.mxu0 %v719
      %791 = vmatmul.mubr.f32.gmra.mxu0 %v718
      %v792 = vpop.f32.mrf.mxu0
      %v793 = vadd.f32 0.0, %v792
      %v794 = vpop.f32.mrf.mxu0
      %795 = vmatprep.mubr.f32.mxu0 %v721
      %796 = vmatmul.mubr.f32.gmra.mxu0 %v720
      %v797 = vpop.f32.mrf.mxu0
      %v798 = vadd.f32 0.0, %v797
      %v799 = vpop.f32.mrf.mxu0
      %800 = vmatprep.mubr.f32.mxu0 %v723
      %801 = vmatmul.mubr.f32.gmra.mxu0 %v722
      %v802 = vpop.f32.mrf.mxu0
      %v803 = vadd.f32 0.0, %v802
      %v804 = vpop.f32.mrf.mxu0
      %805 = vmatprep.mubr.f32.mxu0 %v725
      %806 = vmatmul.mubr.f32.gmra.mxu0 %v724
      %v807 = vpop.f32.mrf.mxu0
      %v808 = vadd.f32 0.0, %v807
      %v809 = vpop.f32.mrf.mxu0
      %810 = vdwg.mxu0
      %v811 = vld [vmem:[%s4] sm:$0xff]
      %v812 = vld [vmem:[%s4 + $0x8] sm:$0xff]
      %v813 = vld [vmem:[%s4 + $0x10] sm:$0xff]
      %v814 = vld [vmem:[%s4 + $0x18] sm:$0xff]
      %v815 = vld [vmem:[%s4 + $0x20] sm:$0xff]
      %v816 = vld [vmem:[%s4 + $0x28] sm:$0xff]
      %v817 = vld [vmem:[%s4 + $0x30] sm:$0xff]
      %v818 = vld [vmem:[%s4 + $0x38] sm:$0xff]
      %v819 = vld [vmem:[%s4 + $0x40] sm:$0xff]
      %v820 = vld [vmem:[%s4 + $0x48] sm:$0xff]
      %v821 = vld [vmem:[%s4 + $0x50] sm:$0xff]
      %v822 = vld [vmem:[%s4 + $0x58] sm:$0xff]
      %v823 = vld [vmem:[%s4 + $0x60] sm:$0xff]
      %v824 = vld [vmem:[%s4 + $0x68] sm:$0xf]
      %vm825 = vcmask 203776
      %v827 = vsel %vm825, %v811, 0
      %v830 = vsel %vm825, %v812, 0
      %v833 = vsel %vm825, %v813, 0
      %v836 = vsel %vm825, %v814, 0
      %v839 = vsel %vm825, %v815, 0
      %v842 = vsel %vm825, %v816, 0
      %v845 = vsel %vm825, %v817, 0
      %v848 = vsel %vm825, %v818, 0
      %v851 = vsel %vm825, %v819, 0
      %v854 = vsel %vm825, %v820, 0
      %v857 = vsel %vm825, %v821, 0
      %v860 = vsel %vm825, %v822, 0
      %v863 = vsel %vm825, %v823, 0
      %v866 = vsel %vm825, %v824, 0
      %vm868 = vcmask 1040384
      %v870 = vsel %vm868, %v808, 0
      %872 = vmatprep.subr.mxu0 0.0
      %873 = vmatpush1.msra.mxu0 0.0
      %874 = vmatprep.subr.mxu0 0.0
      %875 = vmatpush1.msra.mxu0 0.0
      %876 = vmatprep.subr.mxu0 0.0
      %877 = vmatpush1.msra.mxu0 0.0
      %878 = vmatprep.subr.mxu0 0.0
      %879 = vmatpush1.msra.mxu0 0.0
      %880 = vmatprep.subr.mxu0 0.0
      %881 = vmatpush1.msra.mxu0 0.0
      %882 = vmatprep.subr.mxu0 0.0
      %883 = vmatpush1.msra.mxu0 0.0
      %884 = vmatprep.subr.mxu0 0.0
      %885 = vmatpush1.msra.mxu0 0.0
      %886 = vmatprep.subr.mxu0 0.0
      %887 = vmatpush1.msra.mxu0 0.0
      %888 = vmatprep.subr.mxu0 0.0
      %889 = vmatpush1.msra.mxu0 0.0
      %890 = vmatprep.subr.mxu0 0.0
      %891 = vmatpush1.msra.mxu0 0.0
      %892 = vmatprep.subr.mxu0 0.0
      %893 = vmatpush1.msra.mxu0 0.0
      %894 = vmatprep.subr.mxu0 0.0
      %895 = vmatpush1.msra.mxu0 0.0
      %896 = vmatprep.subr.mxu0 0.0
      %897 = vmatpush1.msra.mxu0 %v870
      %898 = vmatprep.subr.mxu0 0.0
      %899 = vmatpush1.msra.mxu0 %v803
      %900 = vmatprep.subr.mxu0 0.0
      %901 = vmatpush1.msra.mxu0 %v798
      %902 = vmatprep.subr.mxu0 0.0
      %903 = vmatpush1.msra.mxu0 %v793
      %904 = vmatprep.subr.mxu0 0.0
      %905 = vmatpush2.msra.mxu0 0.0
      %906 = vmatprep.subr.mxu0 0.0
      %907 = vmatpush2.msra.mxu0 0.0
      %908 = vmatprep.subr.mxu0 0.0
      %909 = vmatpush2.msra.mxu0 0.0
      %910 = vmatprep.subr.mxu0 0.0
      %911 = vmatpush2.msra.mxu0 0.0
      %912 = vmatprep.subr.mxu0 0.0
      %913 = vmatpush2.msra.mxu0 0.0
      %914 = vmatprep.subr.mxu0 0.0
      %915 = vmatpush2.msra.mxu0 0.0
      %916 = vmatprep.subr.mxu0 0.0
      %917 = vmatpush2.msra.mxu0 0.0
      %918 = vmatprep.subr.mxu0 0.0
      %919 = vmatpush2.msra.mxu0 0.0
      %920 = vmatprep.subr.mxu0 0.0
      %921 = vmatpush2.msra.mxu0 0.0
      %922 = vmatprep.subr.mxu0 0.0
      %923 = vmatpush2.msra.mxu0 0.0
      %924 = vmatprep.subr.mxu0 0.0
      %925 = vmatpush2.msra.mxu0 0.0
      %926 = vmatprep.subr.mxu0 0.0
      %927 = vmatpush2.msra.mxu0 0.0
      %928 = vmatprep.subr.mxu0 0.0
      %929 = vmatpush2.msra.mxu0 0.0
      %930 = vmatprep.subr.mxu0 0.0
      %931 = vmatpush2.msra.mxu0 0.0
      %932 = vmatprep.subr.mxu0 0.0
      %933 = vmatpush2.msra.mxu0 0.0
      %934 = vmatprep.subr.mxu0 0.0
      %935 = vmatpush2.msra.mxu0 0.0
      %936 = vmatprep.mubr.f32.mxu0 0.0
      %937 = vmatmul.mubr.f32.gmra.mxu0 %v827
      %v938 = vpop.f32.mrf.mxu0
      %v939 = vadd.f32 0.0, %v938
      %v940 = vpop.f32.mrf.mxu0
      %941 = vmatprep.mubr.f32.mxu0 0.0
      %942 = vmatmul.mubr.f32.gmra.mxu0 %v830
      %v943 = vpop.f32.mrf.mxu0
      %v944 = vadd.f32 0.0, %v943
      %v945 = vpop.f32.mrf.mxu0
      %946 = vmatprep.mubr.f32.mxu0 0.0
      %947 = vmatmul.mubr.f32.gmra.mxu0 %v833
      %v948 = vpop.f32.mrf.mxu0
      %v949 = vadd.f32 0.0, %v948
      %v950 = vpop.f32.mrf.mxu0
      %951 = vmatprep.mubr.f32.mxu0 0.0
      %952 = vmatmul.mubr.f32.gmra.mxu0 %v836
      %v953 = vpop.f32.mrf.mxu0
      %v954 = vadd.f32 0.0, %v953
      %v955 = vpop.f32.mrf.mxu0
      %956 = vmatprep.mubr.f32.mxu0 0.0
      %957 = vmatmul.mubr.f32.gmra.mxu0 %v839
      %v958 = vpop.f32.mrf.mxu0
      %v959 = vadd.f32 0.0, %v958
      %v960 = vpop.f32.mrf.mxu0
      %961 = vmatprep.mubr.f32.mxu0 0.0
      %962 = vmatmul.mubr.f32.gmra.mxu0 %v842
      %v963 = vpop.f32.mrf.mxu0
      %v964 = vadd.f32 0.0, %v963
      %v965 = vpop.f32.mrf.mxu0
      %966 = vmatprep.mubr.f32.mxu0 0.0
      %967 = vmatmul.mubr.f32.gmra.mxu0 %v845
      %v968 = vpop.f32.mrf.mxu0
      %v969 = vadd.f32 0.0, %v968
      %v970 = vpop.f32.mrf.mxu0
      %971 = vmatprep.mubr.f32.mxu0 0.0
      %972 = vmatmul.mubr.f32.gmra.mxu0 %v848
      %v973 = vpop.f32.mrf.mxu0
      %v974 = vadd.f32 0.0, %v973
      %v975 = vpop.f32.mrf.mxu0
      %976 = vmatprep.mubr.f32.mxu0 0.0
      %977 = vmatmul.mubr.f32.gmra.mxu0 %v851
      %v978 = vpop.f32.mrf.mxu0
      %v979 = vadd.f32 0.0, %v978
      %v980 = vpop.f32.mrf.mxu0
      %981 = vmatprep.mubr.f32.mxu0 0.0
      %982 = vmatmul.mubr.f32.gmra.mxu0 %v854
      %v983 = vpop.f32.mrf.mxu0
      %v984 = vadd.f32 0.0, %v983
      %v985 = vpop.f32.mrf.mxu0
      %986 = vmatprep.mubr.f32.mxu0 0.0
      %987 = vmatmul.mubr.f32.gmra.mxu0 %v857
      %v988 = vpop.f32.mrf.mxu0
      %v989 = vadd.f32 0.0, %v988
      %v990 = vpop.f32.mrf.mxu0
      %991 = vmatprep.mubr.f32.mxu0 0.0
      %992 = vmatmul.mubr.f32.gmra.mxu0 %v860
      %v993 = vpop.f32.mrf.mxu0
      %v994 = vadd.f32 0.0, %v993
      %v995 = vpop.f32.mrf.mxu0
      %996 = vmatprep.mubr.f32.mxu0 0.0
      %997 = vmatmul.mubr.f32.gmra.mxu0 %v863
      %v998 = vpop.f32.mrf.mxu0
      %v999 = vadd.f32 0.0, %v998
      %v1000 = vpop.f32.mrf.mxu0
      %1001 = vmatprep.mubr.f32.mxu0 0.0
      %1002 = vmatmul.mubr.f32.gmra.mxu0 %v866
      %v1003 = vpop.f32.mrf.mxu0
      %v1004 = vadd.f32 0.0, %v1003
      %v1005 = vpop.f32.mrf.mxu0
      %1006 = vdwg.mxu0
      %vm1007 = vcmask 261120
      %1008 = vst.msk [vmem:[%s347] sm:$0xff] %vm1007, %v939
      %1009 = vst.msk [vmem:[%s347 + $0x8] sm:$0xff] %vm1007, %v944
      %1010 = vst.msk [vmem:[%s347 + $0x10] sm:$0xff] %vm1007, %v949
      %1011 = vst.msk [vmem:[%s347 + $0x18] sm:$0xff] %vm1007, %v954
      %1012 = vst.msk [vmem:[%s347 + $0x20] sm:$0xff] %vm1007, %v959
      %1013 = vst.msk [vmem:[%s347 + $0x28] sm:$0xff] %vm1007, %v964
      %1014 = vst.msk [vmem:[%s347 + $0x30] sm:$0xff] %vm1007, %v969
      %1015 = vst.msk [vmem:[%s347 + $0x38] sm:$0xff] %vm1007, %v974
      %1016 = vst.msk [vmem:[%s347 + $0x40] sm:$0xff] %vm1007, %v979
      %1017 = vst.msk [vmem:[%s347 + $0x48] sm:$0xff] %vm1007, %v984
      %1018 = vst.msk [vmem:[%s347 + $0x50] sm:$0xff] %vm1007, %v989
      %1019 = vst.msk [vmem:[%s347 + $0x58] sm:$0xff] %vm1007, %v994
      %1020 = vst.msk [vmem:[%s347 + $0x60] sm:$0xff] %vm1007, %v999
      %vm1021 = vcmask 257024
      %1022 = vst.msk [vmem:[%s347 + $0x68] sm:$0xf] %vm1021, %v1004
      %v1023 = vld [vmem:[%s5] sm:$0xff]
      %v1024 = vld [vmem:[%s5 + $0x8] sm:$0xff]
      %v1025 = vld [vmem:[%s5 + $0x10] sm:$0xff]
      %v1026 = vld [vmem:[%s5 + $0x18] sm:$0xff]
      %v1027 = vld [vmem:[%s5 + $0x20] sm:$0xff]
      %v1028 = vld [vmem:[%s5 + $0x28] sm:$0xff]
      %v1029 = vld [vmem:[%s5 + $0x30] sm:$0xff]
      %v1030 = vld [vmem:[%s5 + $0x38] sm:$0xff]
      %v1031 = vld [vmem:[%s5 + $0x40] sm:$0xff]
      %v1032 = vld [vmem:[%s5 + $0x48] sm:$0xff]
      %v1033 = vld [vmem:[%s5 + $0x50] sm:$0xff]
      %v1034 = vld [vmem:[%s5 + $0x58] sm:$0xff]
      %v1035 = vld [vmem:[%s5 + $0x60] sm:$0xff]
      %v1036 = vld [vmem:[%s5 + $0x68] sm:$0xff]
      %v1037 = vld [vmem:[%s5 + $0x70] sm:$0xff]
      %v1038 = vld [vmem:[%s5 + $0x78] sm:$0xff]
      %v1039 = vld [vmem:[%s5 + $0x80] sm:$0xff]
      %v1040 = vld [vmem:[%s5 + $0x88] sm:$0xff]
      %v1041 = vld [vmem:[%s5 + $0x90] sm:$0xff]
      %v1042 = vld [vmem:[%s5 + $0x98] sm:$0xff]
      %v1043 = vld [vmem:[%s5 + $0xa0] sm:$0xff]
      %v1044 = vld [vmem:[%s5 + $0xa8] sm:$0xff]
      %v1045 = vld [vmem:[%s5 + $0xb0] sm:$0xff]
      %v1046 = vld [vmem:[%s5 + $0xb8] sm:$0xff]
      %v1047 = vld [vmem:[%s5 + $0xc0] sm:$0xff]
      %v1048 = vld [vmem:[%s5 + $0xc8] sm:$0xff]
      %v1049 = vld [vmem:[%s5 + $0xd0] sm:$0xff]
      %v1050 = vld [vmem:[%s5 + $0xd8] sm:$0xff]
      %v1051 = vld [vmem:[%s5 + $0xe0] sm:$0xff]
      %v1052 = vld [vmem:[%s5 + $0xe8] sm:$0xff]
      %v1053 = vld [vmem:[%s5 + $0xf0] sm:$0xff]
      %v1054 = vld [vmem:[%s5 + $0xf8] sm:$0xf]
      %1058 = vrot.lane.b32.xlu0 %v793, 96
      %v1059 = vpop.permute.xlu0 %1058
      %1060 = vrot.lane.b32.xlu0 %v798, 96
      %v1061 = vpop.permute.xlu0 %1060
      %1062 = vrot.lane.b32.xlu0 %v803, 96
      %v1063 = vpop.permute.xlu0 %1062
      %1064 = vrot.lane.b32.xlu0 %v808, 96
      %v1065 = vpop.permute.xlu0 %1064
      %v1070 = vsel %vm825, %v1023, 0
      %v1073 = vsel %vm825, %v1024, 0
      %v1076 = vsel %vm825, %v1025, 0
      %v1079 = vsel %vm825, %v1026, 0
      %v1082 = vsel %vm825, %v1027, 0
      %v1085 = vsel %vm825, %v1028, 0
      %v1088 = vsel %vm825, %v1029, 0
      %v1091 = vsel %vm825, %v1030, 0
      %v1094 = vsel %vm825, %v1031, 0
      %v1097 = vsel %vm825, %v1032, 0
      %v1100 = vsel %vm825, %v1033, 0
      %v1103 = vsel %vm825, %v1034, 0
      %v1106 = vsel %vm825, %v1035, 0
      %v1109 = vsel %vm825, %v1036, 0
      %v1112 = vsel %vm825, %v1037, 0
      %v1115 = vsel %vm825, %v1038, 0
      %v1118 = vsel %vm825, %v1039, 0
      %v1121 = vsel %vm825, %v1040, 0
      %v1124 = vsel %vm825, %v1041, 0
      %v1127 = vsel %vm825, %v1042, 0
      %v1130 = vsel %vm825, %v1043, 0
      %v1133 = vsel %vm825, %v1044, 0
      %v1136 = vsel %vm825, %v1045, 0
      %v1139 = vsel %vm825, %v1046, 0
      %v1142 = vsel %vm825, %v1047, 0
      %v1145 = vsel %vm825, %v1048, 0
      %v1148 = vsel %vm825, %v1049, 0
      %v1151 = vsel %vm825, %v1050, 0
      %v1154 = vsel %vm825, %v1051, 0
      %v1157 = vsel %vm825, %v1052, 0
      %v1160 = vsel %vm825, %v1053, 0
      %v1163 = vsel %vm825, %v1054, 0
      %v1165 = vsel %vm868, %v1065, 0
      %1167 = vmatprep.subr.mxu0 0.0
      %1168 = vmatpush1.msra.mxu0 0.0
      %1169 = vmatprep.subr.mxu0 0.0
      %1170 = vmatpush1.msra.mxu0 0.0
      %1171 = vmatprep.subr.mxu0 0.0
      %1172 = vmatpush1.msra.mxu0 0.0
      %1173 = vmatprep.subr.mxu0 0.0
      %1174 = vmatpush1.msra.mxu0 0.0
      %1175 = vmatprep.subr.mxu0 0.0
      %1176 = vmatpush1.msra.mxu0 0.0
      %1177 = vmatprep.subr.mxu0 0.0
      %1178 = vmatpush1.msra.mxu0 0.0
      %1179 = vmatprep.subr.mxu0 0.0
      %1180 = vmatpush1.msra.mxu0 0.0
      %1181 = vmatprep.subr.mxu0 0.0
      %1182 = vmatpush1.msra.mxu0 0.0
      %1183 = vmatprep.subr.mxu0 0.0
      %1184 = vmatpush1.msra.mxu0 0.0
      %1185 = vmatprep.subr.mxu0 0.0
      %1186 = vmatpush1.msra.mxu0 0.0
      %1187 = vmatprep.subr.mxu0 0.0
      %1188 = vmatpush1.msra.mxu0 0.0
      %1189 = vmatprep.subr.mxu0 0.0
      %1190 = vmatpush1.msra.mxu0 0.0
      %1191 = vmatprep.subr.mxu0 0.0
      %1192 = vmatpush1.msra.mxu0 %v1165
      %1193 = vmatprep.subr.mxu0 0.0
      %1194 = vmatpush1.msra.mxu0 %v1063
      %1195 = vmatprep.subr.mxu0 0.0
      %1196 = vmatpush1.msra.mxu0 %v1061
      %1197 = vmatprep.subr.mxu0 0.0
      %1198 = vmatpush1.msra.mxu0 %v1059
      %1199 = vmatprep.subr.mxu0 0.0
      %1200 = vmatpush2.msra.mxu0 0.0
      %1201 = vmatprep.subr.mxu0 0.0
      %1202 = vmatpush2.msra.mxu0 0.0
      %1203 = vmatprep.subr.mxu0 0.0
      %1204 = vmatpush2.msra.mxu0 0.0
      %1205 = vmatprep.subr.mxu0 0.0
      %1206 = vmatpush2.msra.mxu0 0.0
      %1207 = vmatprep.subr.mxu0 0.0
      %1208 = vmatpush2.msra.mxu0 0.0
      %1209 = vmatprep.subr.mxu0 0.0
      %1210 = vmatpush2.msra.mxu0 0.0
      %1211 = vmatprep.subr.mxu0 0.0
      %1212 = vmatpush2.msra.mxu0 0.0
      %1213 = vmatprep.subr.mxu0 0.0
      %1214 = vmatpush2.msra.mxu0 0.0
      %1215 = vmatprep.subr.mxu0 0.0
      %1216 = vmatpush2.msra.mxu0 0.0
      %1217 = vmatprep.subr.mxu0 0.0
      %1218 = vmatpush2.msra.mxu0 0.0
      %1219 = vmatprep.subr.mxu0 0.0
      %1220 = vmatpush2.msra.mxu0 0.0
      %1221 = vmatprep.subr.mxu0 0.0
      %1222 = vmatpush2.msra.mxu0 0.0
      %1223 = vmatprep.subr.mxu0 0.0
      %1224 = vmatpush2.msra.mxu0 0.0
      %1225 = vmatprep.subr.mxu0 0.0
      %1226 = vmatpush2.msra.mxu0 0.0
      %1227 = vmatprep.subr.mxu0 0.0
      %1228 = vmatpush2.msra.mxu0 0.0
      %1229 = vmatprep.subr.mxu0 0.0
      %1230 = vmatpush2.msra.mxu0 0.0
      %1231 = vmatprep.mubr.f32.mxu0 0.0
      %1232 = vmatmul.mubr.f32.gmra.mxu0 %v1070
      %v1233 = vpop.f32.mrf.mxu0
      %v1234 = vadd.f32 0.0, %v1233
      %v1235 = vpop.f32.mrf.mxu0
      %1236 = vmatprep.mubr.f32.mxu0 0.0
      %1237 = vmatmul.mubr.f32.gmra.mxu0 %v1073
      %v1238 = vpop.f32.mrf.mxu0
      %v1239 = vadd.f32 0.0, %v1238
      %v1240 = vpop.f32.mrf.mxu0
      %1241 = vmatprep.mubr.f32.mxu0 0.0
      %1242 = vmatmul.mubr.f32.gmra.mxu0 %v1076
      %v1243 = vpop.f32.mrf.mxu0
      %v1244 = vadd.f32 0.0, %v1243
      %v1245 = vpop.f32.mrf.mxu0
      %1246 = vmatprep.mubr.f32.mxu0 0.0
      %1247 = vmatmul.mubr.f32.gmra.mxu0 %v1079
      %v1248 = vpop.f32.mrf.mxu0
      %v1249 = vadd.f32 0.0, %v1248
      %v1250 = vpop.f32.mrf.mxu0
      %1251 = vmatprep.mubr.f32.mxu0 0.0
      %1252 = vmatmul.mubr.f32.gmra.mxu0 %v1082
      %v1253 = vpop.f32.mrf.mxu0
      %v1254 = vadd.f32 0.0, %v1253
      %v1255 = vpop.f32.mrf.mxu0
      %1256 = vmatprep.mubr.f32.mxu0 0.0
      %1257 = vmatmul.mubr.f32.gmra.mxu0 %v1085
      %v1258 = vpop.f32.mrf.mxu0
      %v1259 = vadd.f32 0.0, %v1258
      %v1260 = vpop.f32.mrf.mxu0
      %1261 = vmatprep.mubr.f32.mxu0 0.0
      %1262 = vmatmul.mubr.f32.gmra.mxu0 %v1088
      %v1263 = vpop.f32.mrf.mxu0
      %v1264 = vadd.f32 0.0, %v1263
      %v1265 = vpop.f32.mrf.mxu0
      %1266 = vmatprep.mubr.f32.mxu0 0.0
      %1267 = vmatmul.mubr.f32.gmra.mxu0 %v1091
      %v1268 = vpop.f32.mrf.mxu0
      %v1269 = vadd.f32 0.0, %v1268
      %v1270 = vpop.f32.mrf.mxu0
      %1271 = vmatprep.mubr.f32.mxu0 0.0
      %1272 = vmatmul.mubr.f32.gmra.mxu0 %v1094
      %v1273 = vpop.f32.mrf.mxu0
      %v1274 = vadd.f32 0.0, %v1273
      %v1275 = vpop.f32.mrf.mxu0
      %1276 = vmatprep.mubr.f32.mxu0 0.0
      %1277 = vmatmul.mubr.f32.gmra.mxu0 %v1097
      %v1278 = vpop.f32.mrf.mxu0
      %v1279 = vadd.f32 0.0, %v1278
      %v1280 = vpop.f32.mrf.mxu0
      %1281 = vmatprep.mubr.f32.mxu0 0.0
      %1282 = vmatmul.mubr.f32.gmra.mxu0 %v1100
      %v1283 = vpop.f32.mrf.mxu0
      %v1284 = vadd.f32 0.0, %v1283
      %v1285 = vpop.f32.mrf.mxu0
      %1286 = vmatprep.mubr.f32.mxu0 0.0
      %1287 = vmatmul.mubr.f32.gmra.mxu0 %v1103
      %v1288 = vpop.f32.mrf.mxu0
      %v1289 = vadd.f32 0.0, %v1288
      %v1290 = vpop.f32.mrf.mxu0
      %1291 = vmatprep.mubr.f32.mxu0 0.0
      %1292 = vmatmul.mubr.f32.gmra.mxu0 %v1106
      %v1293 = vpop.f32.mrf.mxu0
      %v1294 = vadd.f32 0.0, %v1293
      %v1295 = vpop.f32.mrf.mxu0
      %1296 = vmatprep.mubr.f32.mxu0 0.0
      %1297 = vmatmul.mubr.f32.gmra.mxu0 %v1109
      %v1298 = vpop.f32.mrf.mxu0
      %v1299 = vadd.f32 0.0, %v1298
      %v1300 = vpop.f32.mrf.mxu0
      %1301 = vmatprep.mubr.f32.mxu0 0.0
      %1302 = vmatmul.mubr.f32.gmra.mxu0 %v1112
      %v1303 = vpop.f32.mrf.mxu0
      %v1304 = vadd.f32 0.0, %v1303
      %v1305 = vpop.f32.mrf.mxu0
      %1306 = vmatprep.mubr.f32.mxu0 0.0
      %1307 = vmatmul.mubr.f32.gmra.mxu0 %v1115
      %v1308 = vpop.f32.mrf.mxu0
      %v1309 = vadd.f32 0.0, %v1308
      %v1310 = vpop.f32.mrf.mxu0
      %1311 = vmatprep.mubr.f32.mxu0 0.0
      %1312 = vmatmul.mubr.f32.gmra.mxu0 %v1118
      %v1313 = vpop.f32.mrf.mxu0
      %v1314 = vadd.f32 0.0, %v1313
      %v1315 = vpop.f32.mrf.mxu0
      %1316 = vmatprep.mubr.f32.mxu0 0.0
      %1317 = vmatmul.mubr.f32.gmra.mxu0 %v1121
      %v1318 = vpop.f32.mrf.mxu0
      %v1319 = vadd.f32 0.0, %v1318
      %v1320 = vpop.f32.mrf.mxu0
      %1321 = vmatprep.mubr.f32.mxu0 0.0
      %1322 = vmatmul.mubr.f32.gmra.mxu0 %v1124
      %v1323 = vpop.f32.mrf.mxu0
      %v1324 = vadd.f32 0.0, %v1323
      %v1325 = vpop.f32.mrf.mxu0
      %1326 = vmatprep.mubr.f32.mxu0 0.0
      %1327 = vmatmul.mubr.f32.gmra.mxu0 %v1127
      %v1328 = vpop.f32.mrf.mxu0
      %v1329 = vadd.f32 0.0, %v1328
      %v1330 = vpop.f32.mrf.mxu0
      %1331 = vmatprep.mubr.f32.mxu0 0.0
      %1332 = vmatmul.mubr.f32.gmra.mxu0 %v1130
      %v1333 = vpop.f32.mrf.mxu0
      %v1334 = vadd.f32 0.0, %v1333
      %v1335 = vpop.f32.mrf.mxu0
      %1336 = vmatprep.mubr.f32.mxu0 0.0
      %1337 = vmatmul.mubr.f32.gmra.mxu0 %v1133
      %v1338 = vpop.f32.mrf.mxu0
      %v1339 = vadd.f32 0.0, %v1338
      %v1340 = vpop.f32.mrf.mxu0
      %1341 = vmatprep.mubr.f32.mxu0 0.0
      %1342 = vmatmul.mubr.f32.gmra.mxu0 %v1136
      %v1343 = vpop.f32.mrf.mxu0
      %v1344 = vadd.f32 0.0, %v1343
      %v1345 = vpop.f32.mrf.mxu0
      %1346 = vmatprep.mubr.f32.mxu0 0.0
      %1347 = vmatmul.mubr.f32.gmra.mxu0 %v1139
      %v1348 = vpop.f32.mrf.mxu0
      %v1349 = vadd.f32 0.0, %v1348
      %v1350 = vpop.f32.mrf.mxu0
      %1351 = vmatprep.mubr.f32.mxu0 0.0
      %1352 = vmatmul.mubr.f32.gmra.mxu0 %v1142
      %v1353 = vpop.f32.mrf.mxu0
      %v1354 = vadd.f32 0.0, %v1353
      %v1355 = vpop.f32.mrf.mxu0
      %1356 = vmatprep.mubr.f32.mxu0 0.0
      %1357 = vmatmul.mubr.f32.gmra.mxu0 %v1145
      %v1358 = vpop.f32.mrf.mxu0
      %v1359 = vadd.f32 0.0, %v1358
      %v1360 = vpop.f32.mrf.mxu0
      %1361 = vmatprep.mubr.f32.mxu0 0.0
      %1362 = vmatmul.mubr.f32.gmra.mxu0 %v1148
      %v1363 = vpop.f32.mrf.mxu0
      %v1364 = vadd.f32 0.0, %v1363
      %v1365 = vpop.f32.mrf.mxu0
      %1366 = vmatprep.mubr.f32.mxu0 0.0
      %1367 = vmatmul.mubr.f32.gmra.mxu0 %v1151
      %v1368 = vpop.f32.mrf.mxu0
      %v1369 = vadd.f32 0.0, %v1368
      %v1370 = vpop.f32.mrf.mxu0
      %1371 = vmatprep.mubr.f32.mxu0 0.0
      %1372 = vmatmul.mubr.f32.gmra.mxu0 %v1154
      %v1373 = vpop.f32.mrf.mxu0
      %v1374 = vadd.f32 0.0, %v1373
      %v1375 = vpop.f32.mrf.mxu0
      %1376 = vmatprep.mubr.f32.mxu0 0.0
      %1377 = vmatmul.mubr.f32.gmra.mxu0 %v1157
      %v1378 = vpop.f32.mrf.mxu0
      %v1379 = vadd.f32 0.0, %v1378
      %v1380 = vpop.f32.mrf.mxu0
      %1381 = vmatprep.mubr.f32.mxu0 0.0
      %1382 = vmatmul.mubr.f32.gmra.mxu0 %v1160
      %v1383 = vpop.f32.mrf.mxu0
      %v1384 = vadd.f32 0.0, %v1383
      %v1385 = vpop.f32.mrf.mxu0
      %1386 = vmatprep.mubr.f32.mxu0 0.0
      %1387 = vmatmul.mubr.f32.gmra.mxu0 %v1163
      %v1388 = vpop.f32.mrf.mxu0
      %v1389 = vadd.f32 0.0, %v1388
      %v1390 = vpop.f32.mrf.mxu0
      %1391 = vdwg.mxu0
      %1392 = vst.msk [vmem:[%s352] sm:$0xff] %vm1007, %v1234
      %1393 = vst.msk [vmem:[%s352 + $0x8] sm:$0xff] %vm1007, %v1239
      %1394 = vst.msk [vmem:[%s352 + $0x10] sm:$0xff] %vm1007, %v1244
      %1395 = vst.msk [vmem:[%s352 + $0x18] sm:$0xff] %vm1007, %v1249
      %1396 = vst.msk [vmem:[%s352 + $0x20] sm:$0xff] %vm1007, %v1254
      %1397 = vst.msk [vmem:[%s352 + $0x28] sm:$0xff] %vm1007, %v1259
      %1398 = vst.msk [vmem:[%s352 + $0x30] sm:$0xff] %vm1007, %v1264
      %1399 = vst.msk [vmem:[%s352 + $0x38] sm:$0xff] %vm1007, %v1269
      %1400 = vst.msk [vmem:[%s352 + $0x40] sm:$0xff] %vm1007, %v1274
      %1401 = vst.msk [vmem:[%s352 + $0x48] sm:$0xff] %vm1007, %v1279
      %1402 = vst.msk [vmem:[%s352 + $0x50] sm:$0xff] %vm1007, %v1284
      %1403 = vst.msk [vmem:[%s352 + $0x58] sm:$0xff] %vm1007, %v1289
      %1404 = vst.msk [vmem:[%s352 + $0x60] sm:$0xff] %vm1007, %v1294
      %1405 = vst.msk [vmem:[%s352 + $0x68] sm:$0xff] %vm1007, %v1299
      %1406 = vst.msk [vmem:[%s352 + $0x70] sm:$0xff] %vm1007, %v1304
      %1407 = vst.msk [vmem:[%s352 + $0x78] sm:$0xff] %vm1007, %v1309
      %1408 = vst.msk [vmem:[%s352 + $0x80] sm:$0xff] %vm1007, %v1314
      %1409 = vst.msk [vmem:[%s352 + $0x88] sm:$0xff] %vm1007, %v1319
      %1410 = vst.msk [vmem:[%s352 + $0x90] sm:$0xff] %vm1007, %v1324
      %1411 = vst.msk [vmem:[%s352 + $0x98] sm:$0xff] %vm1007, %v1329
      %1412 = vst.msk [vmem:[%s352 + $0xa0] sm:$0xff] %vm1007, %v1334
      %1413 = vst.msk [vmem:[%s352 + $0xa8] sm:$0xff] %vm1007, %v1339
      %1414 = vst.msk [vmem:[%s352 + $0xb0] sm:$0xff] %vm1007, %v1344
      %1415 = vst.msk [vmem:[%s352 + $0xb8] sm:$0xff] %vm1007, %v1349
      %1416 = vst.msk [vmem:[%s352 + $0xc0] sm:$0xff] %vm1007, %v1354
      %1417 = vst.msk [vmem:[%s352 + $0xc8] sm:$0xff] %vm1007, %v1359
      %1418 = vst.msk [vmem:[%s352 + $0xd0] sm:$0xff] %vm1007, %v1364
      %1419 = vst.msk [vmem:[%s352 + $0xd8] sm:$0xff] %vm1007, %v1369
      %1420 = vst.msk [vmem:[%s352 + $0xe0] sm:$0xff] %vm1007, %v1374
      %1421 = vst.msk [vmem:[%s352 + $0xe8] sm:$0xff] %vm1007, %v1379
      %1422 = vst.msk [vmem:[%s352 + $0xf0] sm:$0xff] %vm1007, %v1384
      %1423 = vst.msk [vmem:[%s352 + $0xf8] sm:$0xf] %vm1021, %v1389
      %v1424 = vld [vmem:[%s6] sm:$0xff]
      %v1425 = vld [vmem:[%s6 + $0x8] sm:$0xff]
      %v1426 = vld [vmem:[%s6 + $0x10] sm:$0xff]
      %v1427 = vld [vmem:[%s6 + $0x18] sm:$0xff]
      %v1428 = vld [vmem:[%s6 + $0x20] sm:$0xff]
      %v1429 = vld [vmem:[%s6 + $0x28] sm:$0xff]
      %v1430 = vld [vmem:[%s6 + $0x30] sm:$0xff]
      %v1431 = vld [vmem:[%s6 + $0x38] sm:$0xff]
      %v1432 = vld [vmem:[%s6 + $0x40] sm:$0xff]
      %v1433 = vld [vmem:[%s6 + $0x48] sm:$0xff]
      %v1434 = vld [vmem:[%s6 + $0x50] sm:$0xff]
      %v1435 = vld [vmem:[%s6 + $0x58] sm:$0xff]
      %v1436 = vld [vmem:[%s6 + $0x60] sm:$0xff]
      %v1437 = vld [vmem:[%s6 + $0x68] sm:$0xff]
      %v1438 = vld [vmem:[%s6 + $0x70] sm:$0xff]
      %v1439 = vld [vmem:[%s6 + $0x78] sm:$0xff]
      %v1440 = vld [vmem:[%s6 + $0x80] sm:$0xff]
      %v1441 = vld [vmem:[%s6 + $0x88] sm:$0xff]
      %v1442 = vld [vmem:[%s6 + $0x90] sm:$0xff]
      %v1443 = vld [vmem:[%s6 + $0x98] sm:$0xff]
      %v1444 = vld [vmem:[%s6 + $0xa0] sm:$0xff]
      %v1445 = vld [vmem:[%s6 + $0xa8] sm:$0xff]
      %v1446 = vld [vmem:[%s6 + $0xb0] sm:$0xff]
      %v1447 = vld [vmem:[%s6 + $0xb8] sm:$0xff]
      %v1448 = vld [vmem:[%s6 + $0xc0] sm:$0xff]
      %v1449 = vld [vmem:[%s6 + $0xc8] sm:$0xff]
      %v1450 = vld [vmem:[%s6 + $0xd0] sm:$0xff]
      %v1451 = vld [vmem:[%s6 + $0xd8] sm:$0xff]
      %v1452 = vld [vmem:[%s6 + $0xe0] sm:$0xff]
      %v1453 = vld [vmem:[%s6 + $0xe8] sm:$0xff]
      %v1454 = vld [vmem:[%s6 + $0xf0] sm:$0xff]
      %v1455 = vld [vmem:[%s6 + $0xf8] sm:$0xff]
      %v1456 = vld [vmem:[%s6 + $0x100] sm:$0xff]
      %v1457 = vld [vmem:[%s6 + $0x108] sm:$0xff]
      %v1458 = vld [vmem:[%s6 + $0x110] sm:$0xff]
      %v1459 = vld [vmem:[%s6 + $0x118] sm:$0xff]
      %v1460 = vld [vmem:[%s6 + $0x120] sm:$0xff]
      %v1461 = vld [vmem:[%s6 + $0x128] sm:$0xff]
      %v1462 = vld [vmem:[%s6 + $0x130] sm:$0xff]
      %v1463 = vld [vmem:[%s6 + $0x138] sm:$0xff]
      %v1464 = vld [vmem:[%s6 + $0x140] sm:$0xff]
      %v1465 = vld [vmem:[%s6 + $0x148] sm:$0xff]
      %v1466 = vld [vmem:[%s6 + $0x150] sm:$0xff]
      %v1467 = vld [vmem:[%s6 + $0x158] sm:$0xff]
      %v1468 = vld [vmem:[%s6 + $0x160] sm:$0xff]
      %v1469 = vld [vmem:[%s6 + $0x168] sm:$0xff]
      %v1470 = vld [vmem:[%s6 + $0x170] sm:$0xff]
      %v1471 = vld [vmem:[%s6 + $0x178] sm:$0xff]
      %v1472 = vld [vmem:[%s6 + $0x180] sm:$0xff]
      %v1473 = vld [vmem:[%s6 + $0x188] sm:$0xff]
      %v1474 = vld [vmem:[%s6 + $0x190] sm:$0xff]
      %v1475 = vld [vmem:[%s6 + $0x198] sm:$0xff]
      %v1476 = vld [vmem:[%s6 + $0x1a0] sm:$0xff]
      %v1477 = vld [vmem:[%s6 + $0x1a8] sm:$0xff]
      %v1478 = vld [vmem:[%s6 + $0x1b0] sm:$0xff]
      %v1479 = vld [vmem:[%s6 + $0x1b8] sm:$0xff]
      %v1480 = vld [vmem:[%s6 + $0x1c0] sm:$0xff]
      %v1481 = vld [vmem:[%s6 + $0x1c8] sm:$0xff]
      %v1482 = vld [vmem:[%s6 + $0x1d0] sm:$0xf]
      %1483 = vrot.lane.b32.xlu0 %v793, 64
      %v1484 = vpop.permute.xlu0 %1483
      %1485 = vrot.lane.b32.xlu0 %v798, 64
      %v1486 = vpop.permute.xlu0 %1485
      %1487 = vrot.lane.b32.xlu0 %v803, 64
      %v1488 = vpop.permute.xlu0 %1487
      %1489 = vrot.lane.b32.xlu0 %v808, 64
      %v1490 = vpop.permute.xlu0 %1489
      %v1495 = vsel %vm825, %v1424, 0
      %v1498 = vsel %vm825, %v1425, 0
      %v1501 = vsel %vm825, %v1426, 0
      %v1504 = vsel %vm825, %v1427, 0
      %v1507 = vsel %vm825, %v1428, 0
      %v1510 = vsel %vm825, %v1429, 0
      %v1513 = vsel %vm825, %v1430, 0
      %v1516 = vsel %vm825, %v1431, 0
      %v1519 = vsel %vm825, %v1432, 0
      %v1522 = vsel %vm825, %v1433, 0
      %v1525 = vsel %vm825, %v1434, 0
      %v1528 = vsel %vm825, %v1435, 0
      %v1531 = vsel %vm825, %v1436, 0
      %v1534 = vsel %vm825, %v1437, 0
      %v1537 = vsel %vm825, %v1438, 0
      %v1540 = vsel %vm825, %v1439, 0
      %v1543 = vsel %vm825, %v1440, 0
      %v1546 = vsel %vm825, %v1441, 0
      %v1549 = vsel %vm825, %v1442, 0
      %v1552 = vsel %vm825, %v1443, 0
      %v1555 = vsel %vm825, %v1444, 0
      %v1558 = vsel %vm825, %v1445, 0
      %v1561 = vsel %vm825, %v1446, 0
      %v1564 = vsel %vm825, %v1447, 0
      %v1567 = vsel %vm825, %v1448, 0
      %v1570 = vsel %vm825, %v1449, 0
      %v1573 = vsel %vm825, %v1450, 0
      %v1576 = vsel %vm825, %v1451, 0
      %v1579 = vsel %vm825, %v1452, 0
      %v1582 = vsel %vm825, %v1453, 0
      %v1585 = vsel %vm825, %v1454, 0
      %v1588 = vsel %vm825, %v1455, 0
      %v1591 = vsel %vm825, %v1456, 0
      %v1594 = vsel %vm825, %v1457, 0
      %v1597 = vsel %vm825, %v1458, 0
      %v1600 = vsel %vm825, %v1459, 0
      %v1603 = vsel %vm825, %v1460, 0
      %v1606 = vsel %vm825, %v1461, 0
      %v1609 = vsel %vm825, %v1462, 0
      %v1612 = vsel %vm825, %v1463, 0
      %v1615 = vsel %vm825, %v1464, 0
      %v1618 = vsel %vm825, %v1465, 0
      %v1621 = vsel %vm825, %v1466, 0
      %v1624 = vsel %vm825, %v1467, 0
      %v1627 = vsel %vm825, %v1468, 0
      %v1630 = vsel %vm825, %v1469, 0
      %v1633 = vsel %vm825, %v1470, 0
      %v1636 = vsel %vm825, %v1471, 0
      %v1639 = vsel %vm825, %v1472, 0
      %v1642 = vsel %vm825, %v1473, 0
      %v1645 = vsel %vm825, %v1474, 0
      %v1648 = vsel %vm825, %v1475, 0
      %v1651 = vsel %vm825, %v1476, 0
      %v1654 = vsel %vm825, %v1477, 0
      %v1657 = vsel %vm825, %v1478, 0
      %v1660 = vsel %vm825, %v1479, 0
      %v1663 = vsel %vm825, %v1480, 0
      %v1666 = vsel %vm825, %v1481, 0
      %v1669 = vsel %vm825, %v1482, 0
      %v1671 = vsel %vm868, %v1490, 0
      %1673 = vmatprep.subr.mxu0 0.0
      %1674 = vmatpush1.msra.mxu0 0.0
      %1675 = vmatprep.subr.mxu0 0.0
      %1676 = vmatpush1.msra.mxu0 0.0
      %1677 = vmatprep.subr.mxu0 0.0
      %1678 = vmatpush1.msra.mxu0 0.0
      %1679 = vmatprep.subr.mxu0 0.0
      %1680 = vmatpush1.msra.mxu0 0.0
      %1681 = vmatprep.subr.mxu0 0.0
      %1682 = vmatpush1.msra.mxu0 0.0
      %1683 = vmatprep.subr.mxu0 0.0
      %1684 = vmatpush1.msra.mxu0 0.0
      %1685 = vmatprep.subr.mxu0 0.0
      %1686 = vmatpush1.msra.mxu0 0.0
      %1687 = vmatprep.subr.mxu0 0.0
      %1688 = vmatpush1.msra.mxu0 0.0
      %1689 = vmatprep.subr.mxu0 0.0
      %1690 = vmatpush1.msra.mxu0 0.0
      %1691 = vmatprep.subr.mxu0 0.0
      %1692 = vmatpush1.msra.mxu0 0.0
      %1693 = vmatprep.subr.mxu0 0.0
      %1694 = vmatpush1.msra.mxu0 0.0
      %1695 = vmatprep.subr.mxu0 0.0
      %1696 = vmatpush1.msra.mxu0 0.0
      %1697 = vmatprep.subr.mxu0 0.0
      %1698 = vmatpush1.msra.mxu0 %v1671
      %1699 = vmatprep.subr.mxu0 0.0
      %1700 = vmatpush1.msra.mxu0 %v1488
      %1701 = vmatprep.subr.mxu0 0.0
      %1702 = vmatpush1.msra.mxu0 %v1486
      %1703 = vmatprep.subr.mxu0 0.0
      %1704 = vmatpush1.msra.mxu0 %v1484
      %1705 = vmatprep.subr.mxu0 0.0
      %1706 = vmatpush2.msra.mxu0 0.0
      %1707 = vmatprep.subr.mxu0 0.0
      %1708 = vmatpush2.msra.mxu0 0.0
      %1709 = vmatprep.subr.mxu0 0.0
      %1710 = vmatpush2.msra.mxu0 0.0
      %1711 = vmatprep.subr.mxu0 0.0
      %1712 = vmatpush2.msra.mxu0 0.0
      %1713 = vmatprep.subr.mxu0 0.0
      %1714 = vmatpush2.msra.mxu0 0.0
      %1715 = vmatprep.subr.mxu0 0.0
      %1716 = vmatpush2.msra.mxu0 0.0
      %1717 = vmatprep.subr.mxu0 0.0
      %1718 = vmatpush2.msra.mxu0 0.0
      %1719 = vmatprep.subr.mxu0 0.0
      %1720 = vmatpush2.msra.mxu0 0.0
      %1721 = vmatprep.subr.mxu0 0.0
      %1722 = vmatpush2.msra.mxu0 0.0
      %1723 = vmatprep.subr.mxu0 0.0
      %1724 = vmatpush2.msra.mxu0 0.0
      %1725 = vmatprep.subr.mxu0 0.0
      %1726 = vmatpush2.msra.mxu0 0.0
      %1727 = vmatprep.subr.mxu0 0.0
      %1728 = vmatpush2.msra.mxu0 0.0
      %1729 = vmatprep.subr.mxu0 0.0
      %1730 = vmatpush2.msra.mxu0 0.0
      %1731 = vmatprep.subr.mxu0 0.0
      %1732 = vmatpush2.msra.mxu0 0.0
      %1733 = vmatprep.subr.mxu0 0.0
      %1734 = vmatpush2.msra.mxu0 0.0
      %1735 = vmatprep.subr.mxu0 0.0
      %1736 = vmatpush2.msra.mxu0 0.0
      %1737 = vmatprep.mubr.f32.mxu0 0.0
      %1738 = vmatmul.mubr.f32.gmra.mxu0 %v1495
      %v1739 = vpop.f32.mrf.mxu0
      %v1740 = vadd.f32 0.0, %v1739
      %v1741 = vpop.f32.mrf.mxu0
      %1742 = vmatprep.mubr.f32.mxu0 0.0
      %1743 = vmatmul.mubr.f32.gmra.mxu0 %v1498
      %v1744 = vpop.f32.mrf.mxu0
      %v1745 = vadd.f32 0.0, %v1744
      %v1746 = vpop.f32.mrf.mxu0
      %1747 = vmatprep.mubr.f32.mxu0 0.0
      %1748 = vmatmul.mubr.f32.gmra.mxu0 %v1501
      %v1749 = vpop.f32.mrf.mxu0
      %v1750 = vadd.f32 0.0, %v1749
      %v1751 = vpop.f32.mrf.mxu0
      %1752 = vmatprep.mubr.f32.mxu0 0.0
      %1753 = vmatmul.mubr.f32.gmra.mxu0 %v1504
      %v1754 = vpop.f32.mrf.mxu0
      %v1755 = vadd.f32 0.0, %v1754
      %v1756 = vpop.f32.mrf.mxu0
      %1757 = vmatprep.mubr.f32.mxu0 0.0
      %1758 = vmatmul.mubr.f32.gmra.mxu0 %v1507
      %v1759 = vpop.f32.mrf.mxu0
      %v1760 = vadd.f32 0.0, %v1759
      %v1761 = vpop.f32.mrf.mxu0
      %1762 = vmatprep.mubr.f32.mxu0 0.0
      %1763 = vmatmul.mubr.f32.gmra.mxu0 %v1510
      %v1764 = vpop.f32.mrf.mxu0
      %v1765 = vadd.f32 0.0, %v1764
      %v1766 = vpop.f32.mrf.mxu0
      %1767 = vmatprep.mubr.f32.mxu0 0.0
      %1768 = vmatmul.mubr.f32.gmra.mxu0 %v1513
      %v1769 = vpop.f32.mrf.mxu0
      %v1770 = vadd.f32 0.0, %v1769
      %v1771 = vpop.f32.mrf.mxu0
      %1772 = vmatprep.mubr.f32.mxu0 0.0
      %1773 = vmatmul.mubr.f32.gmra.mxu0 %v1516
      %v1774 = vpop.f32.mrf.mxu0
      %v1775 = vadd.f32 0.0, %v1774
      %v1776 = vpop.f32.mrf.mxu0
      %1777 = vmatprep.mubr.f32.mxu0 0.0
      %1778 = vmatmul.mubr.f32.gmra.mxu0 %v1519
      %v1779 = vpop.f32.mrf.mxu0
      %v1780 = vadd.f32 0.0, %v1779
      %v1781 = vpop.f32.mrf.mxu0
      %1782 = vmatprep.mubr.f32.mxu0 0.0
      %1783 = vmatmul.mubr.f32.gmra.mxu0 %v1522
      %v1784 = vpop.f32.mrf.mxu0
      %v1785 = vadd.f32 0.0, %v1784
      %v1786 = vpop.f32.mrf.mxu0
      %1787 = vmatprep.mubr.f32.mxu0 0.0
      %1788 = vmatmul.mubr.f32.gmra.mxu0 %v1525
      %v1789 = vpop.f32.mrf.mxu0
      %v1790 = vadd.f32 0.0, %v1789
      %v1791 = vpop.f32.mrf.mxu0
      %1792 = vmatprep.mubr.f32.mxu0 0.0
      %1793 = vmatmul.mubr.f32.gmra.mxu0 %v1528
      %v1794 = vpop.f32.mrf.mxu0
      %v1795 = vadd.f32 0.0, %v1794
      %v1796 = vpop.f32.mrf.mxu0
      %1797 = vmatprep.mubr.f32.mxu0 0.0
      %1798 = vmatmul.mubr.f32.gmra.mxu0 %v1531
      %v1799 = vpop.f32.mrf.mxu0
      %v1800 = vadd.f32 0.0, %v1799
      %v1801 = vpop.f32.mrf.mxu0
      %1802 = vmatprep.mubr.f32.mxu0 0.0
      %1803 = vmatmul.mubr.f32.gmra.mxu0 %v1534
      %v1804 = vpop.f32.mrf.mxu0
      %v1805 = vadd.f32 0.0, %v1804
      %v1806 = vpop.f32.mrf.mxu0
      %1807 = vmatprep.mubr.f32.mxu0 0.0
      %1808 = vmatmul.mubr.f32.gmra.mxu0 %v1537
      %v1809 = vpop.f32.mrf.mxu0
      %v1810 = vadd.f32 0.0, %v1809
      %v1811 = vpop.f32.mrf.mxu0
      %1812 = vmatprep.mubr.f32.mxu0 0.0
      %1813 = vmatmul.mubr.f32.gmra.mxu0 %v1540
      %v1814 = vpop.f32.mrf.mxu0
      %v1815 = vadd.f32 0.0, %v1814
      %v1816 = vpop.f32.mrf.mxu0
      %1817 = vmatprep.mubr.f32.mxu0 0.0
      %1818 = vmatmul.mubr.f32.gmra.mxu0 %v1543
      %v1819 = vpop.f32.mrf.mxu0
      %v1820 = vadd.f32 0.0, %v1819
      %v1821 = vpop.f32.mrf.mxu0
      %1822 = vmatprep.mubr.f32.mxu0 0.0
      %1823 = vmatmul.mubr.f32.gmra.mxu0 %v1546
      %v1824 = vpop.f32.mrf.mxu0
      %v1825 = vadd.f32 0.0, %v1824
      %v1826 = vpop.f32.mrf.mxu0
      %1827 = vmatprep.mubr.f32.mxu0 0.0
      %1828 = vmatmul.mubr.f32.gmra.mxu0 %v1549
      %v1829 = vpop.f32.mrf.mxu0
      %v1830 = vadd.f32 0.0, %v1829
      %v1831 = vpop.f32.mrf.mxu0
      %1832 = vmatprep.mubr.f32.mxu0 0.0
      %1833 = vmatmul.mubr.f32.gmra.mxu0 %v1552
      %v1834 = vpop.f32.mrf.mxu0
      %v1835 = vadd.f32 0.0, %v1834
      %v1836 = vpop.f32.mrf.mxu0
      %1837 = vmatprep.mubr.f32.mxu0 0.0
      %1838 = vmatmul.mubr.f32.gmra.mxu0 %v1555
      %v1839 = vpop.f32.mrf.mxu0
      %v1840 = vadd.f32 0.0, %v1839
      %v1841 = vpop.f32.mrf.mxu0
      %1842 = vmatprep.mubr.f32.mxu0 0.0
      %1843 = vmatmul.mubr.f32.gmra.mxu0 %v1558
      %v1844 = vpop.f32.mrf.mxu0
      %v1845 = vadd.f32 0.0, %v1844
      %v1846 = vpop.f32.mrf.mxu0
      %1847 = vmatprep.mubr.f32.mxu0 0.0
      %1848 = vmatmul.mubr.f32.gmra.mxu0 %v1561
      %v1849 = vpop.f32.mrf.mxu0
      %v1850 = vadd.f32 0.0, %v1849
      %v1851 = vpop.f32.mrf.mxu0
      %1852 = vmatprep.mubr.f32.mxu0 0.0
      %1853 = vmatmul.mubr.f32.gmra.mxu0 %v1564
      %v1854 = vpop.f32.mrf.mxu0
      %v1855 = vadd.f32 0.0, %v1854
      %v1856 = vpop.f32.mrf.mxu0
      %1857 = vmatprep.mubr.f32.mxu0 0.0
      %1858 = vmatmul.mubr.f32.gmra.mxu0 %v1567
      %v1859 = vpop.f32.mrf.mxu0
      %v1860 = vadd.f32 0.0, %v1859
      %v1861 = vpop.f32.mrf.mxu0
      %1862 = vmatprep.mubr.f32.mxu0 0.0
      %1863 = vmatmul.mubr.f32.gmra.mxu0 %v1570
      %v1864 = vpop.f32.mrf.mxu0
      %v1865 = vadd.f32 0.0, %v1864
      %v1866 = vpop.f32.mrf.mxu0
      %1867 = vmatprep.mubr.f32.mxu0 0.0
      %1868 = vmatmul.mubr.f32.gmra.mxu0 %v1573
      %v1869 = vpop.f32.mrf.mxu0
      %v1870 = vadd.f32 0.0, %v1869
      %v1871 = vpop.f32.mrf.mxu0
      %1872 = vmatprep.mubr.f32.mxu0 0.0
      %1873 = vmatmul.mubr.f32.gmra.mxu0 %v1576
      %v1874 = vpop.f32.mrf.mxu0
      %v1875 = vadd.f32 0.0, %v1874
      %v1876 = vpop.f32.mrf.mxu0
      %1877 = vmatprep.mubr.f32.mxu0 0.0
      %1878 = vmatmul.mubr.f32.gmra.mxu0 %v1579
      %v1879 = vpop.f32.mrf.mxu0
      %v1880 = vadd.f32 0.0, %v1879
      %v1881 = vpop.f32.mrf.mxu0
      %1882 = vmatprep.mubr.f32.mxu0 0.0
      %1883 = vmatmul.mubr.f32.gmra.mxu0 %v1582
      %v1884 = vpop.f32.mrf.mxu0
      %v1885 = vadd.f32 0.0, %v1884
      %v1886 = vpop.f32.mrf.mxu0
      %1887 = vmatprep.mubr.f32.mxu0 0.0
      %1888 = vmatmul.mubr.f32.gmra.mxu0 %v1585
      %v1889 = vpop.f32.mrf.mxu0
      %v1890 = vadd.f32 0.0, %v1889
      %v1891 = vpop.f32.mrf.mxu0
      %1892 = vmatprep.mubr.f32.mxu0 0.0
      %1893 = vmatmul.mubr.f32.gmra.mxu0 %v1588
      %v1894 = vpop.f32.mrf.mxu0
      %v1895 = vadd.f32 0.0, %v1894
      %v1896 = vpop.f32.mrf.mxu0
      %1897 = vmatprep.mubr.f32.mxu0 0.0
      %1898 = vmatmul.mubr.f32.gmra.mxu0 %v1591
      %v1899 = vpop.f32.mrf.mxu0
      %v1900 = vadd.f32 0.0, %v1899
      %v1901 = vpop.f32.mrf.mxu0
      %1902 = vmatprep.mubr.f32.mxu0 0.0
      %1903 = vmatmul.mubr.f32.gmra.mxu0 %v1594
      %v1904 = vpop.f32.mrf.mxu0
      %v1905 = vadd.f32 0.0, %v1904
      %v1906 = vpop.f32.mrf.mxu0
      %1907 = vmatprep.mubr.f32.mxu0 0.0
      %1908 = vmatmul.mubr.f32.gmra.mxu0 %v1597
      %v1909 = vpop.f32.mrf.mxu0
      %v1910 = vadd.f32 0.0, %v1909
      %v1911 = vpop.f32.mrf.mxu0
      %1912 = vmatprep.mubr.f32.mxu0 0.0
      %1913 = vmatmul.mubr.f32.gmra.mxu0 %v1600
      %v1914 = vpop.f32.mrf.mxu0
      %v1915 = vadd.f32 0.0, %v1914
      %v1916 = vpop.f32.mrf.mxu0
      %1917 = vmatprep.mubr.f32.mxu0 0.0
      %1918 = vmatmul.mubr.f32.gmra.mxu0 %v1603
      %v1919 = vpop.f32.mrf.mxu0
      %v1920 = vadd.f32 0.0, %v1919
      %v1921 = vpop.f32.mrf.mxu0
      %1922 = vmatprep.mubr.f32.mxu0 0.0
      %1923 = vmatmul.mubr.f32.gmra.mxu0 %v1606
      %v1924 = vpop.f32.mrf.mxu0
      %v1925 = vadd.f32 0.0, %v1924
      %v1926 = vpop.f32.mrf.mxu0
      %1927 = vmatprep.mubr.f32.mxu0 0.0
      %1928 = vmatmul.mubr.f32.gmra.mxu0 %v1609
      %v1929 = vpop.f32.mrf.mxu0
      %v1930 = vadd.f32 0.0, %v1929
      %v1931 = vpop.f32.mrf.mxu0
      %1932 = vmatprep.mubr.f32.mxu0 0.0
      %1933 = vmatmul.mubr.f32.gmra.mxu0 %v1612
      %v1934 = vpop.f32.mrf.mxu0
      %v1935 = vadd.f32 0.0, %v1934
      %v1936 = vpop.f32.mrf.mxu0
      %1937 = vmatprep.mubr.f32.mxu0 0.0
      %1938 = vmatmul.mubr.f32.gmra.mxu0 %v1615
      %v1939 = vpop.f32.mrf.mxu0
      %v1940 = vadd.f32 0.0, %v1939
      %v1941 = vpop.f32.mrf.mxu0
      %1942 = vmatprep.mubr.f32.mxu0 0.0
      %1943 = vmatmul.mubr.f32.gmra.mxu0 %v1618
      %v1944 = vpop.f32.mrf.mxu0
      %v1945 = vadd.f32 0.0, %v1944
      %v1946 = vpop.f32.mrf.mxu0
      %1947 = vmatprep.mubr.f32.mxu0 0.0
      %1948 = vmatmul.mubr.f32.gmra.mxu0 %v1621
      %v1949 = vpop.f32.mrf.mxu0
      %v1950 = vadd.f32 0.0, %v1949
      %v1951 = vpop.f32.mrf.mxu0
      %1952 = vmatprep.mubr.f32.mxu0 0.0
      %1953 = vmatmul.mubr.f32.gmra.mxu0 %v1624
      %v1954 = vpop.f32.mrf.mxu0
      %v1955 = vadd.f32 0.0, %v1954
      %v1956 = vpop.f32.mrf.mxu0
      %1957 = vmatprep.mubr.f32.mxu0 0.0
      %1958 = vmatmul.mubr.f32.gmra.mxu0 %v1627
      %v1959 = vpop.f32.mrf.mxu0
      %v1960 = vadd.f32 0.0, %v1959
      %v1961 = vpop.f32.mrf.mxu0
      %1962 = vmatprep.mubr.f32.mxu0 0.0
      %1963 = vmatmul.mubr.f32.gmra.mxu0 %v1630
      %v1964 = vpop.f32.mrf.mxu0
      %v1965 = vadd.f32 0.0, %v1964
      %v1966 = vpop.f32.mrf.mxu0
      %1967 = vmatprep.mubr.f32.mxu0 0.0
      %1968 = vmatmul.mubr.f32.gmra.mxu0 %v1633
      %v1969 = vpop.f32.mrf.mxu0
      %v1970 = vadd.f32 0.0, %v1969
      %v1971 = vpop.f32.mrf.mxu0
      %1972 = vmatprep.mubr.f32.mxu0 0.0
      %1973 = vmatmul.mubr.f32.gmra.mxu0 %v1636
      %v1974 = vpop.f32.mrf.mxu0
      %v1975 = vadd.f32 0.0, %v1974
      %v1976 = vpop.f32.mrf.mxu0
      %1977 = vmatprep.mubr.f32.mxu0 0.0
      %1978 = vmatmul.mubr.f32.gmra.mxu0 %v1639
      %v1979 = vpop.f32.mrf.mxu0
      %v1980 = vadd.f32 0.0, %v1979
      %v1981 = vpop.f32.mrf.mxu0
      %1982 = vmatprep.mubr.f32.mxu0 0.0
      %1983 = vmatmul.mubr.f32.gmra.mxu0 %v1642
      %v1984 = vpop.f32.mrf.mxu0
      %v1985 = vadd.f32 0.0, %v1984
      %v1986 = vpop.f32.mrf.mxu0
      %1987 = vmatprep.mubr.f32.mxu0 0.0
      %1988 = vmatmul.mubr.f32.gmra.mxu0 %v1645
      %v1989 = vpop.f32.mrf.mxu0
      %v1990 = vadd.f32 0.0, %v1989
      %v1991 = vpop.f32.mrf.mxu0
      %1992 = vmatprep.mubr.f32.mxu0 0.0
      %1993 = vmatmul.mubr.f32.gmra.mxu0 %v1648
      %v1994 = vpop.f32.mrf.mxu0
      %v1995 = vadd.f32 0.0, %v1994
      %v1996 = vpop.f32.mrf.mxu0
      %1997 = vmatprep.mubr.f32.mxu0 0.0
      %1998 = vmatmul.mubr.f32.gmra.mxu0 %v1651
      %v1999 = vpop.f32.mrf.mxu0
      %v2000 = vadd.f32 0.0, %v1999
      %v2001 = vpop.f32.mrf.mxu0
      %2002 = vmatprep.mubr.f32.mxu0 0.0
      %2003 = vmatmul.mubr.f32.gmra.mxu0 %v1654
      %v2004 = vpop.f32.mrf.mxu0
      %v2005 = vadd.f32 0.0, %v2004
      %v2006 = vpop.f32.mrf.mxu0
      %2007 = vmatprep.mubr.f32.mxu0 0.0
      %2008 = vmatmul.mubr.f32.gmra.mxu0 %v1657
      %v2009 = vpop.f32.mrf.mxu0
      %v2010 = vadd.f32 0.0, %v2009
      %v2011 = vpop.f32.mrf.mxu0
      %2012 = vmatprep.mubr.f32.mxu0 0.0
      %2013 = vmatmul.mubr.f32.gmra.mxu0 %v1660
      %v2014 = vpop.f32.mrf.mxu0
      %v2015 = vadd.f32 0.0, %v2014
      %v2016 = vpop.f32.mrf.mxu0
      %2017 = vmatprep.mubr.f32.mxu0 0.0
      %2018 = vmatmul.mubr.f32.gmra.mxu0 %v1663
      %v2019 = vpop.f32.mrf.mxu0
      %v2020 = vadd.f32 0.0, %v2019
      %v2021 = vpop.f32.mrf.mxu0
      %2022 = vmatprep.mubr.f32.mxu0 0.0
      %2023 = vmatmul.mubr.f32.gmra.mxu0 %v1666
      %v2024 = vpop.f32.mrf.mxu0
      %v2025 = vadd.f32 0.0, %v2024
      %v2026 = vpop.f32.mrf.mxu0
      %2027 = vmatprep.mubr.f32.mxu0 0.0
      %2028 = vmatmul.mubr.f32.gmra.mxu0 %v1669
      %v2029 = vpop.f32.mrf.mxu0
      %v2030 = vadd.f32 0.0, %v2029
      %v2031 = vpop.f32.mrf.mxu0
      %2032 = vdwg.mxu0
      %2033 = vst.msk [vmem:[%s357] sm:$0xff] %vm1007, %v1740
      %2034 = vst.msk [vmem:[%s357 + $0x8] sm:$0xff] %vm1007, %v1745
      %2035 = vst.msk [vmem:[%s357 + $0x10] sm:$0xff] %vm1007, %v1750
      %2036 = vst.msk [vmem:[%s357 + $0x18] sm:$0xff] %vm1007, %v1755
      %2037 = vst.msk [vmem:[%s357 + $0x20] sm:$0xff] %vm1007, %v1760
      %2038 = vst.msk [vmem:[%s357 + $0x28] sm:$0xff] %vm1007, %v1765
      %2039 = vst.msk [vmem:[%s357 + $0x30] sm:$0xff] %vm1007, %v1770
      %2040 = vst.msk [vmem:[%s357 + $0x38] sm:$0xff] %vm1007, %v1775
      %2041 = vst.msk [vmem:[%s357 + $0x40] sm:$0xff] %vm1007, %v1780
      %2042 = vst.msk [vmem:[%s357 + $0x48] sm:$0xff] %vm1007, %v1785
      %2043 = vst.msk [vmem:[%s357 + $0x50] sm:$0xff] %vm1007, %v1790
      %2044 = vst.msk [vmem:[%s357 + $0x58] sm:$0xff] %vm1007, %v1795
      %2045 = vst.msk [vmem:[%s357 + $0x60] sm:$0xff] %vm1007, %v1800
      %2046 = vst.msk [vmem:[%s357 + $0x68] sm:$0xff] %vm1007, %v1805
      %2047 = vst.msk [vmem:[%s357 + $0x70] sm:$0xff] %vm1007, %v1810
      %2048 = vst.msk [vmem:[%s357 + $0x78] sm:$0xff] %vm1007, %v1815
      %2049 = vst.msk [vmem:[%s357 + $0x80] sm:$0xff] %vm1007, %v1820
      %2050 = vst.msk [vmem:[%s357 + $0x88] sm:$0xff] %vm1007, %v1825
      %2051 = vst.msk [vmem:[%s357 + $0x90] sm:$0xff] %vm1007, %v1830
      %2052 = vst.msk [vmem:[%s357 + $0x98] sm:$0xff] %vm1007, %v1835
      %2053 = vst.msk [vmem:[%s357 + $0xa0] sm:$0xff] %vm1007, %v1840
      %2054 = vst.msk [vmem:[%s357 + $0xa8] sm:$0xff] %vm1007, %v1845
      %2055 = vst.msk [vmem:[%s357 + $0xb0] sm:$0xff] %vm1007, %v1850
      %2056 = vst.msk [vmem:[%s357 + $0xb8] sm:$0xff] %vm1007, %v1855
      %2057 = vst.msk [vmem:[%s357 + $0xc0] sm:$0xff] %vm1007, %v1860
      %2058 = vst.msk [vmem:[%s357 + $0xc8] sm:$0xff] %vm1007, %v1865
      %2059 = vst.msk [vmem:[%s357 + $0xd0] sm:$0xff] %vm1007, %v1870
      %2060 = vst.msk [vmem:[%s357 + $0xd8] sm:$0xff] %vm1007, %v1875
      %2061 = vst.msk [vmem:[%s357 + $0xe0] sm:$0xff] %vm1007, %v1880
      %2062 = vst.msk [vmem:[%s357 + $0xe8] sm:$0xff] %vm1007, %v1885
      %2063 = vst.msk [vmem:[%s357 + $0xf0] sm:$0xff] %vm1007, %v1890
      %2064 = vst.msk [vmem:[%s357 + $0xf8] sm:$0xff] %vm1007, %v1895
      %2065 = vst.msk [vmem:[%s357 + $0x100] sm:$0xff] %vm1007, %v1900
      %2066 = vst.msk [vmem:[%s357 + $0x108] sm:$0xff] %vm1007, %v1905
      %2067 = vst.msk [vmem:[%s357 + $0x110] sm:$0xff] %vm1007, %v1910
      %2068 = vst.msk [vmem:[%s357 + $0x118] sm:$0xff] %vm1007, %v1915
      %2069 = vst.msk [vmem:[%s357 + $0x120] sm:$0xff] %vm1007, %v1920
      %2070 = vst.msk [vmem:[%s357 + $0x128] sm:$0xff] %vm1007, %v1925
      %2071 = vst.msk [vmem:[%s357 + $0x130] sm:$0xff] %vm1007, %v1930
      %2072 = vst.msk [vmem:[%s357 + $0x138] sm:$0xff] %vm1007, %v1935
      %2073 = vst.msk [vmem:[%s357 + $0x140] sm:$0xff] %vm1007, %v1940
      %2074 = vst.msk [vmem:[%s357 + $0x148] sm:$0xff] %vm1007, %v1945
      %2075 = vst.msk [vmem:[%s357 + $0x150] sm:$0xff] %vm1007, %v1950
      %2076 = vst.msk [vmem:[%s357 + $0x158] sm:$0xff] %vm1007, %v1955
      %2077 = vst.msk [vmem:[%s357 + $0x160] sm:$0xff] %vm1007, %v1960
      %2078 = vst.msk [vmem:[%s357 + $0x168] sm:$0xff] %vm1007, %v1965
      %2079 = vst.msk [vmem:[%s357 + $0x170] sm:$0xff] %vm1007, %v1970
      %2080 = vst.msk [vmem:[%s357 + $0x178] sm:$0xff] %vm1007, %v1975
      %2081 = vst.msk [vmem:[%s357 + $0x180] sm:$0xff] %vm1007, %v1980
      %2082 = vst.msk [vmem:[%s357 + $0x188] sm:$0xff] %vm1007, %v1985
      %2083 = vst.msk [vmem:[%s357 + $0x190] sm:$0xff] %vm1007, %v1990
      %2084 = vst.msk [vmem:[%s357 + $0x198] sm:$0xff] %vm1007, %v1995
      %2085 = vst.msk [vmem:[%s357 + $0x1a0] sm:$0xff] %vm1007, %v2000
      %2086 = vst.msk [vmem:[%s357 + $0x1a8] sm:$0xff] %vm1007, %v2005
      %2087 = vst.msk [vmem:[%s357 + $0x1b0] sm:$0xff] %vm1007, %v2010
      %2088 = vst.msk [vmem:[%s357 + $0x1b8] sm:$0xff] %vm1007, %v2015
      %2089 = vst.msk [vmem:[%s357 + $0x1c0] sm:$0xff] %vm1007, %v2020
      %2090 = vst.msk [vmem:[%s357 + $0x1c8] sm:$0xff] %vm1007, %v2025
      %2091 = vst.msk [vmem:[%s357 + $0x1d0] sm:$0xf] %vm1021, %v2030
      %p2092 = scmp.lt.s32.totalorder %s21, 1
      %s2093 = scalar_select %p2092, %s21, 1
      %s2094 = smul.addr %s2093, 14
      %s2095 = smul.addr %s2094, 8
      %s2096 = scalar_lea.vmem %s7, %s2095
      %p2097 = scmp.lt.s32.totalorder %s21, 1
      %s2098 = scalar_select %p2097, %s21, 1
      %s2099 = smul.addr %s2098, 32
      %s2100 = smul.addr %s2099, 8
      %s2101 = scalar_lea.vmem %s8, %s2100
      %p2102 = scmp.lt.s32.totalorder %s21, 1
      %s2103 = scalar_select %p2102, %s21, 1
      %s2104 = smul.addr %s2103, 59
      %s2105 = smul.addr %s2104, 8
      %s2106 = scalar_lea.vmem %s9, %s2105
      // Predicated region
      $region49: #{multiscale_forward.2} parent=47 // pred_check
        %p2107 = pneg %p191
      $region50: #{multiscale_forward.2} parent=47 // pred_check_branch
        %2109 = sbr.rel (%p2107) target = $region52
      $region51: #{multiscale_forward.2} parent=47 // pred_region
        _
      $region52: #{multiscale_forward.2} parent=47 // pred_fallthru
        _
      // Predicated region
      $region53: #{multiscale_forward.2} parent=47 // pred_check
        %p2110 = pneg %p217
      $region54: #{multiscale_forward.2} parent=47 // pred_check_branch
        %2112 = sbr.rel (%p2110) target = $region56
      $region55: #{multiscale_forward.2} parent=47 // pred_region
        _
      $region56: #{multiscale_forward.2} parent=47 // pred_fallthru
        _
      // Predicated region
      $region57: #{multiscale_forward.2} parent=47 // pred_check
        %p2113 = pneg %p243
      $region58: #{multiscale_forward.2} parent=47 // pred_check_branch
        %2115 = sbr.rel (%p2113) target = $region60
      $region59: #{multiscale_forward.2} parent=47 // pred_region
        _
      $region60: #{multiscale_forward.2} parent=47 // pred_fallthru
        _
    $region48: #{multiscale_forward.2} parent=5 // pred_fallthru
      _
    %p2116 = scmp.le.s32.totalorder 2, %s16
    // Predicated region
    $region61: #{multiscale_forward.2} parent=5 // pred_check
      %p2117 = pneg %p2116
    $region62: #{multiscale_forward.2} parent=5 // pred_check_branch
      %2119 = sbr.rel (%p2117) target = $region64
    $region63: #{multiscale_forward.2} parent=5 // pred_region
      %s2120 = ssub.s32 %s16, 2
      // Predicated region
      $region65: #{multiscale_forward.2} parent=63 // pred_check
        %p2121 = pneg %p197
      $region66: #{multiscale_forward.2} parent=63 // pred_check_branch
        %2123 = sbr.rel (%p2121) target = $region68
      $region67: #{multiscale_forward.2} parent=63 // pred_region
        %p2124 = scmp.lt.s32.totalorder %s22, 1
        %s2125 = scalar_select %p2124, %s22, 1
        %s2126 = smul.addr %s2125, 14
        %s2127 = smul.addr %s2126, 8
        %s2128 = scalar_lea.vmem %s7, %s2127
      $region68: #{multiscale_forward.2} parent=63 // pred_fallthru
        _
      // Predicated region
      $region69: #{multiscale_forward.2} parent=63 // pred_check
        %p2129 = pneg %p223
      $region70: #{multiscale_forward.2} parent=63 // pred_check_branch
        %2131 = sbr.rel (%p2129) target = $region72
      $region71: #{multiscale_forward.2} parent=63 // pred_region
        %p2132 = scmp.lt.s32.totalorder %s22, 1
        %s2133 = scalar_select %p2132, %s22, 1
        %s2134 = smul.addr %s2133, 32
        %s2135 = smul.addr %s2134, 8
        %s2136 = scalar_lea.vmem %s8, %s2135
      $region72: #{multiscale_forward.2} parent=63 // pred_fallthru
        _
      // Predicated region
      $region73: #{multiscale_forward.2} parent=63 // pred_check
        %p2137 = pneg %p249
      $region74: #{multiscale_forward.2} parent=63 // pred_check_branch
        %2139 = sbr.rel (%p2137) target = $region76
      $region75: #{multiscale_forward.2} parent=63 // pred_region
        %p2140 = scmp.lt.s32.totalorder %s22, 1
        %s2141 = scalar_select %p2140, %s22, 1
        %s2142 = smul.addr %s2141, 59
        %s2143 = smul.addr %s2142, 8
        %s2144 = scalar_lea.vmem %s9, %s2143
      $region76: #{multiscale_forward.2} parent=63 // pred_fallthru
        _
    $region64: #{multiscale_forward.2} parent=5 // pred_fallthru
      _
  $region6: #{multiscale_forward.2} parent=0 // loop_footer
    %s20 = sadd.s32 1, %s16
  $region7: #{multiscale_forward.2} parent=0 // loop_footer_branch
    %15 = sbr.rel target = $region3
  $region8: #{multiscale_forward.2} parent=0 // loop_exit
    _

// kernel: multiscale_forward.3
$region0: #{multiscale_forward.3}
  #allocation0 [shape = 'u32[]', space=smem, size = 0x4, offset = 0x4, fixed_abs, tag = 'smem constant byte address 0x4 - core index']
  #allocation1 [shape = 'u32[144,128]{1,0:T(1,128)}', space=vmem, size = 0x12000, scoped, tag = 'internal scratch']
  %s0 = inlined_call_operand.vmem [shape: f32[2,9,384], index: 0, kind: input, shape index: {}]
  %s1 = inlined_call_operand.vmem [shape: f32[2,9,896], index: 1, kind: input, shape index: {}]
  %s2 = inlined_call_operand.vmem [shape: f32[2,9,1664], index: 2, kind: input, shape index: {}]
  %s3 = inlined_call_operand.vmem [shape: f32[384,64], index: 3, kind: input, shape index: {}]
  %s4 = inlined_call_operand.vmem [shape: f32[1,64], index: 4, kind: input, shape index: {}]
  %s5 = inlined_call_operand.vmem [shape: f32[64,128], index: 5, kind: input, shape index: {}]
  %s6 = inlined_call_operand.vmem [shape: f32[896,64], index: 6, kind: input, shape index: {}]
  %s7 = inlined_call_operand.vmem [shape: f32[1,64], index: 7, kind: input, shape index: {}]
  %s8 = inlined_call_operand.vmem [shape: f32[64,128], index: 8, kind: input, shape index: {}]
  %s9 = inlined_call_operand.vmem [shape: f32[1664,64], index: 9, kind: input, shape index: {}]
  %s10 = inlined_call_operand.vmem [shape: f32[1,64], index: 10, kind: input, shape index: {}]
  %s11 = inlined_call_operand.vmem [shape: f32[64,128], index: 11, kind: input, shape index: {}]
  %s12 = inlined_call_operand.vmem [shape: f32[1,128], index: 12, kind: input, shape index: {}]
  %s13 = inlined_call_operand.vmem [shape: f32[128,3], index: 13, kind: input, shape index: {}]
  %s14 = inlined_call_operand.vmem [shape: f32[1,3], index: 14, kind: input, shape index: {}]
  %s15 = inlined_call_operand.hbm [shape: f32[2,1,3], index: 15, kind: output, shape index: {}]
  %s16 = sld [smem:[#allocation0]]
  $region93: #{multiscale_forward.3} parent=0
    _
  %s18 = ssub.s32 1, %s16
  %s19 = scalar_select 0, %s18, %s16
  $region1: #{multiscale_forward.3} parent=0
    #allocation2 [shape = 'u8[1024]{0}', space=vmem, size = 0x400, scoped, tag = 'output window, operand 0']
    #allocation3 [shape = 's32[2]{0}', space=sflag, size = 0x8, scoped, tag = 'scoped memory for multiscale_forward.3']
    %20 = vsyncpa [#allocation3], 0
    %s21 = scalar_lea.sflag [#allocation3], 1
    %22 = vsyncpa %s21, 0
    loop: start=0, step=1, limit=4
    $region2: #{multiscale_forward.3} parent=1 // loop_pre_header
      _
    $region3: #{multiscale_forward.3} parent=1 // loop_header
      %s24 = sphi 0, %s28
      %p25 = scmp.ge.s32.totalorder %s24, 4
      %s34 = sphi 0, %s36
      %s37 = sphi 0, %s34
      %s38 = sphi 0, %s37
      %s54 = sphi 0, %s38
      %s60 = sphi 0, %s62
      %s63 = sphi 0, %s60
      %s64 = sphi 0, %s63
      %s80 = sphi 0, %s64
      %s86 = sphi 0, %s88
      %s89 = sphi 0, %s86
      %s90 = sphi 0, %s89
      %s106 = sphi 0, %s90
      %s110 = sphi 0, %s110
      %s112 = sphi 0, %s110
      %s113 = sphi 0, %s112
      %s127 = sphi 0, %s113
      %s131 = sphi 0, %s131
      %s133 = sphi 0, %s131
      %s134 = sphi 0, %s133
      %s148 = sphi 0, %s134
      %s152 = sphi 0, %s152
      %s154 = sphi 0, %s152
      %s155 = sphi 0, %s154
      %s169 = sphi 0, %s155
      %s173 = sphi 0, %s173
      %s175 = sphi 0, %s173
      %s176 = sphi 0, %s175
      %s190 = sphi 0, %s176
      %s194 = sphi 0, %s194
      %s196 = sphi 0, %s194
      %s197 = sphi 0, %s196
      %s211 = sphi 0, %s197
      %s215 = sphi 0, %s215
      %s217 = sphi 0, %s215
      %s218 = sphi 0, %s217
      %s232 = sphi 0, %s218
      %s236 = sphi 0, %s236
      %s238 = sphi 0, %s236
      %s239 = sphi 0, %s238
      %s253 = sphi 0, %s239
      %s257 = sphi 0, %s257
      %s259 = sphi 0, %s257
      %s260 = sphi 0, %s259
      %s274 = sphi 0, %s260
      %s278 = sphi 0, %s278
      %s280 = sphi 0, %s278
      %s281 = sphi 0, %s280
      %s295 = sphi 0, %s281
      %s299 = sphi 0, %s299
      %s301 = sphi 0, %s299
      %s302 = sphi 0, %s301
      %s316 = sphi 0, %s302
      %s320 = sphi 0, %s320
      %s322 = sphi 0, %s320
      %s323 = sphi 0, %s322
      %s337 = sphi 0, %s323
      %s341 = sphi 0, %s341
      %s343 = sphi 0, %s341
      %s344 = sphi 0, %s343
      %s358 = sphi 0, %s344
      %s364 = sphi 0, %s366
      %s367 = sphi 0, %s364
      %s368 = sphi 0, %s367
      %s384 = sphi 0, %s368
    $region4: #{multiscale_forward.3} parent=1 // loop_header_branch
      %27 = sbr.rel (%p25) target = $region8
    $region5: #{multiscale_forward.3} parent=1 // loop_body
      %s29 = ssub.s32 %s24, 1
      %s30 = ssub.s32 %s24, 2
      %s31 = sadd.s32 %s24, 1
      %s32 = ssub.s32 %s24, %s31
      %p33 = scmp.eq.s32.totalorder %s32, 0
      %s35 = sadd.s32 %s34, 1
      %s36 = scalar_select %p33, %s34, %s35
      %p39 = pneg %p33
      %p40 = scmp.eq.s32.totalorder %s24, 1
      %p41 = por %p39, %p40
      %p42 = scmp.ne.s32.totalorder %s34, %s37
      %p43 = scmp.eq.s32.totalorder %s24, 0
      %p44 = por %p42, %p43
      %p45 = scmp.ne.s32.totalorder %s34, %s37
      %p46 = scmp.eq.s32.totalorder %s29, 1
      %p47 = por %p45, %p46
      %p48 = scmp.ne.s32.totalorder %s37, %s38
      %p49 = scmp.eq.s32.totalorder %s29, 0
      %p50 = por %p48, %p49
      %p51 = scmp.ne.s32.totalorder %s37, %s38
      %p52 = scmp.eq.s32.totalorder %s30, 1
      %p53 = por %p51, %p52
      %p55 = scmp.ne.s32.totalorder %s38, %s54
      %p56 = scmp.eq.s32.totalorder %s30, 0
      %p57 = por %p55, %p56
      %s58 = ssub.s32 %s24, %s31
      %p59 = scmp.eq.s32.totalorder %s58, 0
      %s61 = sadd.s32 %s60, 1
      %s62 = scalar_select %p59, %s60, %s61
      %p65 = pneg %p59
      %p66 = scmp.eq.s32.totalorder %s24, 1
      %p67 = por %p65, %p66
      %p68 = scmp.ne.s32.totalorder %s60, %s63
      %p69 = scmp.eq.s32.totalorder %s24, 0
      %p70 = por %p68, %p69
      %p71 = scmp.ne.s32.totalorder %s60, %s63
      %p72 = scmp.eq.s32.totalorder %s29, 1
      %p73 = por %p71, %p72
      %p74 = scmp.ne.s32.totalorder %s63, %s64
      %p75 = scmp.eq.s32.totalorder %s29, 0
      %p76 = por %p74, %p75
      %p77 = scmp.ne.s32.totalorder %s63, %s64
      %p78 = scmp.eq.s32.totalorder %s30, 1
      %p79 = por %p77, %p78
      %p81 = scmp.ne.s32.totalorder %s64, %s80
      %p82 = scmp.eq.s32.totalorder %s30, 0
      %p83 = por %p81, %p82
      %s84 = ssub.s32 %s24, %s31
      %p85 = scmp.eq.s32.totalorder %s84, 0
      %s87 = sadd.s32 %s86, 1
      %s88 = scalar_select %p85, %s86, %s87
      %p91 = pneg %p85
      %p92 = scmp.eq.s32.totalorder %s24, 1
      %p93 = por %p91, %p92
      %p94 = scmp.ne.s32.totalorder %s86, %s89
      %p95 = scmp.eq.s32.totalorder %s24, 0
      %p96 = por %p94, %p95
      %p97 = scmp.ne.s32.totalorder %s86, %s89
      %p98 = scmp.eq.s32.totalorder %s29, 1
      %p99 = por %p97, %p98
      %p100 = scmp.ne.s32.totalorder %s89, %s90
      %p101 = scmp.eq.s32.totalorder %s29, 0
      %p102 = por %p100, %p101
      %p103 = scmp.ne.s32.totalorder %s89, %s90
      %p104 = scmp.eq.s32.totalorder %s30, 1
      %p105 = por %p103, %p104
      %p107 = scmp.ne.s32.totalorder %s90, %s106
      %p108 = scmp.eq.s32.totalorder %s30, 0
      %p109 = por %p107, %p108
      %s111 = sadd.s32 %s110, 1
      %p114 = scmp.eq.s32.totalorder %s24, 1
      %p115 = scmp.ne.s32.totalorder %s110, %s112
      %p116 = scmp.eq.s32.totalorder %s24, 0
      %p117 = por %p115, %p116
      %p118 = scmp.ne.s32.totalorder %s110, %s112
      %p119 = scmp.eq.s32.totalorder %s29, 1
      %p120 = por %p118, %p119
      %p121 = scmp.ne.s32.totalorder %s112, %s113
      %p122 = scmp.eq.s32.totalorder %s29, 0
      %p123 = por %p121, %p122
      %p124 = scmp.ne.s32.totalorder %s112, %s113
      %p125 = scmp.eq.s32.totalorder %s30, 1
      %p126 = por %p124, %p125
      %p128 = scmp.ne.s32.totalorder %s113, %s127
      %p129 = scmp.eq.s32.totalorder %s30, 0
      %p130 = por %p128, %p129
      %s132 = sadd.s32 %s131, 1
      %p135 = scmp.eq.s32.totalorder %s24, 1
      %p136 = scmp.ne.s32.totalorder %s131, %s133
      %p137 = scmp.eq.s32.totalorder %s24, 0
      %p138 = por %p136, %p137
      %p139 = scmp.ne.s32.totalorder %s131, %s133
      %p140 = scmp.eq.s32.totalorder %s29, 1
      %p141 = por %p139, %p140
      %p142 = scmp.ne.s32.totalorder %s133, %s134
      %p143 = scmp.eq.s32.totalorder %s29, 0
      %p144 = por %p142, %p143
      %p145 = scmp.ne.s32.totalorder %s133, %s134
      %p146 = scmp.eq.s32.totalorder %s30, 1
      %p147 = por %p145, %p146
      %p149 = scmp.ne.s32.totalorder %s134, %s148
      %p150 = scmp.eq.s32.totalorder %s30, 0
      %p151 = por %p149, %p150
      %s153 = sadd.s32 %s152, 1
      %p156 = scmp.eq.s32.totalorder %s24, 1
      %p157 = scmp.ne.s32.totalorder %s152, %s154
      %p158 = scmp.eq.s32.totalorder %s24, 0
      %p159 = por %p157, %p158
      %p160 = scmp.ne.s32.totalorder %s152, %s154
      %p161 = scmp.eq.s32.totalorder %s29, 1
      %p162 = por %p160, %p161
      %p163 = scmp.ne.s32.totalorder %s154, %s155
      %p164 = scmp.eq.s32.totalorder %s29, 0
      %p165 = por %p163, %p164
      %p166 = scmp.ne.s32.totalorder %s154, %s155
      %p167 = scmp.eq.s32.totalorder %s30, 1
      %p168 = por %p166, %p167
      %p170 = scmp.ne.s32.totalorder %s155, %s169
      %p171 = scmp.eq.s32.totalorder %s30, 0
      %p172 = por %p170, %p171
      %s174 = sadd.s32 %s173, 1
      %p177 = scmp.eq.s32.totalorder %s24, 1
      %p178 = scmp.ne.s32.totalorder %s173, %s175
      %p179 = scmp.eq.s32.totalorder %s24, 0
      %p180 = por %p178, %p179
      %p181 = scmp.ne.s32.totalorder %s173, %s175
      %p182 = scmp.eq.s32.totalorder %s29, 1
      %p183 = por %p181, %p182
      %p184 = scmp.ne.s32.totalorder %s175, %s176
      %p185 = scmp.eq.s32.totalorder %s29, 0
      %p186 = por %p184, %p185
      %p187 = scmp.ne.s32.totalorder %s175, %s176
      %p188 = scmp.eq.s32.totalorder %s30, 1
      %p189 = por %p187, %p188
      %p191 = scmp.ne.s32.totalorder %s176, %s190
      %p192 = scmp.eq.s32.totalorder %s30, 0
      %p193 = por %p191, %p192
      %s195 = sadd.s32 %s194, 1
      %p198 = scmp.eq.s32.totalorder %s24, 1
      %p199 = scmp.ne.s32.totalorder %s194, %s196
      %p200 = scmp.eq.s32.totalorder %s24, 0
      %p201 = por %p199, %p200
      %p202 = scmp.ne.s32.totalorder %s194, %s196
      %p203 = scmp.eq.s32.totalorder %s29, 1
      %p204 = por %p202, %p203
      %p205 = scmp.ne.s32.totalorder %s196, %s197
      %p206 = scmp.eq.s32.totalorder %s29, 0
      %p207 = por %p205, %p206
      %p208 = scmp.ne.s32.totalorder %s196, %s197
      %p209 = scmp.eq.s32.totalorder %s30, 1
      %p210 = por %p208, %p209
      %p212 = scmp.ne.s32.totalorder %s197, %s211
      %p213 = scmp.eq.s32.totalorder %s30, 0
      %p214 = por %p212, %p213
      %s216 = sadd.s32 %s215, 1
      %p219 = scmp.eq.s32.totalorder %s24, 1
      %p220 = scmp.ne.s32.totalorder %s215, %s217
      %p221 = scmp.eq.s32.totalorder %s24, 0
      %p222 = por %p220, %p221
      %p223 = scmp.ne.s32.totalorder %s215, %s217
      %p224 = scmp.eq.s32.totalorder %s29, 1
      %p225 = por %p223, %p224
      %p226 = scmp.ne.s32.totalorder %s217, %s218
      %p227 = scmp.eq.s32.totalorder %s29, 0
      %p228 = por %p226, %p227
      %p229 = scmp.ne.s32.totalorder %s217, %s218
      %p230 = scmp.eq.s32.totalorder %s30, 1
      %p231 = por %p229, %p230
      %p233 = scmp.ne.s32.totalorder %s218, %s232
      %p234 = scmp.eq.s32.totalorder %s30, 0
      %p235 = por %p233, %p234
      %s237 = sadd.s32 %s236, 1
      %p240 = scmp.eq.s32.totalorder %s24, 1
      %p241 = scmp.ne.s32.totalorder %s236, %s238
      %p242 = scmp.eq.s32.totalorder %s24, 0
      %p243 = por %p241, %p242
      %p244 = scmp.ne.s32.totalorder %s236, %s238
      %p245 = scmp.eq.s32.totalorder %s29, 1
      %p246 = por %p244, %p245
      %p247 = scmp.ne.s32.totalorder %s238, %s239
      %p248 = scmp.eq.s32.totalorder %s29, 0
      %p249 = por %p247, %p248
      %p250 = scmp.ne.s32.totalorder %s238, %s239
      %p251 = scmp.eq.s32.totalorder %s30, 1
      %p252 = por %p250, %p251
      %p254 = scmp.ne.s32.totalorder %s239, %s253
      %p255 = scmp.eq.s32.totalorder %s30, 0
      %p256 = por %p254, %p255
      %s258 = sadd.s32 %s257, 1
      %p261 = scmp.eq.s32.totalorder %s24, 1
      %p262 = scmp.ne.s32.totalorder %s257, %s259
      %p263 = scmp.eq.s32.totalorder %s24, 0
      %p264 = por %p262, %p263
      %p265 = scmp.ne.s32.totalorder %s257, %s259
      %p266 = scmp.eq.s32.totalorder %s29, 1
      %p267 = por %p265, %p266
      %p268 = scmp.ne.s32.totalorder %s259, %s260
      %p269 = scmp.eq.s32.totalorder %s29, 0
      %p270 = por %p268, %p269
      %p271 = scmp.ne.s32.totalorder %s259, %s260
      %p272 = scmp.eq.s32.totalorder %s30, 1
      %p273 = por %p271, %p272
      %p275 = scmp.ne.s32.totalorder %s260, %s274
      %p276 = scmp.eq.s32.totalorder %s30, 0
      %p277 = por %p275, %p276
      %s279 = sadd.s32 %s278, 1
      %p282 = scmp.eq.s32.totalorder %s24, 1
      %p283 = scmp.ne.s32.totalorder %s278, %s280
      %p284 = scmp.eq.s32.totalorder %s24, 0
      %p285 = por %p283, %p284
      %p286 = scmp.ne.s32.totalorder %s278, %s280
      %p287 = scmp.eq.s32.totalorder %s29, 1
      %p288 = por %p286, %p287
      %p289 = scmp.ne.s32.totalorder %s280, %s281
      %p290 = scmp.eq.s32.totalorder %s29, 0
      %p291 = por %p289, %p290
      %p292 = scmp.ne.s32.totalorder %s280, %s281
      %p293 = scmp.eq.s32.totalorder %s30, 1
      %p294 = por %p292, %p293
      %p296 = scmp.ne.s32.totalorder %s281, %s295
      %p297 = scmp.eq.s32.totalorder %s30, 0
      %p298 = por %p296, %p297
      %s300 = sadd.s32 %s299, 1
      %p303 = scmp.eq.s32.totalorder %s24, 1
      %p304 = scmp.ne.s32.totalorder %s299, %s301
      %p305 = scmp.eq.s32.totalorder %s24, 0
      %p306 = por %p304, %p305
      %p307 = scmp.ne.s32.totalorder %s299, %s301
      %p308 = scmp.eq.s32.totalorder %s29, 1
      %p309 = por %p307, %p308
      %p310 = scmp.ne.s32.totalorder %s301, %s302
      %p311 = scmp.eq.s32.totalorder %s29, 0
      %p312 = por %p310, %p311
      %p313 = scmp.ne.s32.totalorder %s301, %s302
      %p314 = scmp.eq.s32.totalorder %s30, 1
      %p315 = por %p313, %p314
      %p317 = scmp.ne.s32.totalorder %s302, %s316
      %p318 = scmp.eq.s32.totalorder %s30, 0
      %p319 = por %p317, %p318
      %s321 = sadd.s32 %s320, 1
      %p324 = scmp.eq.s32.totalorder %s24, 1
      %p325 = scmp.ne.s32.totalorder %s320, %s322
      %p326 = scmp.eq.s32.totalorder %s24, 0
      %p327 = por %p325, %p326
      %p328 = scmp.ne.s32.totalorder %s320, %s322
      %p329 = scmp.eq.s32.totalorder %s29, 1
      %p330 = por %p328, %p329
      %p331 = scmp.ne.s32.totalorder %s322, %s323
      %p332 = scmp.eq.s32.totalorder %s29, 0
      %p333 = por %p331, %p332
      %p334 = scmp.ne.s32.totalorder %s322, %s323
      %p335 = scmp.eq.s32.totalorder %s30, 1
      %p336 = por %p334, %p335
      %p338 = scmp.ne.s32.totalorder %s323, %s337
      %p339 = scmp.eq.s32.totalorder %s30, 0
      %p340 = por %p338, %p339
      %s342 = sadd.s32 %s341, 1
      %p345 = scmp.eq.s32.totalorder %s24, 1
      %p346 = scmp.ne.s32.totalorder %s341, %s343
      %p347 = scmp.eq.s32.totalorder %s24, 0
      %p348 = por %p346, %p347
      %p349 = scmp.ne.s32.totalorder %s341, %s343
      %p350 = scmp.eq.s32.totalorder %s29, 1
      %p351 = por %p349, %p350
      %p352 = scmp.ne.s32.totalorder %s343, %s344
      %p353 = scmp.eq.s32.totalorder %s29, 0
      %p354 = por %p352, %p353
      %p355 = scmp.ne.s32.totalorder %s343, %s344
      %p356 = scmp.eq.s32.totalorder %s30, 1
      %p357 = por %p355, %p356
      %p359 = scmp.ne.s32.totalorder %s344, %s358
      %p360 = scmp.eq.s32.totalorder %s30, 0
      %p361 = por %p359, %p360
      %s362 = ssub.s32 %s24, %s31
      %p363 = scmp.eq.s32.totalorder %s362, 0
      %s365 = sadd.s32 %s364, 1
      %s366 = scalar_select %p363, %s364, %s365
      %p369 = pneg %p363
      %p370 = scmp.eq.s32.totalorder %s24, 1
      %p371 = por %p369, %p370
      %p372 = scmp.ne.s32.totalorder %s364, %s367
      %p373 = scmp.eq.s32.totalorder %s24, 0
      %p374 = por %p372, %p373
      %p375 = scmp.ne.s32.totalorder %s364, %s367
      %p376 = scmp.eq.s32.totalorder %s29, 1
      %p377 = por %p375, %p376
      %p378 = scmp.ne.s32.totalorder %s367, %s368
      %p379 = scmp.eq.s32.totalorder %s29, 0
      %p380 = por %p378, %p379
      %p381 = scmp.ne.s32.totalorder %s367, %s368
      %p382 = scmp.eq.s32.totalorder %s30, 1
      %p383 = por %p381, %p382
      %p385 = scmp.ne.s32.totalorder %s368, %s384
      %p386 = scmp.eq.s32.totalorder %s30, 0
      %p387 = por %p385, %p386
      %p388 = scmp.le.s32.totalorder 1, %s24
      %p389 = scmp.lt.s32.totalorder %s24, 3
      %p390 = pnand %p388, %p389
      %p391 = pneg %p390
      // Predicated region
      $region9: #{multiscale_forward.3} parent=5 // pred_check
        _
      $region10: #{multiscale_forward.3} parent=5 // pred_check_branch
        %393 = sbr.rel (%p390) target = $region12
      $region11: #{multiscale_forward.3} parent=5 // pred_region
        %s394 = ssub.s32 %s24, 1
        // Predicated region
        $region13: #{multiscale_forward.3} parent=11 // pred_check
          %p395 = pneg %p123
        $region14: #{multiscale_forward.3} parent=11 // pred_check_branch
          %397 = sbr.rel (%p395) target = $region16
        $region15: #{multiscale_forward.3} parent=11 // pred_region
          _
        $region16: #{multiscale_forward.3} parent=11 // pred_fallthru
          _
        // Predicated region
        $region17: #{multiscale_forward.3} parent=11 // pred_check
          %p398 = pneg %p144
        $region18: #{multiscale_forward.3} parent=11 // pred_check_branch
          %400 = sbr.rel (%p398) target = $region20
        $region19: #{multiscale_forward.3} parent=11 // pred_region
          _
        $region20: #{multiscale_forward.3} parent=11 // pred_fallthru
          _
        // Predicated region
        $region21: #{multiscale_forward.3} parent=11 // pred_check
          %p401 = pneg %p165
        $region22: #{multiscale_forward.3} parent=11 // pred_check_branch
          %403 = sbr.rel (%p401) target = $region24
        $region23: #{multiscale_forward.3} parent=11 // pred_region
          _
        $region24: #{multiscale_forward.3} parent=11 // pred_fallthru
          _
        // Predicated region
        $region25: #{multiscale_forward.3} parent=11 // pred_check
          %p404 = pneg %p186
        $region26: #{multiscale_forward.3} parent=11 // pred_check_branch
          %406 = sbr.rel (%p404) target = $region28
        $region27: #{multiscale_forward.3} parent=11 // pred_region
          _
        $region28: #{multiscale_forward.3} parent=11 // pred_fallthru
          _
        // Predicated region
        $region29: #{multiscale_forward.3} parent=11 // pred_check
          %p407 = pneg %p207
        $region30: #{multiscale_forward.3} parent=11 // pred_check_branch
          %409 = sbr.rel (%p407) target = $region32
        $region31: #{multiscale_forward.3} parent=11 // pred_region
          _
        $region32: #{multiscale_forward.3} parent=11 // pred_fallthru
          _
        // Predicated region
        $region33: #{multiscale_forward.3} parent=11 // pred_check
          %p410 = pneg %p228
        $region34: #{multiscale_forward.3} parent=11 // pred_check_branch
          %412 = sbr.rel (%p410) target = $region36
        $region35: #{multiscale_forward.3} parent=11 // pred_region
          _
        $region36: #{multiscale_forward.3} parent=11 // pred_fallthru
          _
        // Predicated region
        $region37: #{multiscale_forward.3} parent=11 // pred_check
          %p413 = pneg %p249
        $region38: #{multiscale_forward.3} parent=11 // pred_check_branch
          %415 = sbr.rel (%p413) target = $region40
        $region39: #{multiscale_forward.3} parent=11 // pred_region
          _
        $region40: #{multiscale_forward.3} parent=11 // pred_fallthru
          _
        // Predicated region
        $region41: #{multiscale_forward.3} parent=11 // pred_check
          %p416 = pneg %p270
        $region42: #{multiscale_forward.3} parent=11 // pred_check_branch
          %418 = sbr.rel (%p416) target = $region44
        $region43: #{multiscale_forward.3} parent=11 // pred_region
          _
        $region44: #{multiscale_forward.3} parent=11 // pred_fallthru
          _
        // Predicated region
        $region45: #{multiscale_forward.3} parent=11 // pred_check
          %p419 = pneg %p291
        $region46: #{multiscale_forward.3} parent=11 // pred_check_branch
          %421 = sbr.rel (%p419) target = $region48
        $region47: #{multiscale_forward.3} parent=11 // pred_region
          _
        $region48: #{multiscale_forward.3} parent=11 // pred_fallthru
          _
        // Predicated region
        $region49: #{multiscale_forward.3} parent=11 // pred_check
          %p422 = pneg %p312
        $region50: #{multiscale_forward.3} parent=11 // pred_check_branch
          %424 = sbr.rel (%p422) target = $region52
        $region51: #{multiscale_forward.3} parent=11 // pred_region
          _
        $region52: #{multiscale_forward.3} parent=11 // pred_fallthru
          _
        // Predicated region
        $region53: #{multiscale_forward.3} parent=11 // pred_check
          %p425 = pneg %p333
        $region54: #{multiscale_forward.3} parent=11 // pred_check_branch
          %427 = sbr.rel (%p425) target = $region56
        $region55: #{multiscale_forward.3} parent=11 // pred_region
          _
        $region56: #{multiscale_forward.3} parent=11 // pred_fallthru
          _
        // Predicated region
        $region57: #{multiscale_forward.3} parent=11 // pred_check
          %p428 = pneg %p354
        $region58: #{multiscale_forward.3} parent=11 // pred_check_branch
          %430 = sbr.rel (%p428) target = $region60
        $region59: #{multiscale_forward.3} parent=11 // pred_region
          _
        $region60: #{multiscale_forward.3} parent=11 // pred_fallthru
          _
      $region12: #{multiscale_forward.3} parent=5 // pred_fallthru
        _
      %p431 = scmp.lt.s32.totalorder %s24, 2
      // Predicated region
      $region61: #{multiscale_forward.3} parent=5 // pred_check
        %p432 = pneg %p431
      $region62: #{multiscale_forward.3} parent=5 // pred_check_branch
        %434 = sbr.rel (%p432) target = $region64
      $region63: #{multiscale_forward.3} parent=5 // pred_region
        // Predicated region
        $region65: #{multiscale_forward.3} parent=63 // pred_check
          %p435 = pneg %p44
        $region66: #{multiscale_forward.3} parent=63 // pred_check_branch
          %437 = sbr.rel (%p435) target = $region68
        $region67: #{multiscale_forward.3} parent=63 // pred_region
          %p438 = scmp.lt.s32.totalorder %s24, 1
          %s439 = scalar_select %p438, %s24, 1
          %s440 = smul.addr %s439, 6
          %s441 = smul.addr %s440, 8
          %s442 = scalar_lea.vmem %s0, %s441
        $region68: #{multiscale_forward.3} parent=63 // pred_fallthru
          _
        // Predicated region
        $region69: #{multiscale_forward.3} parent=63 // pred_check
          %p443 = pneg %p70
        $region70: #{multiscale_forward.3} parent=63 // pred_check_branch
          %445 = sbr.rel (%p443) target = $region72
        $region71: #{multiscale_forward.3} parent=63 // pred_region
          %p446 = scmp.lt.s32.totalorder %s24, 1
          %s447 = scalar_select %p446, %s24, 1
          %s448 = smul.addr %s447, 14
          %s449 = smul.addr %s448, 8
          %s450 = scalar_lea.vmem %s1, %s449
        $region72: #{multiscale_forward.3} parent=63 // pred_fallthru
          _
        // Predicated region
        $region73: #{multiscale_forward.3} parent=63 // pred_check
          %p451 = pneg %p96
        $region74: #{multiscale_forward.3} parent=63 // pred_check_branch
          %453 = sbr.rel (%p451) target = $region76
        $region75: #{multiscale_forward.3} parent=63 // pred_region
          %p454 = scmp.lt.s32.totalorder %s24, 1
          %s455 = scalar_select %p454, %s24, 1
          %s456 = smul.addr %s455, 26
          %s457 = smul.addr %s456, 8
          %s458 = scalar_lea.vmem %s2, %s457
        $region76: #{multiscale_forward.3} parent=63 // pred_fallthru
          _
      $region64: #{multiscale_forward.3} parent=5 // pred_fallthru
        _
      %p459 = scmp.le.s32.totalorder 1, %s24
      %p460 = scmp.lt.s32.totalorder %s24, 3
      %p461 = pnand %p459, %p460
      %p462 = pneg %p461
      // Predicated region
      $region77: #{multiscale_forward.3} parent=5 // pred_check
        _
      $region78: #{multiscale_forward.3} parent=5 // pred_check_branch
        %464 = sbr.rel (%p461) target = $region80
      $region79: #{multiscale_forward.3} parent=5 // pred_region
        %s465 = ssub.s32 %s24, 1
        %p466 = scmp.lt.s32.totalorder %s29, 1
        %s467 = scalar_select %p466, %s29, 1
        %s468 = smul.addr %s467, 6
        %s469 = smul.addr %s468, 8
        %s470 = scalar_lea.vmem %s0, %s469
        %p471 = pneg %p50
        %p472 = pneg %p47
        %p473 = scmp.lt.s32.totalorder %s29, 1
        %s474 = scalar_select %p473, %s29, 1
        %s475 = smul.addr %s474, 14
        %s476 = smul.addr %s475, 8
        %s477 = scalar_lea.vmem %s1, %s476
        %p478 = pneg %p76
        %p479 = pneg %p73
        %p480 = scmp.lt.s32.totalorder %s29, 1
        %s481 = scalar_select %p480, %s29, 1
        %s482 = smul.addr %s481, 26
        %s483 = smul.addr %s482, 8
        %s484 = scalar_lea.vmem %s2, %s483
        %p485 = pneg %p102
        %p486 = pneg %p99
        %p487 = pneg %p123
        %p488 = pneg %p120
        %p489 = pneg %p144
        %p490 = pneg %p141
        %p491 = pneg %p165
        %p492 = pneg %p162
        %p493 = pneg %p186
        %p494 = pneg %p183
        %p495 = pneg %p207
        %p496 = pneg %p204
        %p497 = pneg %p228
        %p498 = pneg %p225
        %p499 = pneg %p249
        %p500 = pneg %p246
        %p501 = pneg %p270
        %p502 = pneg %p267
        %p503 = pneg %p291
        %p504 = pneg %p288
        %p505 = pneg %p312
        %p506 = pneg %p309
        %p507 = pneg %p333
        %p508 = pneg %p330
        %p509 = pneg %p354
        %p510 = pneg %p351
        %p511 = pneg %p380
        %p512 = pneg %p377
        %s513 = sand.u32 %s367, 1
        %s514 = scalar_lea.sflag [#allocation3], %s513
        %s515 = sand.u32 %s367, 1
        %s516 = scalar_lea.vmem [#allocation2], %s515
        %p517 = scmp.lt.s32.totalorder %s29, 1
        %s518 = scalar_select %p517, %s29, 1
        %s519 = smul.addr %s518, 6
        %s520 = smul.addr %s519, 8
        %s521 = scalar_lea.vmem %s0, %s520
        %p522 = scmp.lt.s32.totalorder %s29, 1
        %s523 = scalar_select %p522, %s29, 1
        %s524 = smul.addr %s523, 14
        %s525 = smul.addr %s524, 8
        %s526 = scalar_lea.vmem %s1, %s525
        %p527 = scmp.lt.s32.totalorder %s29, 1
        %s528 = scalar_select %p527, %s29, 1
        %s529 = smul.addr %s528, 26
        %s530 = smul.addr %s529, 8
        %s531 = scalar_lea.vmem %s2, %s530
        %v532 = vld [vmem:[%s12] sm:$0x1]
        %v533 = vld [vmem:[%s521] sm:$0xff]
        %v534 = vld [vmem:[%s521 + $0x8] sm:$0xff]
        %v535 = vld [vmem:[%s521 + $0x10] sm:$0xff]
        %v536 = vld [vmem:[%s521 + $0x18] sm:$0x1]
        %v537 = vld [vmem:[%s521 + $0x20] sm:$0x1]
        %v538 = vld [vmem:[%s521 + $0x28] sm:$0x1]
        %v539 = vld [vmem:[%s3] sm:$0xff]
        %v540 = vld [vmem:[%s3 + $0x8] sm:$0xff]
        %v541 = vld [vmem:[%s3 + $0x10] sm:$0xff]
        %v542 = vld [vmem:[%s3 + $0x18] sm:$0xff]
        %v543 = vld [vmem:[%s3 + $0x20] sm:$0xff]
        %v544 = vld [vmem:[%s3 + $0x28] sm:$0xff]
        %v545 = vld [vmem:[%s3 + $0x30] sm:$0xff]
        %v546 = vld [vmem:[%s3 + $0x38] sm:$0xff]
        %v547 = vld [vmem:[%s3 + $0x40] sm:$0xff]
        %v548 = vld [vmem:[%s3 + $0x48] sm:$0xff]
        %v549 = vld [vmem:[%s3 + $0x50] sm:$0xff]
        %v550 = vld [vmem:[%s3 + $0x58] sm:$0xff]
        %v551 = vld [vmem:[%s3 + $0x60] sm:$0xff]
        %v552 = vld [vmem:[%s3 + $0x68] sm:$0xff]
        %v553 = vld [vmem:[%s3 + $0x70] sm:$0xff]
        %v554 = vld [vmem:[%s3 + $0x78] sm:$0xff]
        %v555 = vld [vmem:[%s3 + $0x80] sm:$0xff]
        %v556 = vld [vmem:[%s3 + $0x88] sm:$0xff]
        %v557 = vld [vmem:[%s3 + $0x90] sm:$0xff]
        %v558 = vld [vmem:[%s3 + $0x98] sm:$0xff]
        %v559 = vld [vmem:[%s3 + $0xa0] sm:$0xff]
        %v560 = vld [vmem:[%s3 + $0xa8] sm:$0xff]
        %v561 = vld [vmem:[%s3 + $0xb0] sm:$0xff]
        %v562 = vld [vmem:[%s3 + $0xb8] sm:$0xff]
        %v563 = vld [vmem:[%s3 + $0xc0] sm:$0xff]
        %v564 = vld [vmem:[%s3 + $0xc8] sm:$0xff]
        %v565 = vld [vmem:[%s3 + $0xd0] sm:$0xff]
        %v566 = vld [vmem:[%s3 + $0xd8] sm:$0xff]
        %v567 = vld [vmem:[%s3 + $0xe0] sm:$0xff]
        %v568 = vld [vmem:[%s3 + $0xe8] sm:$0xff]
        %v569 = vld [vmem:[%s3 + $0xf0] sm:$0xff]
        %v570 = vld [vmem:[%s3 + $0xf8] sm:$0xff]
        %v571 = vld [vmem:[%s3 + $0x100] sm:$0xff]
        %v572 = vld [vmem:[%s3 + $0x108] sm:$0xff]
        %v573 = vld [vmem:[%s3 + $0x110] sm:$0xff]
        %v574 = vld [vmem:[%s3 + $0x118] sm:$0xff]
        %v575 = vld [vmem:[%s3 + $0x120] sm:$0xff]
        %v576 = vld [vmem:[%s3 + $0x128] sm:$0xff]
        %v577 = vld [vmem:[%s3 + $0x130] sm:$0xff]
        %v578 = vld [vmem:[%s3 + $0x138] sm:$0xff]
        %v579 = vld [vmem:[%s3 + $0x140] sm:$0xff]
        %v580 = vld [vmem:[%s3 + $0x148] sm:$0xff]
        %v581 = vld [vmem:[%s3 + $0x150] sm:$0xff]
        %v582 = vld [vmem:[%s3 + $0x158] sm:$0xff]
        %v583 = vld [vmem:[%s3 + $0x160] sm:$0xff]
        %v584 = vld [vmem:[%s3 + $0x168] sm:$0xff]
        %v585 = vld [vmem:[%s3 + $0x170] sm:$0xff]
        %v586 = vld [vmem:[%s3 + $0x178] sm:$0xff]
        %v587 = vld [vmem:[%s4] sm:$0x1]
        %v589 = vlaneseq
        %v590 = vshrl.u32 %v589, 7
        %v591 = vsub.s32 0, %v590
        %v592 = vrot.slane %v587, %v591
        %594 = vmatprep.subr.mxu0 0.0
        %595 = vmatpush1.msra.mxu0 %v554
        %596 = vmatprep.subr.mxu0 0.0
        %597 = vmatpush1.msra.mxu0 %v553
        %598 = vmatprep.subr.mxu0 0.0
        %599 = vmatpush1.msra.mxu0 %v552
        %600 = vmatprep.subr.mxu0 0.0
        %601 = vmatpush1.msra.mxu0 %v551
        %602 = vmatprep.subr.mxu0 0.0
        %603 = vmatpush1.msra.mxu0 %v550
        %604 = vmatprep.subr.mxu0 0.0
        %605 = vmatpush1.msra.mxu0 %v549
        %606 = vmatprep.subr.mxu0 0.0
        %607 = vmatpush1.msra.mxu0 %v548
        %608 = vmatprep.subr.mxu0 0.0
        %609 = vmatpush1.msra.mxu0 %v547
        %610 = vmatprep.subr.mxu0 0.0
        %611 = vmatpush1.msra.mxu0 %v546
        %612 = vmatprep.subr.mxu0 0.0
        %613 = vmatpush1.msra.mxu0 %v545
        %614 = vmatprep.subr.mxu0 0.0
        %615 = vmatpush1.msra.mxu0 %v544
        %616 = vmatprep.subr.mxu0 0.0
        %617 = vmatpush1.msra.mxu0 %v543
        %618 = vmatprep.subr.mxu0 0.0
        %619 = vmatpush1.msra.mxu0 %v542
        %620 = vmatprep.subr.mxu0 0.0
        %621 = vmatpush1.msra.mxu0 %v541
        %622 = vmatprep.subr.mxu0 0.0
        %623 = vmatpush1.msra.mxu0 %v540
        %624 = vmatprep.subr.mxu0 0.0
        %625 = vmatpush1.msra.mxu0 %v539
        %626 = vmatprep.subr.mxu0 0.0
        %627 = vmatpush2.msra.mxu0 %v570
        %628 = vmatprep.subr.mxu0 0.0
        %629 = vmatpush2.msra.mxu0 %v569
        %630 = vmatprep.subr.mxu0 0.0
        %631 = vmatpush2.msra.mxu0 %v568
        %632 = vmatprep.subr.mxu0 0.0
        %633 = vmatpush2.msra.mxu0 %v567
        %634 = vmatprep.subr.mxu0 0.0
        %635 = vmatpush2.msra.mxu0 %v566
        %636 = vmatprep.subr.mxu0 0.0
        %637 = vmatpush2.msra.mxu0 %v565
        %638 = vmatprep.subr.mxu0 0.0
        %639 = vmatpush2.msra.mxu0 %v564
        %640 = vmatprep.subr.mxu0 0.0
        %641 = vmatpush2.msra.mxu0 %v563
        %642 = vmatprep.subr.mxu0 0.0
        %643 = vmatpush2.msra.mxu0 %v562
        %644 = vmatprep.subr.mxu0 0.0
        %645 = vmatpush2.msra.mxu0 %v561
        %646 = vmatprep.subr.mxu0 0.0
        %647 = vmatpush2.msra.mxu0 %v560
        %648 = vmatprep.subr.mxu0 0.0
        %649 = vmatpush2.msra.mxu0 %v559
        %650 = vmatprep.subr.mxu0 0.0
        %651 = vmatpush2.msra.mxu0 %v558
        %652 = vmatprep.subr.mxu0 0.0
        %653 = vmatpush2.msra.mxu0 %v557
        %654 = vmatprep.subr.mxu0 0.0
        %655 = vmatpush2.msra.mxu0 %v556
        %656 = vmatprep.subr.mxu0 0.0
        %657 = vmatpush2.msra.mxu0 %v555
        %658 = vmatprep.mubr.f32.mxu0 %v534
        %659 = vmatmul.mubr.f32.gmra.mxu0 %v533
        %v660 = vpop.f32.mrf.mxu0
        %v661 = vadd.f32 %v592, %v660
        %v662 = vpop.f32.mrf.mxu0
        %663 = vmatprep.mubr.f32.mxu0 %v537
        %664 = vmatmul.mubr.f32.gmra.mxu0 %v536
        %v665 = vpop.f32.mrf.mxu0
        %v666 = vadd.f32 %v592, %v665
        %v667 = vpop.f32.mrf.mxu0
        %668 = vdwg.mxu0
        %669 = vmatprep.subr.mxu0 0.0
        %670 = vmatpush1.msra.mxu0 %v586
        %671 = vmatprep.subr.mxu0 0.0
        %672 = vmatpush1.msra.mxu0 %v585
        %673 = vmatprep.subr.mxu0 0.0
        %674 = vmatpush1.msra.mxu0 %v584
        %675 = vmatprep.subr.mxu0 0.0
        %676 = vmatpush1.msra.mxu0 %v583
        %677 = vmatprep.subr.mxu0 0.0
        %678 = vmatpush1.msra.mxu0 %v582
        %679 = vmatprep.subr.mxu0 0.0
        %680 = vmatpush1.msra.mxu0 %v581
        %681 = vmatprep.subr.mxu0 0.0
        %682 = vmatpush1.msra.mxu0 %v580
        %683 = vmatprep.subr.mxu0 0.0
        %684 = vmatpush1.msra.mxu0 %v579
        %685 = vmatprep.subr.mxu0 0.0
        %686 = vmatpush1.msra.mxu0 %v578
        %687 = vmatprep.subr.mxu0 0.0
        %688 = vmatpush1.msra.mxu0 %v577
        %689 = vmatprep.subr.mxu0 0.0
        %690 = vmatpush1.msra.mxu0 %v576
        %691 = vmatprep.subr.mxu0 0.0
        %692 = vmatpush1.msra.mxu0 %v575
        %693 = vmatprep.subr.mxu0 0.0
        %694 = vmatpush1.msra.mxu0 %v574
        %695 = vmatprep.subr.mxu0 0.0
        %696 = vmatpush1.msra.mxu0 %v573
        %697 = vmatprep.subr.mxu0 0.0
        %698 = vmatpush1.msra.mxu0 %v572
        %699 = vmatprep.subr.mxu0 0.0
        %700 = vmatpush1.msra.mxu0 %v571
        %701 = vmatprep.subr.mxu0 0.0
        %702 = vmatpush2.msra.mxu0 0.0
        %703 = vmatprep.subr.mxu0 0.0
        %704 = vmatpush2.msra.mxu0 0.0
        %705 = vmatprep.subr.mxu0 0.0
        %706 = vmatpush2.msra.mxu0 0.0
        %707 = vmatprep.subr.mxu0 0.0
        %708 = vmatpush2.msra.mxu0 0.0
        %709 = vmatprep.subr.mxu0 0.0
        %710 = vmatpush2.msra.mxu0 0.0
        %711 = vmatprep.subr.mxu0 0.0
        %712 = vmatpush2.msra.mxu0 0.0
        %713 = vmatprep.subr.mxu0 0.0
        %714 = vmatpush2.msra.mxu0 0.0
        %715 = vmatprep.subr.mxu0 0.0
        %716 = vmatpush2.msra.mxu0 0.0
        %717 = vmatprep.subr.mxu0 0.0
        %718 = vmatpush2.msra.mxu0 0.0
        %719 = vmatprep.subr.mxu0 0.0
        %720 = vmatpush2.msra.mxu0 0.0
        %721 = vmatprep.subr.mxu0 0.0
        %722 = vmatpush2.msra.mxu0 0.0
        %723 = vmatprep.subr.mxu0 0.0
        %724 = vmatpush2.msra.mxu0 0.0
        %725 = vmatprep.subr.mxu0 0.0
        %726 = vmatpush2.msra.mxu0 0.0
        %727 = vmatprep.subr.mxu0 0.0
        %728 = vmatpush2.msra.mxu0 0.0
        %729 = vmatprep.subr.mxu0 0.0
        %730 = vmatpush2.msra.mxu0 0.0
        %731 = vmatprep.subr.mxu0 0.0
        %732 = vmatpush2.msra.mxu0 0.0
        %733 = vmatprep.mubr.f32.mxu0 0.0
        %734 = vmatmul.mubr.f32.gmra.mxu0 %v535
        %v735 = vpop.f32.mrf.mxu0
        %v736 = vadd.f32 %v661, %v735
        %v737 = vpop.f32.mrf.mxu0
        %738 = vmatprep.mubr.f32.mxu0 0.0
        %739 = vmatmul.mubr.f32.gmra.mxu0 %v538
        %v740 = vpop.f32.mrf.mxu0
        %v741 = vadd.f32 %v666, %v740
        %v742 = vpop.f32.mrf.mxu0
        %743 = vdwg.mxu0
        %v744 = vmax.f32 %v736, 0.0
        %v745 = vmax.f32 %v741, 0.0
        %vm746 = vcmask 523264
        %v747 = vsel %vm746, %v744, 0.0
        %vm748 = vcmask 516096
        %v749 = vsel %vm748, %v745, 0.0
        %v750 = vadd.f32 %v747, %v749
        %v751 = vrot.slane %v750, 4
        %v752 = vadd.f32 %v750, %v751
        %v753 = vrot.slane %v752, 2
        %v754 = vadd.f32 %v752, %v753
        %v755 = vrot.slane %v754, 1
        %v756 = vadd.f32 %v754, %v755
        %v757 = vmul.f32 %v756, 0.11111111
        %v758 = vld [vmem:[%s5] sm:$0xff]
        %v759 = vld [vmem:[%s5 + $0x8] sm:$0xff]
        %v760 = vld [vmem:[%s5 + $0x10] sm:$0xff]
        %v761 = vld [vmem:[%s5 + $0x18] sm:$0xff]
        %v762 = vld [vmem:[%s5 + $0x20] sm:$0xff]
        %v763 = vld [vmem:[%s5 + $0x28] sm:$0xff]
        %v764 = vld [vmem:[%s5 + $0x30] sm:$0xff]
        %v765 = vld [vmem:[%s5 + $0x38] sm:$0xff]
        %v767 = vsel %vm746, %v757, 0
        %769 = vmatprep.subr.mxu0 0.0
        %770 = vmatpush1.msra.mxu0 0.0
        %771 = vmatprep.subr.mxu0 0.0
        %772 = vmatpush1.msra.mxu0 0.0
        %773 = vmatprep.subr.mxu0 0.0
        %774 = vmatpush1.msra.mxu0 0.0
        %775 = vmatprep.subr.mxu0 0.0
        %776 = vmatpush1.msra.mxu0 0.0
        %777 = vmatprep.subr.mxu0 0.0
        %778 = vmatpush1.msra.mxu0 0.0
        %779 = vmatprep.subr.mxu0 0.0
        %780 = vmatpush1.msra.mxu0 0.0
        %781 = vmatprep.subr.mxu0 0.0
        %782 = vmatpush1.msra.mxu0 0.0
        %783 = vmatprep.subr.mxu0 0.0
        %784 = vmatpush1.msra.mxu0 0.0
        %785 = vmatprep.subr.mxu0 0.0
        %786 = vmatpush1.msra.mxu0 %v765
        %787 = vmatprep.subr.mxu0 0.0
        %788 = vmatpush1.msra.mxu0 %v764
        %789 = vmatprep.subr.mxu0 0.0
        %790 = vmatpush1.msra.mxu0 %v763
        %791 = vmatprep.subr.mxu0 0.0
        %792 = vmatpush1.msra.mxu0 %v762
        %793 = vmatprep.subr.mxu0 0.0
        %794 = vmatpush1.msra.mxu0 %v761
        %795 = vmatprep.subr.mxu0 0.0
        %796 = vmatpush1.msra.mxu0 %v760
        %797 = vmatprep.subr.mxu0 0.0
        %798 = vmatpush1.msra.mxu0 %v759
        %799 = vmatprep.subr.mxu0 0.0
        %800 = vmatpush1.msra.mxu0 %v758
        %801 = vmatprep.subr.mxu0 0.0
        %802 = vmatpush2.msra.mxu0 0.0
        %803 = vmatprep.subr.mxu0 0.0
        %804 = vmatpush2.msra.mxu0 0.0
        %805 = vmatprep.subr.mxu0 0.0
        %806 = vmatpush2.msra.mxu0 0.0
        %807 = vmatprep.subr.mxu0 0.0
        %808 = vmatpush2.msra.mxu0 0.0
        %809 = vmatprep.subr.mxu0 0.0
        %810 = vmatpush2.msra.mxu0 0.0
        %811 = vmatprep.subr.mxu0 0.0
        %812 = vmatpush2.msra.mxu0 0.0
        %813 = vmatprep.subr.mxu0 0.0
        %814 = vmatpush2.msra.mxu0 0.0
        %815 = vmatprep.subr.mxu0 0.0
        %816 = vmatpush2.msra.mxu0 0.0
        %817 = vmatprep.subr.mxu0 0.0
        %818 = vmatpush2.msra.mxu0 0.0
        %819 = vmatprep.subr.mxu0 0.0
        %820 = vmatpush2.msra.mxu0 0.0
        %821 = vmatprep.subr.mxu0 0.0
        %822 = vmatpush2.msra.mxu0 0.0
        %823 = vmatprep.subr.mxu0 0.0
        %824 = vmatpush2.msra.mxu0 0.0
        %825 = vmatprep.subr.mxu0 0.0
        %826 = vmatpush2.msra.mxu0 0.0
        %827 = vmatprep.subr.mxu0 0.0
        %828 = vmatpush2.msra.mxu0 0.0
        %829 = vmatprep.subr.mxu0 0.0
        %830 = vmatpush2.msra.mxu0 0.0
        %831 = vmatprep.subr.mxu0 0.0
        %832 = vmatpush2.msra.mxu0 0.0
        %833 = vmatprep.mubr.f32.mxu0 0.0
        %834 = vmatmul.mubr.f32.gmra.mxu0 %v767
        %v835 = vpop.f32.mrf.mxu0
        %v836 = vadd.f32 0.0, %v835
        %v837 = vpop.f32.mrf.mxu0
        %838 = vdwg.mxu0
        %v839 = vadd.f32 %v532, %v836
        %v840 = vld [vmem:[%s526] sm:$0xff]
        %v841 = vld [vmem:[%s526 + $0x8] sm:$0xff]
        %v842 = vld [vmem:[%s526 + $0x10] sm:$0xff]
        %v843 = vld [vmem:[%s526 + $0x18] sm:$0xff]
        %v844 = vld [vmem:[%s526 + $0x20] sm:$0xff]
        %v845 = vld [vmem:[%s526 + $0x28] sm:$0xff]
        %v846 = vld [vmem:[%s526 + $0x30] sm:$0xff]
        %v847 = vld [vmem:[%s526 + $0x38] sm:$0x1]
        %v848 = vld [vmem:[%s526 + $0x40] sm:$0x1]
        %v849 = vld [vmem:[%s526 + $0x48] sm:$0x1]
        %v850 = vld [vmem:[%s526 + $0x50] sm:$0x1]
        %v851 = vld [vmem:[%s526 + $0x58] sm:$0x1]
        %v852 = vld [vmem:[%s526 + $0x60] sm:$0x1]
        %v853 = vld [vmem:[%s526 + $0x68] sm:$0x1]
        %v854 = vld [vmem:[%s6] sm:$0xff]
        %v855 = vld [vmem:[%s6 + $0x8] sm:$0xff]
        %v856 = vld [vmem:[%s6 + $0x10] sm:$0xff]
        %v857 = vld [vmem:[%s6 + $0x18] sm:$0xff]
        %v858 = vld [vmem:[%s6 + $0x20] sm:$0xff]
        %v859 = vld [vmem:[%s6 + $0x28] sm:$0xff]
        %v860 = vld [vmem:[%s6 + $0x30] sm:$0xff]
        %v861 = vld [vmem:[%s6 + $0x38] sm:$0xff]
        %v862 = vld [vmem:[%s6 + $0x40] sm:$0xff]
        %v863 = vld [vmem:[%s6 + $0x48] sm:$0xff]
        %v864 = vld [vmem:[%s6 + $0x50] sm:$0xff]
        %v865 = vld [vmem:[%s6 + $0x58] sm:$0xff]
        %v866 = vld [vmem:[%s6 + $0x60] sm:$0xff]
        %v867 = vld [vmem:[%s6 + $0x68] sm:$0xff]
        %v868 = vld [vmem:[%s6 + $0x70] sm:$0xff]
        %v869 = vld [vmem:[%s6 + $0x78] sm:$0xff]
        %v870 = vld [vmem:[%s6 + $0x80] sm:$0xff]
        %v871 = vld [vmem:[%s6 + $0x88] sm:$0xff]
        %v872 = vld [vmem:[%s6 + $0x90] sm:$0xff]
        %v873 = vld [vmem:[%s6 + $0x98] sm:$0xff]
        %v874 = vld [vmem:[%s6 + $0xa0] sm:$0xff]
        %v875 = vld [vmem:[%s6 + $0xa8] sm:$0xff]
        %v876 = vld [vmem:[%s6 + $0xb0] sm:$0xff]
        %v877 = vld [vmem:[%s6 + $0xb8] sm:$0xff]
        %v878 = vld [vmem:[%s6 + $0xc0] sm:$0xff]
        %v879 = vld [vmem:[%s6 + $0xc8] sm:$0xff]
        %v880 = vld [vmem:[%s6 + $0xd0] sm:$0xff]
        %v881 = vld [vmem:[%s6 + $0xd8] sm:$0xff]
        %v882 = vld [vmem:[%s6 + $0xe0] sm:$0xff]
        %v883 = vld [vmem:[%s6 + $0xe8] sm:$0xff]
        %v884 = vld [vmem:[%s6 + $0xf0] sm:$0xff]
        %v885 = vld [vmem:[%s6 + $0xf8] sm:$0xff]
        %v886 = vld [vmem:[%s6 + $0x100] sm:$0xff]
        %v887 = vld [vmem:[%s6 + $0x108] sm:$0xff]
        %v888 = vld [vmem:[%s6 + $0x110] sm:$0xff]
        %v889 = vld [vmem:[%s6 + $0x118] sm:$0xff]
        %v890 = vld [vmem:[%s6 + $0x120] sm:$0xff]
        %v891 = vld [vmem:[%s6 + $0x128] sm:$0xff]
        %v892 = vld [vmem:[%s6 + $0x130] sm:$0xff]
        %v893 = vld [vmem:[%s6 + $0x138] sm:$0xff]
        %v894 = vld [vmem:[%s6 + $0x140] sm:$0xff]
        %v895 = vld [vmem:[%s6 + $0x148] sm:$0xff]
        %v896 = vld [vmem:[%s6 + $0x150] sm:$0xff]
        %v897 = vld [vmem:[%s6 + $0x158] sm:$0xff]
        %v898 = vld [vmem:[%s6 + $0x160] sm:$0xff]
        %v899 = vld [vmem:[%s6 + $0x168] sm:$0xff]
        %v900 = vld [vmem:[%s6 + $0x170] sm:$0xff]
        %v901 = vld [vmem:[%s6 + $0x178] sm:$0xff]
        %v902 = vld [vmem:[%s6 + $0x180] sm:$0xff]
        %v903 = vld [vmem:[%s6 + $0x188] sm:$0xff]
        %v904 = vld [vmem:[%s6 + $0x190] sm:$0xff]
        %v905 = vld [vmem:[%s6 + $0x198] sm:$0xff]
        %v906 = vld [vmem:[%s6 + $0x1a0] sm:$0xff]
        %v907 = vld [vmem:[%s6 + $0x1a8] sm:$0xff]
        %v908 = vld [vmem:[%s6 + $0x1b0] sm:$0xff]
        %v909 = vld [vmem:[%s6 + $0x1b8] sm:$0xff]
        %v910 = vld [vmem:[%s6 + $0x1c0] sm:$0xff]
        %v911 = vld [vmem:[%s6 + $0x1c8] sm:$0xff]
        %v912 = vld [vmem:[%s6 + $0x1d0] sm:$0xff]
        %v913 = vld [vmem:[%s6 + $0x1d8] sm:$0xff]
        %v914 = vld [vmem:[%s6 + $0x1e0] sm:$0xff]
        %v915 = vld [vmem:[%s6 + $0x1e8] sm:$0xff]
        %v916 = vld [vmem:[%s6 + $0x1f0] sm:$0xff]
        %v917 = vld [vmem:[%s6 + $0x1f8] sm:$0xff]
        %v918 = vld [vmem:[%s6 + $0x200] sm:$0xff]
        %v919 = vld [vmem:[%s6 + $0x208] sm:$0xff]
        %v920 = vld [vmem:[%s6 + $0x210] sm:$0xff]
        %v921 = vld [vmem:[%s6 + $0x218] sm:$0xff]
        %v922 = vld [vmem:[%s6 + $0x220] sm:$0xff]
        %v923 = vld [vmem:[%s6 + $0x228] sm:$0xff]
        %v924 = vld [vmem:[%s6 + $0x230] sm:$0xff]
        %v925 = vld [vmem:[%s6 + $0x238] sm:$0xff]
        %v926 = vld [vmem:[%s6 + $0x240] sm:$0xff]
        %v927 = vld [vmem:[%s6 + $0x248] sm:$0xff]
        %v928 = vld [vmem:[%s6 + $0x250] sm:$0xff]
        %v929 = vld [vmem:[%s6 + $0x258] sm:$0xff]
        %v930 = vld [vmem:[%s6 + $0x260] sm:$0xff]
        %v931 = vld [vmem:[%s6 + $0x268] sm:$0xff]
        %v932 = vld [vmem:[%s6 + $0x270] sm:$0xff]
        %v933 = vld [vmem:[%s6 + $0x278] sm:$0xff]
        %v934 = vld [vmem:[%s6 + $0x280] sm:$0xff]
        %v935 = vld [vmem:[%s6 + $0x288] sm:$0xff]
        %v936 = vld [vmem:[%s6 + $0x290] sm:$0xff]
        %v937 = vld [vmem:[%s6 + $0x298] sm:$0xff]
        %v938 = vld [vmem:[%s6 + $0x2a0] sm:$0xff]
        %v939 = vld [vmem:[%s6 + $0x2a8] sm:$0xff]
        %v940 = vld [vmem:[%s6 + $0x2b0] sm:$0xff]
        %v941 = vld [vmem:[%s6 + $0x2b8] sm:$0xff]
        %v942 = vld [vmem:[%s6 + $0x2c0] sm:$0xff]
        %v943 = vld [vmem:[%s6 + $0x2c8] sm:$0xff]
        %v944 = vld [vmem:[%s6 + $0x2d0] sm:$0xff]
        %v945 = vld [vmem:[%s6 + $0x2d8] sm:$0xff]
        %v946 = vld [vmem:[%s6 + $0x2e0] sm:$0xff]
        %v947 = vld [vmem:[%s6 + $0x2e8] sm:$0xff]
        %v948 = vld [vmem:[%s6 + $0x2f0] sm:$0xff]
        %v949 = vld [vmem:[%s6 + $0x2f8] sm:$0xff]
        %v950 = vld [vmem:[%s6 + $0x300] sm:$0xff]
        %v951 = vld [vmem:[%s6 + $0x308] sm:$0xff]
        %v952 = vld [vmem:[%s6 + $0x310] sm:$0xff]
        %v953 = vld [vmem:[%s6 + $0x318] sm:$0xff]
        %v954 = vld [vmem:[%s6 + $0x320] sm:$0xff]
        %v955 = vld [vmem:[%s6 + $0x328] sm:$0xff]
        %v956 = vld [vmem:[%s6 + $0x330] sm:$0xff]
        %v957 = vld [vmem:[%s6 + $0x338] sm:$0xff]
        %v958 = vld [vmem:[%s6 + $0x340] sm:$0xff]
        %v959 = vld [vmem:[%s6 + $0x348] sm:$0xff]
        %v960 = vld [vmem:[%s6 + $0x350] sm:$0xff]
        %v961 = vld [vmem:[%s6 + $0x358] sm:$0xff]
        %v962 = vld [vmem:[%s6 + $0x360] sm:$0xff]
        %v963 = vld [vmem:[%s6 + $0x368] sm:$0xff]
        %v964 = vld [vmem:[%s6 + $0x370] sm:$0xff]
        %v965 = vld [vmem:[%s6 + $0x378] sm:$0xff]
        %v966 = vld [vmem:[%s7] sm:$0x1]
        %v968 = vlaneseq
        %v969 = vshrl.u32 %v968, 7
        %v970 = vsub.s32 0, %v969
        %v971 = vrot.slane %v966, %v970
        %973 = vmatprep.subr.mxu0 0.0
        %974 = vmatpush1.msra.mxu0 %v869
        %975 = vmatprep.subr.mxu0 0.0
        %976 = vmatpush1.msra.mxu0 %v868
        %977 = vmatprep.subr.mxu0 0.0
        %978 = vmatpush1.msra.mxu0 %v867
        %979 = vmatprep.subr.mxu0 0.0
        %980 = vmatpush1.msra.mxu0 %v866
        %981 = vmatprep.subr.mxu0 0.0
        %982 = vmatpush1.msra.mxu0 %v865
        %983 = vmatprep.subr.mxu0 0.0
        %984 = vmatpush1.msra.mxu0 %v864
        %985 = vmatprep.subr.mxu0 0.0
        %986 = vmatpush1.msra.mxu0 %v863
        %987 = vmatprep.subr.mxu0 0.0
        %988 = vmatpush1.msra.mxu0 %v862
        %989 = vmatprep.subr.mxu0 0.0
        %990 = vmatpush1.msra.mxu0 %v861
        %991 = vmatprep.subr.mxu0 0.0
        %992 = vmatpush1.msra.mxu0 %v860
        %993 = vmatprep.subr.mxu0 0.0
        %994 = vmatpush1.msra.mxu0 %v859
        %995 = vmatprep.subr.mxu0 0.0
        %996 = vmatpush1.msra.mxu0 %v858
        %997 = vmatprep.subr.mxu0 0.0
        %998 = vmatpush1.msra.mxu0 %v857
        %999 = vmatprep.subr.mxu0 0.0
        %1000 = vmatpush1.msra.mxu0 %v856
        %1001 = vmatprep.subr.mxu0 0.0
        %1002 = vmatpush1.msra.mxu0 %v855
        %1003 = vmatprep.subr.mxu0 0.0
        %1004 = vmatpush1.msra.mxu0 %v854
        %1005 = vmatprep.subr.mxu0 0.0
        %1006 = vmatpush2.msra.mxu0 %v885
        %1007 = vmatprep.subr.mxu0 0.0
        %1008 = vmatpush2.msra.mxu0 %v884
        %1009 = vmatprep.subr.mxu0 0.0
        %1010 = vmatpush2.msra.mxu0 %v883
        %1011 = vmatprep.subr.mxu0 0.0
        %1012 = vmatpush2.msra.mxu0 %v882
        %1013 = vmatprep.subr.mxu0 0.0
        %1014 = vmatpush2.msra.mxu0 %v881
        %1015 = vmatprep.subr.mxu0 0.0
        %1016 = vmatpush2.msra.mxu0 %v880
        %1017 = vmatprep.subr.mxu0 0.0
        %1018 = vmatpush2.msra.mxu0 %v879
        %1019 = vmatprep.subr.mxu0 0.0
        %1020 = vmatpush2.msra.mxu0 %v878
        %1021 = vmatprep.subr.mxu0 0.0
        %1022 = vmatpush2.msra.mxu0 %v877
        %1023 = vmatprep.subr.mxu0 0.0
        %1024 = vmatpush2.msra.mxu0 %v876
        %1025 = vmatprep.subr.mxu0 0.0
        %1026 = vmatpush2.msra.mxu0 %v875
        %1027 = vmatprep.subr.mxu0 0.0
        %1028 = vmatpush2.msra.mxu0 %v874
        %1029 = vmatprep.subr.mxu0 0.0
        %1030 = vmatpush2.msra.mxu0 %v873
        %1031 = vmatprep.subr.mxu0 0.0
        %1032 = vmatpush2.msra.mxu0 %v872
        %1033 = vmatprep.subr.mxu0 0.0
        %1034 = vmatpush2.msra.mxu0 %v871
        %1035 = vmatprep.subr.mxu0 0.0
        %1036 = vmatpush2.msra.mxu0 %v870
        %1037 = vmatprep.mubr.f32.mxu0 %v841
        %1038 = vmatmul.mubr.f32.gmra.mxu0 %v840
        %v1039 = vpop.f32.mrf.mxu0
        %v1040 = vadd.f32 %v971, %v1039
        %v1041 = vpop.f32.mrf.mxu0
        %1042 = vmatprep.mubr.f32.mxu0 %v848
        %1043 = vmatmul.mubr.f32.gmra.mxu0 %v847
        %v1044 = vpop.f32.mrf.mxu0
        %v1045 = vadd.f32 %v971, %v1044
        %v1046 = vpop.f32.mrf.mxu0
        %1047 = vdwg.mxu0
        %1048 = vmatprep.subr.mxu0 0.0
        %1049 = vmatpush1.msra.mxu0 %v901
        %1050 = vmatprep.subr.mxu0 0.0
        %1051 = vmatpush1.msra.mxu0 %v900
        %1052 = vmatprep.subr.mxu0 0.0
        %1053 = vmatpush1.msra.mxu0 %v899
        %1054 = vmatprep.subr.mxu0 0.0
        %1055 = vmatpush1.msra.mxu0 %v898
        %1056 = vmatprep.subr.mxu0 0.0
        %1057 = vmatpush1.msra.mxu0 %v897
        %1058 = vmatprep.subr.mxu0 0.0
        %1059 = vmatpush1.msra.mxu0 %v896
        %1060 = vmatprep.subr.mxu0 0.0
        %1061 = vmatpush1.msra.mxu0 %v895
        %1062 = vmatprep.subr.mxu0 0.0
        %1063 = vmatpush1.msra.mxu0 %v894
        %1064 = vmatprep.subr.mxu0 0.0
        %1065 = vmatpush1.msra.mxu0 %v893
        %1066 = vmatprep.subr.mxu0 0.0
        %1067 = vmatpush1.msra.mxu0 %v892
        %1068 = vmatprep.subr.mxu0 0.0
        %1069 = vmatpush1.msra.mxu0 %v891
        %1070 = vmatprep.subr.mxu0 0.0
        %1071 = vmatpush1.msra.mxu0 %v890
        %1072 = vmatprep.subr.mxu0 0.0
        %1073 = vmatpush1.msra.mxu0 %v889
        %1074 = vmatprep.subr.mxu0 0.0
        %1075 = vmatpush1.msra.mxu0 %v888
        %1076 = vmatprep.subr.mxu0 0.0
        %1077 = vmatpush1.msra.mxu0 %v887
        %1078 = vmatprep.subr.mxu0 0.0
        %1079 = vmatpush1.msra.mxu0 %v886
        %1080 = vmatprep.subr.mxu0 0.0
        %1081 = vmatpush2.msra.mxu0 %v917
        %1082 = vmatprep.subr.mxu0 0.0
        %1083 = vmatpush2.msra.mxu0 %v916
        %1084 = vmatprep.subr.mxu0 0.0
        %1085 = vmatpush2.msra.mxu0 %v915
        %1086 = vmatprep.subr.mxu0 0.0
        %1087 = vmatpush2.msra.mxu0 %v914
        %1088 = vmatprep.subr.mxu0 0.0
        %1089 = vmatpush2.msra.mxu0 %v913
        %1090 = vmatprep.subr.mxu0 0.0
        %1091 = vmatpush2.msra.mxu0 %v912
        %1092 = vmatprep.subr.mxu0 0.0
        %1093 = vmatpush2.msra.mxu0 %v911
        %1094 = vmatprep.subr.mxu0 0.0
        %1095 = vmatpush2.msra.mxu0 %v910
        %1096 = vmatprep.subr.mxu0 0.0
        %1097 = vmatpush2.msra.mxu0 %v909
        %1098 = vmatprep.subr.mxu0 0.0
        %1099 = vmatpush2.msra.mxu0 %v908
        %1100 = vmatprep.subr.mxu0 0.0
        %1101 = vmatpush2.msra.mxu0 %v907
        %1102 = vmatprep.subr.mxu0 0.0
        %1103 = vmatpush2.msra.mxu0 %v906
        %1104 = vmatprep.subr.mxu0 0.0
        %1105 = vmatpush2.msra.mxu0 %v905
        %1106 = vmatprep.subr.mxu0 0.0
        %1107 = vmatpush2.msra.mxu0 %v904
        %1108 = vmatprep.subr.mxu0 0.0
        %1109 = vmatpush2.msra.mxu0 %v903
        %1110 = vmatprep.subr.mxu0 0.0
        %1111 = vmatpush2.msra.mxu0 %v902
        %1112 = vmatprep.mubr.f32.mxu0 %v843
        %1113 = vmatmul.mubr.f32.gmra.mxu0 %v842
        %v1114 = vpop.f32.mrf.mxu0
        %v1115 = vadd.f32 %v1040, %v1114
        %v1116 = vpop.f32.mrf.mxu0
        %1117 = vmatprep.mubr.f32.mxu0 %v850
        %1118 = vmatmul.mubr.f32.gmra.mxu0 %v849
        %v1119 = vpop.f32.mrf.mxu0
        %v1120 = vadd.f32 %v1045, %v1119
        %v1121 = vpop.f32.mrf.mxu0
        %1122 = vdwg.mxu0
        %1123 = vmatprep.subr.mxu0 0.0
        %1124 = vmatpush1.msra.mxu0 %v933
        %1125 = vmatprep.subr.mxu0 0.0
        %1126 = vmatpush1.msra.mxu0 %v932
        %1127 = vmatprep.subr.mxu0 0.0
        %1128 = vmatpush1.msra.mxu0 %v931
        %1129 = vmatprep.subr.mxu0 0.0
        %1130 = vmatpush1.msra.mxu0 %v930
        %1131 = vmatprep.subr.mxu0 0.0
        %1132 = vmatpush1.msra.mxu0 %v929
        %1133 = vmatprep.subr.mxu0 0.0
        %1134 = vmatpush1.msra.mxu0 %v928
        %1135 = vmatprep.subr.mxu0 0.0
        %1136 = vmatpush1.msra.mxu0 %v927
        %1137 = vmatprep.subr.mxu0 0.0
        %1138 = vmatpush1.msra.mxu0 %v926
        %1139 = vmatprep.subr.mxu0 0.0
        %1140 = vmatpush1.msra.mxu0 %v925
        %1141 = vmatprep.subr.mxu0 0.0
        %1142 = vmatpush1.msra.mxu0 %v924
        %1143 = vmatprep.subr.mxu0 0.0
        %1144 = vmatpush1.msra.mxu0 %v923
        %1145 = vmatprep.subr.mxu0 0.0
        %1146 = vmatpush1.msra.mxu0 %v922
        %1147 = vmatprep.subr.mxu0 0.0
        %1148 = vmatpush1.msra.mxu0 %v921
        %1149 = vmatprep.subr.mxu0 0.0
        %1150 = vmatpush1.msra.mxu0 %v920
        %1151 = vmatprep.subr.mxu0 0.0
        %1152 = vmatpush1.msra.mxu0 %v919
        %1153 = vmatprep.subr.mxu0 0.0
        %1154 = vmatpush1.msra.mxu0 %v918
        %1155 = vmatprep.subr.mxu0 0.0
        %1156 = vmatpush2.msra.mxu0 %v949
        %1157 = vmatprep.subr.mxu0 0.0
        %1158 = vmatpush2.msra.mxu0 %v948
        %1159 = vmatprep.subr.mxu0 0.0
        %1160 = vmatpush2.msra.mxu0 %v947
        %1161 = vmatprep.subr.mxu0 0.0
        %1162 = vmatpush2.msra.mxu0 %v946
        %1163 = vmatprep.subr.mxu0 0.0
        %1164 = vmatpush2.msra.mxu0 %v945
        %1165 = vmatprep.subr.mxu0 0.0
        %1166 = vmatpush2.msra.mxu0 %v944
        %1167 = vmatprep.subr.mxu0 0.0
        %1168 = vmatpush2.msra.mxu0 %v943
        %1169 = vmatprep.subr.mxu0 0.0
        %1170 = vmatpush2.msra.mxu0 %v942
        %1171 = vmatprep.subr.mxu0 0.0
        %1172 = vmatpush2.msra.mxu0 %v941
        %1173 = vmatprep.subr.mxu0 0.0
        %1174 = vmatpush2.msra.mxu0 %v940
        %1175 = vmatprep.subr.mxu0 0.0
        %1176 = vmatpush2.msra.mxu0 %v939
        %1177 = vmatprep.subr.mxu0 0.0
        %1178 = vmatpush2.msra.mxu0 %v938
        %1179 = vmatprep.subr.mxu0 0.0
        %1180 = vmatpush2.msra.mxu0 %v937
        %1181 = vmatprep.subr.mxu0 0.0
        %1182 = vmatpush2.msra.mxu0 %v936
        %1183 = vmatprep.subr.mxu0 0.0
        %1184 = vmatpush2.msra.mxu0 %v935
        %1185 = vmatprep.subr.mxu0 0.0
        %1186 = vmatpush2.msra.mxu0 %v934
        %1187 = vmatprep.mubr.f32.mxu0 %v845
        %1188 = vmatmul.mubr.f32.gmra.mxu0 %v844
        %v1189 = vpop.f32.mrf.mxu0
        %v1190 = vadd.f32 %v1115, %v1189
        %v1191 = vpop.f32.mrf.mxu0
        %1192 = vmatprep.mubr.f32.mxu0 %v852
        %1193 = vmatmul.mubr.f32.gmra.mxu0 %v851
        %v1194 = vpop.f32.mrf.mxu0
        %v1195 = vadd.f32 %v1120, %v1194
        %v1196 = vpop.f32.mrf.mxu0
        %1197 = vdwg.mxu0
        %1198 = vmatprep.subr.mxu0 0.0
        %1199 = vmatpush1.msra.mxu0 %v965
        %1200 = vmatprep.subr.mxu0 0.0
        %1201 = vmatpush1.msra.mxu0 %v964
        %1202 = vmatprep.subr.mxu0 0.0
        %1203 = vmatpush1.msra.mxu0 %v963
        %1204 = vmatprep.subr.mxu0 0.0
        %1205 = vmatpush1.msra.mxu0 %v962
        %1206 = vmatprep.subr.mxu0 0.0
        %1207 = vmatpush1.msra.mxu0 %v961
        %1208 = vmatprep.subr.mxu0 0.0
        %1209 = vmatpush1.msra.mxu0 %v960
        %1210 = vmatprep.subr.mxu0 0.0
        %1211 = vmatpush1.msra.mxu0 %v959
        %1212 = vmatprep.subr.mxu0 0.0
        %1213 = vmatpush1.msra.mxu0 %v958
        %1214 = vmatprep.subr.mxu0 0.0
        %1215 = vmatpush1.msra.mxu0 %v957
        %1216 = vmatprep.subr.mxu0 0.0
        %1217 = vmatpush1.msra.mxu0 %v956
        %1218 = vmatprep.subr.mxu0 0.0
        %1219 = vmatpush1.msra.mxu0 %v955
        %1220 = vmatprep.subr.mxu0 0.0
        %1221 = vmatpush1.msra.mxu0 %v954
        %1222 = vmatprep.subr.mxu0 0.0
        %1223 = vmatpush1.msra.mxu0 %v953
        %1224 = vmatprep.subr.mxu0 0.0
        %1225 = vmatpush1.msra.mxu0 %v952
        %1226 = vmatprep.subr.mxu0 0.0
        %1227 = vmatpush1.msra.mxu0 %v951
        %1228 = vmatprep.subr.mxu0 0.0
        %1229 = vmatpush1.msra.mxu0 %v950
        %1230 = vmatprep.subr.mxu0 0.0
        %1231 = vmatpush2.msra.mxu0 0.0
        %1232 = vmatprep.subr.mxu0 0.0
        %1233 = vmatpush2.msra.mxu0 0.0
        %1234 = vmatprep.subr.mxu0 0.0
        %1235 = vmatpush2.msra.mxu0 0.0
        %1236 = vmatprep.subr.mxu0 0.0
        %1237 = vmatpush2.msra.mxu0 0.0
        %1238 = vmatprep.subr.mxu0 0.0
        %1239 = vmatpush2.msra.mxu0 0.0
        %1240 = vmatprep.subr.mxu0 0.0
        %1241 = vmatpush2.msra.mxu0 0.0
        %1242 = vmatprep.subr.mxu0 0.0
        %1243 = vmatpush2.msra.mxu0 0.0
        %1244 = vmatprep.subr.mxu0 0.0
        %1245 = vmatpush2.msra.mxu0 0.0
        %1246 = vmatprep.subr.mxu0 0.0
        %1247 = vmatpush2.msra.mxu0 0.0
        %1248 = vmatprep.subr.mxu0 0.0
        %1249 = vmatpush2.msra.mxu0 0.0
        %1250 = vmatprep.subr.mxu0 0.0
        %1251 = vmatpush2.msra.mxu0 0.0
        %1252 = vmatprep.subr.mxu0 0.0
        %1253 = vmatpush2.msra.mxu0 0.0
        %1254 = vmatprep.subr.mxu0 0.0
        %1255 = vmatpush2.msra.mxu0 0.0
        %1256 = vmatprep.subr.mxu0 0.0
        %1257 = vmatpush2.msra.mxu0 0.0
        %1258 = vmatprep.subr.mxu0 0.0
        %1259 = vmatpush2.msra.mxu0 0.0
        %1260 = vmatprep.subr.mxu0 0.0
        %1261 = vmatpush2.msra.mxu0 0.0
        %1262 = vmatprep.mubr.f32.mxu0 0.0
        %1263 = vmatmul.mubr.f32.gmra.mxu0 %v846
        %v1264 = vpop.f32.mrf.mxu0
        %v1265 = vadd.f32 %v1190, %v1264
        %v1266 = vpop.f32.mrf.mxu0
        %1267 = vmatprep.mubr.f32.mxu0 0.0
        %1268 = vmatmul.mubr.f32.gmra.mxu0 %v853
        %v1269 = vpop.f32.mrf.mxu0
        %v1270 = vadd.f32 %v1195, %v1269
        %v1271 = vpop.f32.mrf.mxu0
        %1272 = vdwg.mxu0
        %v1273 = vmax.f32 %v1265, 0.0
        %v1274 = vmax.f32 %v1270, 0.0
        %v1275 = vsel %vm746, %v1273, 0.0
        %v1276 = vsel %vm748, %v1274, 0.0
        %v1277 = vadd.f32 %v1275, %v1276
        %v1278 = vrot.slane %v1277, 4
        %v1279 = vadd.f32 %v1277, %v1278
        %v1280 = vrot.slane %v1279, 2
        %v1281 = vadd.f32 %v1279, %v1280
        %v1282 = vrot.slane %v1281, 1
        %v1283 = vadd.f32 %v1281, %v1282
        %v1284 = vmul.f32 %v1283, 0.11111111
        %v1285 = vld [vmem:[%s8] sm:$0xff]
        %v1286 = vld [vmem:[%s8 + $0x8] sm:$0xff]
        %v1287 = vld [vmem:[%s8 + $0x10] sm:$0xff]
        %v1288 = vld [vmem:[%s8 + $0x18] sm:$0xff]
        %v1289 = vld [vmem:[%s8 + $0x20] sm:$0xff]
        %v1290 = vld [vmem:[%s8 + $0x28] sm:$0xff]
        %v1291 = vld [vmem:[%s8 + $0x30] sm:$0xff]
        %v1292 = vld [vmem:[%s8 + $0x38] sm:$0xff]
        %v1294 = vsel %vm746, %v1284, 0
        %1296 = vmatprep.subr.mxu0 0.0
        %1297 = vmatpush1.msra.mxu0 0.0
        %1298 = vmatprep.subr.mxu0 0.0
        %1299 = vmatpush1.msra.mxu0 0.0
        %1300 = vmatprep.subr.mxu0 0.0
        %1301 = vmatpush1.msra.mxu0 0.0
        %1302 = vmatprep.subr.mxu0 0.0
        %1303 = vmatpush1.msra.mxu0 0.0
        %1304 = vmatprep.subr.mxu0 0.0
        %1305 = vmatpush1.msra.mxu0 0.0
        %1306 = vmatprep.subr.mxu0 0.0
        %1307 = vmatpush1.msra.mxu0 0.0
        %1308 = vmatprep.subr.mxu0 0.0
        %1309 = vmatpush1.msra.mxu0 0.0
        %1310 = vmatprep.subr.mxu0 0.0
        %1311 = vmatpush1.msra.mxu0 0.0
        %1312 = vmatprep.subr.mxu0 0.0
        %1313 = vmatpush1.msra.mxu0 %v1292
        %1314 = vmatprep.subr.mxu0 0.0
        %1315 = vmatpush1.msra.mxu0 %v1291
        %1316 = vmatprep.subr.mxu0 0.0
        %1317 = vmatpush1.msra.mxu0 %v1290
        %1318 = vmatprep.subr.mxu0 0.0
        %1319 = vmatpush1.msra.mxu0 %v1289
        %1320 = vmatprep.subr.mxu0 0.0
        %1321 = vmatpush1.msra.mxu0 %v1288
        %1322 = vmatprep.subr.mxu0 0.0
        %1323 = vmatpush1.msra.mxu0 %v1287
        %1324 = vmatprep.subr.mxu0 0.0
        %1325 = vmatpush1.msra.mxu0 %v1286
        %1326 = vmatprep.subr.mxu0 0.0
        %1327 = vmatpush1.msra.mxu0 %v1285
        %1328 = vmatprep.subr.mxu0 0.0
        %1329 = vmatpush2.msra.mxu0 0.0
        %1330 = vmatprep.subr.mxu0 0.0
        %1331 = vmatpush2.msra.mxu0 0.0
        %1332 = vmatprep.subr.mxu0 0.0
        %1333 = vmatpush2.msra.mxu0 0.0
        %1334 = vmatprep.subr.mxu0 0.0
        %1335 = vmatpush2.msra.mxu0 0.0
        %1336 = vmatprep.subr.mxu0 0.0
        %1337 = vmatpush2.msra.mxu0 0.0
        %1338 = vmatprep.subr.mxu0 0.0
        %1339 = vmatpush2.msra.mxu0 0.0
        %1340 = vmatprep.subr.mxu0 0.0
        %1341 = vmatpush2.msra.mxu0 0.0
        %1342 = vmatprep.subr.mxu0 0.0
        %1343 = vmatpush2.msra.mxu0 0.0
        %1344 = vmatprep.subr.mxu0 0.0
        %1345 = vmatpush2.msra.mxu0 0.0
        %1346 = vmatprep.subr.mxu0 0.0
        %1347 = vmatpush2.msra.mxu0 0.0
        %1348 = vmatprep.subr.mxu0 0.0
        %1349 = vmatpush2.msra.mxu0 0.0
        %1350 = vmatprep.subr.mxu0 0.0
        %1351 = vmatpush2.msra.mxu0 0.0
        %1352 = vmatprep.subr.mxu0 0.0
        %1353 = vmatpush2.msra.mxu0 0.0
        %1354 = vmatprep.subr.mxu0 0.0
        %1355 = vmatpush2.msra.mxu0 0.0
        %1356 = vmatprep.subr.mxu0 0.0
        %1357 = vmatpush2.msra.mxu0 0.0
        %1358 = vmatprep.subr.mxu0 0.0
        %1359 = vmatpush2.msra.mxu0 0.0
        %1360 = vmatprep.mubr.f32.mxu0 0.0
        %1361 = vmatmul.mubr.f32.gmra.mxu0 %v1294
        %v1362 = vpop.f32.mrf.mxu0
        %v1363 = vadd.f32 0.0, %v1362
        %v1364 = vpop.f32.mrf.mxu0
        %1365 = vdwg.mxu0
        %v1366 = vadd.f32 %v839, %v1363
        %v1367 = vld [vmem:[%s531] sm:$0xff]
        %v1368 = vld [vmem:[%s531 + $0x8] sm:$0xff]
        %v1369 = vld [vmem:[%s531 + $0x10] sm:$0xff]
        %v1370 = vld [vmem:[%s531 + $0x18] sm:$0xff]
        %v1371 = vld [vmem:[%s531 + $0x20] sm:$0xff]
        %v1372 = vld [vmem:[%s531 + $0x28] sm:$0xff]
        %v1373 = vld [vmem:[%s531 + $0x30] sm:$0xff]
        %v1374 = vld [vmem:[%s531 + $0x38] sm:$0xff]
        %v1375 = vld [vmem:[%s531 + $0x40] sm:$0xff]
        %v1376 = vld [vmem:[%s531 + $0x48] sm:$0xff]
        %v1377 = vld [vmem:[%s531 + $0x50] sm:$0xff]
        %v1378 = vld [vmem:[%s531 + $0x58] sm:$0xff]
        %v1379 = vld [vmem:[%s531 + $0x60] sm:$0xff]
        %v1380 = vld [vmem:[%s531 + $0x68] sm:$0x1]
        %v1381 = vld [vmem:[%s531 + $0x70] sm:$0x1]
        %v1382 = vld [vmem:[%s531 + $0x78] sm:$0x1]
        %v1383 = vld [vmem:[%s531 + $0x80] sm:$0x1]
        %v1384 = vld [vmem:[%s531 + $0x88] sm:$0x1]
        %v1385 = vld [vmem:[%s531 + $0x90] sm:$0x1]
        %v1386 = vld [vmem:[%s531 + $0x98] sm:$0x1]
        %v1387 = vld [vmem:[%s531 + $0xa0] sm:$0x1]
        %v1388 = vld [vmem:[%s531 + $0xa8] sm:$0x1]
        %v1389 = vld [vmem:[%s531 + $0xb0] sm:$0x1]
        %v1390 = vld [vmem:[%s531 + $0xb8] sm:$0x1]
        %v1391 = vld [vmem:[%s531 + $0xc0] sm:$0x1]
        %v1392 = vld [vmem:[%s531 + $0xc8] sm:$0x1]
        %v1393 = vld [vmem:[%s9] sm:$0xff]
        %v1394 = vld [vmem:[%s9 + $0x8] sm:$0xff]
        %v1395 = vld [vmem:[%s9 + $0x10] sm:$0xff]
        %v1396 = vld [vmem:[%s9 + $0x18] sm:$0xff]
        %v1397 = vld [vmem:[%s9 + $0x20] sm:$0xff]
        %v1398 = vld [vmem:[%s9 + $0x28] sm:$0xff]
        %v1399 = vld [vmem:[%s9 + $0x30] sm:$0xff]
        %v1400 = vld [vmem:[%s9 + $0x38] sm:$0xff]
        %v1401 = vld [vmem:[%s9 + $0x40] sm:$0xff]
        %v1402 = vld [vmem:[%s9 + $0x48] sm:$0xff]
        %v1403 = vld [vmem:[%s9 + $0x50] sm:$0xff]
        %v1404 = vld [vmem:[%s9 + $0x58] sm:$0xff]
        %v1405 = vld [vmem:[%s9 + $0x60] sm:$0xff]
        %v1406 = vld [vmem:[%s9 + $0x68] sm:$0xff]
        %v1407 = vld [vmem:[%s9 + $0x70] sm:$0xff]
        %v1408 = vld [vmem:[%s9 + $0x78] sm:$0xff]
        %v1409 = vld [vmem:[%s9 + $0x80] sm:$0xff]
        %v1410 = vld [vmem:[%s9 + $0x88] sm:$0xff]
        %v1411 = vld [vmem:[%s9 + $0x90] sm:$0xff]
        %v1412 = vld [vmem:[%s9 + $0x98] sm:$0xff]
        %v1413 = vld [vmem:[%s9 + $0xa0] sm:$0xff]
        %v1414 = vld [vmem:[%s9 + $0xa8] sm:$0xff]
        %v1415 = vld [vmem:[%s9 + $0xb0] sm:$0xff]
        %v1416 = vld [vmem:[%s9 + $0xb8] sm:$0xff]
        %v1417 = vld [vmem:[%s9 + $0xc0] sm:$0xff]
        %v1418 = vld [vmem:[%s9 + $0xc8] sm:$0xff]
        %v1419 = vld [vmem:[%s9 + $0xd0] sm:$0xff]
        %v1420 = vld [vmem:[%s9 + $0xd8] sm:$0xff]
        %v1421 = vld [vmem:[%s9 + $0xe0] sm:$0xff]
        %v1422 = vld [vmem:[%s9 + $0xe8] sm:$0xff]
        %v1423 = vld [vmem:[%s9 + $0xf0] sm:$0xff]
        %v1424 = vld [vmem:[%s9 + $0xf8] sm:$0xff]
        %v1425 = vld [vmem:[%s9 + $0x100] sm:$0xff]
        %v1426 = vld [vmem:[%s9 + $0x108] sm:$0xff]
        %v1427 = vld [vmem:[%s9 + $0x110] sm:$0xff]
        %v1428 = vld [vmem:[%s9 + $0x118] sm:$0xff]
        %v1429 = vld [vmem:[%s9 + $0x120] sm:$0xff]
        %v1430 = vld [vmem:[%s9 + $0x128] sm:$0xff]
        %v1431 = vld [vmem:[%s9 + $0x130] sm:$0xff]
        %v1432 = vld [vmem:[%s9 + $0x138] sm:$0xff]
        %v1433 = vld [vmem:[%s9 + $0x140] sm:$0xff]
        %v1434 = vld [vmem:[%s9 + $0x148] sm:$0xff]
        %v1435 = vld [vmem:[%s9 + $0x150] sm:$0xff]
        %v1436 = vld [vmem:[%s9 + $0x158] sm:$0xff]
        %v1437 = vld [vmem:[%s9 + $0x160] sm:$0xff]
        %v1438 = vld [vmem:[%s9 + $0x168] sm:$0xff]
        %v1439 = vld [vmem:[%s9 + $0x170] sm:$0xff]
        %v1440 = vld [vmem:[%s9 + $0x178] sm:$0xff]
        %v1441 = vld [vmem:[%s9 + $0x180] sm:$0xff]
        %v1442 = vld [vmem:[%s9 + $0x188] sm:$0xff]
        %v1443 = vld [vmem:[%s9 + $0x190] sm:$0xff]
        %v1444 = vld [vmem:[%s9 + $0x198] sm:$0xff]
        %v1445 = vld [vmem:[%s9 + $0x1a0] sm:$0xff]
        %v1446 = vld [vmem:[%s9 + $0x1a8] sm:$0xff]
        %v1447 = vld [vmem:[%s9 + $0x1b0] sm:$0xff]
        %v1448 = vld [vmem:[%s9 + $0x1b8] sm:$0xff]
        %v1449 = vld [vmem:[%s9 + $0x1c0] sm:$0xff]
        %v1450 = vld [vmem:[%s9 + $0x1c8] sm:$0xff]
        %v1451 = vld [vmem:[%s9 + $0x1d0] sm:$0xff]
        %v1452 = vld [vmem:[%s9 + $0x1d8] sm:$0xff]
        %v1453 = vld [vmem:[%s9 + $0x1e0] sm:$0xff]
        %v1454 = vld [vmem:[%s9 + $0x1e8] sm:$0xff]
        %v1455 = vld [vmem:[%s9 + $0x1f0] sm:$0xff]
        %v1456 = vld [vmem:[%s9 + $0x1f8] sm:$0xff]
        %v1457 = vld [vmem:[%s9 + $0x200] sm:$0xff]
        %v1458 = vld [vmem:[%s9 + $0x208] sm:$0xff]
        %v1459 = vld [vmem:[%s9 + $0x210] sm:$0xff]
        %v1460 = vld [vmem:[%s9 + $0x218] sm:$0xff]
        %v1461 = vld [vmem:[%s9 + $0x220] sm:$0xff]
        %v1462 = vld [vmem:[%s9 + $0x228] sm:$0xff]
        %v1463 = vld [vmem:[%s9 + $0x230] sm:$0xff]
        %v1464 = vld [vmem:[%s9 + $0x238] sm:$0xff]
        %v1465 = vld [vmem:[%s9 + $0x240] sm:$0xff]
        %v1466 = vld [vmem:[%s9 + $0x248] sm:$0xff]
        %v1467 = vld [vmem:[%s9 + $0x250] sm:$0xff]
        %v1468 = vld [vmem:[%s9 + $0x258] sm:$0xff]
        %v1469 = vld [vmem:[%s9 + $0x260] sm:$0xff]
        %v1470 = vld [vmem:[%s9 + $0x268] sm:$0xff]
        %v1471 = vld [vmem:[%s9 + $0x270] sm:$0xff]
        %v1472 = vld [vmem:[%s9 + $0x278] sm:$0xff]
        %v1473 = vld [vmem:[%s9 + $0x280] sm:$0xff]
        %v1474 = vld [vmem:[%s9 + $0x288] sm:$0xff]
        %v1475 = vld [vmem:[%s9 + $0x290] sm:$0xff]
        %v1476 = vld [vmem:[%s9 + $0x298] sm:$0xff]
        %v1477 = vld [vmem:[%s9 + $0x2a0] sm:$0xff]
        %v1478 = vld [vmem:[%s9 + $0x2a8] sm:$0xff]
        %v1479 = vld [vmem:[%s9 + $0x2b0] sm:$0xff]
        %v1480 = vld [vmem:[%s9 + $0x2b8] sm:$0xff]
        %v1481 = vld [vmem:[%s9 + $0x2c0] sm:$0xff]
        %v1482 = vld [vmem:[%s9 + $0x2c8] sm:$0xff]
        %v1483 = vld [vmem:[%s9 + $0x2d0] sm:$0xff]
        %v1484 = vld [vmem:[%s9 + $0x2d8] sm:$0xff]
        %v1485 = vld [vmem:[%s9 + $0x2e0] sm:$0xff]
        %v1486 = vld [vmem:[%s9 + $0x2e8] sm:$0xff]
        %v1487 = vld [vmem:[%s9 + $0x2f0] sm:$0xff]
        %v1488 = vld [vmem:[%s9 + $0x2f8] sm:$0xff]
        %v1489 = vld [vmem:[%s9 + $0x300] sm:$0xff]
        %v1490 = vld [vmem:[%s9 + $0x308] sm:$0xff]
        %v1491 = vld [vmem:[%s9 + $0x310] sm:$0xff]
        %v1492 = vld [vmem:[%s9 + $0x318] sm:$0xff]
        %v1493 = vld [vmem:[%s9 + $0x320] sm:$0xff]
        %v1494 = vld [vmem:[%s9 + $0x328] sm:$0xff]
        %v1495 = vld [vmem:[%s9 + $0x330] sm:$0xff]
        %v1496 = vld [vmem:[%s9 + $0x338] sm:$0xff]
        %v1497 = vld [vmem:[%s9 + $0x340] sm:$0xff]
        %v1498 = vld [vmem:[%s9 + $0x348] sm:$0xff]
        %v1499 = vld [vmem:[%s9 + $0x350] sm:$0xff]
        %v1500 = vld [vmem:[%s9 + $0x358] sm:$0xff]
        %v1501 = vld [vmem:[%s9 + $0x360] sm:$0xff]
        %v1502 = vld [vmem:[%s9 + $0x368] sm:$0xff]
        %v1503 = vld [vmem:[%s9 + $0x370] sm:$0xff]
        %v1504 = vld [vmem:[%s9 + $0x378] sm:$0xff]
        %v1505 = vld [vmem:[%s9 + $0x380] sm:$0xff]
        %v1506 = vld [vmem:[%s9 + $0x388] sm:$0xff]
        %v1507 = vld [vmem:[%s9 + $0x390] sm:$0xff]
        %v1508 = vld [vmem:[%s9 + $0x398] sm:$0xff]
        %v1509 = vld [vmem:[%s9 + $0x3a0] sm:$0xff]
        %v1510 = vld [vmem:[%s9 + $0x3a8] sm:$0xff]
        %v1511 = vld [vmem:[%s9 + $0x3b0] sm:$0xff]
        %v1512 = vld [vmem:[%s9 + $0x3b8] sm:$0xff]
        %v1513 = vld [vmem:[%s9 + $0x3c0] sm:$0xff]
        %v1514 = vld [vmem:[%s9 + $0x3c8] sm:$0xff]
        %v1515 = vld [vmem:[%s9 + $0x3d0] sm:$0xff]
        %v1516 = vld [vmem:[%s9 + $0x3d8] sm:$0xff]
        %v1517 = vld [vmem:[%s9 + $0x3e0] sm:$0xff]
        %v1518 = vld [vmem:[%s9 + $0x3e8] sm:$0xff]
        %v1519 = vld [vmem:[%s9 + $0x3f0] sm:$0xff]
        %v1520 = vld [vmem:[%s9 + $0x3f8] sm:$0xff]
        %v1521 = vld [vmem:[%s9 + $0x400] sm:$0xff]
        %v1522 = vld [vmem:[%s9 + $0x408] sm:$0xff]
        %v1523 = vld [vmem:[%s9 + $0x410] sm:$0xff]
        %v1524 = vld [vmem:[%s9 + $0x418] sm:$0xff]
        %v1525 = vld [vmem:[%s9 + $0x420] sm:$0xff]
        %v1526 = vld [vmem:[%s9 + $0x428] sm:$0xff]
        %v1527 = vld [vmem:[%s9 + $0x430] sm:$0xff]
        %v1528 = vld [vmem:[%s9 + $0x438] sm:$0xff]
        %v1529 = vld [vmem:[%s9 + $0x440] sm:$0xff]
        %v1530 = vld [vmem:[%s9 + $0x448] sm:$0xff]
        %v1531 = vld [vmem:[%s9 + $0x450] sm:$0xff]
        %v1532 = vld [vmem:[%s9 + $0x458] sm:$0xff]
        %v1533 = vld [vmem:[%s9 + $0x460] sm:$0xff]
        %v1534 = vld [vmem:[%s9 + $0x468] sm:$0xff]
        %v1535 = vld [vmem:[%s9 + $0x470] sm:$0xff]
        %v1536 = vld [vmem:[%s9 + $0x478] sm:$0xff]
        %v1537 = vld [vmem:[%s9 + $0x480] sm:$0xff]
        %v1538 = vld [vmem:[%s9 + $0x488] sm:$0xff]
        %v1539 = vld [vmem:[%s9 + $0x490] sm:$0xff]
        %v1540 = vld [vmem:[%s9 + $0x498] sm:$0xff]
        %v1541 = vld [vmem:[%s9 + $0x4a0] sm:$0xff]
        %v1542 = vld [vmem:[%s9 + $0x4a8] sm:$0xff]
        %v1543 = vld [vmem:[%s9 + $0x4b0] sm:$0xff]
        %v1544 = vld [vmem:[%s9 + $0x4b8] sm:$0xff]
        %v1545 = vld [vmem:[%s9 + $0x4c0] sm:$0xff]
        %v1546 = vld [vmem:[%s9 + $0x4c8] sm:$0xff]
        %v1547 = vld [vmem:[%s9 + $0x4d0] sm:$0xff]
        %v1548 = vld [vmem:[%s9 + $0x4d8] sm:$0xff]
        %v1549 = vld [vmem:[%s9 + $0x4e0] sm:$0xff]
        %v1550 = vld [vmem:[%s9 + $0x4e8] sm:$0xff]
        %v1551 = vld [vmem:[%s9 + $0x4f0] sm:$0xff]
        %v1552 = vld [vmem:[%s9 + $0x4f8] sm:$0xff]
        %v1553 = vld [vmem:[%s9 + $0x500] sm:$0xff]
        %v1554 = vld [vmem:[%s9 + $0x508] sm:$0xff]
        %v1555 = vld [vmem:[%s9 + $0x510] sm:$0xff]
        %v1556 = vld [vmem:[%s9 + $0x518] sm:$0xff]
        %v1557 = vld [vmem:[%s9 + $0x520] sm:$0xff]
        %v1558 = vld [vmem:[%s9 + $0x528] sm:$0xff]
        %v1559 = vld [vmem:[%s9 + $0x530] sm:$0xff]
        %v1560 = vld [vmem:[%s9 + $0x538] sm:$0xff]
        %v1561 = vld [vmem:[%s9 + $0x540] sm:$0xff]
        %v1562 = vld [vmem:[%s9 + $0x548] sm:$0xff]
        %v1563 = vld [vmem:[%s9 + $0x550] sm:$0xff]
        %v1564 = vld [vmem:[%s9 + $0x558] sm:$0xff]
        %v1565 = vld [vmem:[%s9 + $0x560] sm:$0xff]
        %v1566 = vld [vmem:[%s9 + $0x568] sm:$0xff]
        %v1567 = vld [vmem:[%s9 + $0x570] sm:$0xff]
        %v1568 = vld [vmem:[%s9 + $0x578] sm:$0xff]
        %v1569 = vld [vmem:[%s9 + $0x580] sm:$0xff]
        %v1570 = vld [vmem:[%s9 + $0x588] sm:$0xff]
        %v1571 = vld [vmem:[%s9 + $0x590] sm:$0xff]
        %v1572 = vld [vmem:[%s9 + $0x598] sm:$0xff]
        %v1573 = vld [vmem:[%s9 + $0x5a0] sm:$0xff]
        %v1574 = vld [vmem:[%s9 + $0x5a8] sm:$0xff]
        %v1575 = vld [vmem:[%s9 + $0x5b0] sm:$0xff]
        %v1576 = vld [vmem:[%s9 + $0x5b8] sm:$0xff]
        %v1577 = vld [vmem:[%s9 + $0x5c0] sm:$0xff]
        %v1578 = vld [vmem:[%s9 + $0x5c8] sm:$0xff]
        %v1579 = vld [vmem:[%s9 + $0x5d0] sm:$0xff]
        %v1580 = vld [vmem:[%s9 + $0x5d8] sm:$0xff]
        %v1581 = vld [vmem:[%s9 + $0x5e0] sm:$0xff]
        %v1582 = vld [vmem:[%s9 + $0x5e8] sm:$0xff]
        %v1583 = vld [vmem:[%s9 + $0x5f0] sm:$0xff]
        %v1584 = vld [vmem:[%s9 + $0x5f8] sm:$0xff]
        %v1585 = vld [vmem:[%s9 + $0x600] sm:$0xff]
        %v1586 = vld [vmem:[%s9 + $0x608] sm:$0xff]
        %v1587 = vld [vmem:[%s9 + $0x610] sm:$0xff]
        %v1588 = vld [vmem:[%s9 + $0x618] sm:$0xff]
        %v1589 = vld [vmem:[%s9 + $0x620] sm:$0xff]
        %v1590 = vld [vmem:[%s9 + $0x628] sm:$0xff]
        %v1591 = vld [vmem:[%s9 + $0x630] sm:$0xff]
        %v1592 = vld [vmem:[%s9 + $0x638] sm:$0xff]
        %v1593 = vld [vmem:[%s9 + $0x640] sm:$0xff]
        %v1594 = vld [vmem:[%s9 + $0x648] sm:$0xff]
        %v1595 = vld [vmem:[%s9 + $0x650] sm:$0xff]
        %v1596 = vld [vmem:[%s9 + $0x658] sm:$0xff]
        %v1597 = vld [vmem:[%s9 + $0x660] sm:$0xff]
        %v1598 = vld [vmem:[%s9 + $0x668] sm:$0xff]
        %v1599 = vld [vmem:[%s9 + $0x670] sm:$0xff]
        %v1600 = vld [vmem:[%s9 + $0x678] sm:$0xff]
        %v1601 = vld [vmem:[%s10] sm:$0x1]
        %v1603 = vlaneseq
        %v1604 = vshrl.u32 %v1603, 7
        %v1605 = vsub.s32 0, %v1604
        %v1606 = vrot.slane %v1601, %v1605
        %1608 = vmatprep.subr.mxu0 0.0
        %1609 = vmatpush1.msra.mxu0 %v1408
        %1610 = vmatprep.subr.mxu0 0.0
        %1611 = vmatpush1.msra.mxu0 %v1407
        %1612 = vmatprep.subr.mxu0 0.0
        %1613 = vmatpush1.msra.mxu0 %v1406
        %1614 = vmatprep.subr.mxu0 0.0
        %1615 = vmatpush1.msra.mxu0 %v1405
        %1616 = vmatprep.subr.mxu0 0.0
        %1617 = vmatpush1.msra.mxu0 %v1404
        %1618 = vmatprep.subr.mxu0 0.0
        %1619 = vmatpush1.msra.mxu0 %v1403
        %1620 = vmatprep.subr.mxu0 0.0
        %1621 = vmatpush1.msra.mxu0 %v1402
        %1622 = vmatprep.subr.mxu0 0.0
        %1623 = vmatpush1.msra.mxu0 %v1401
        %1624 = vmatprep.subr.mxu0 0.0
        %1625 = vmatpush1.msra.mxu0 %v1400
        %1626 = vmatprep.subr.mxu0 0.0
        %1627 = vmatpush1.msra.mxu0 %v1399
        %1628 = vmatprep.subr.mxu0 0.0
        %1629 = vmatpush1.msra.mxu0 %v1398
        %1630 = vmatprep.subr.mxu0 0.0
        %1631 = vmatpush1.msra.mxu0 %v1397
        %1632 = vmatprep.subr.mxu0 0.0
        %1633 = vmatpush1.msra.mxu0 %v1396
        %1634 = vmatprep.subr.mxu0 0.0
        %1635 = vmatpush1.msra.mxu0 %v1395
        %1636 = vmatprep.subr.mxu0 0.0
        %1637 = vmatpush1.msra.mxu0 %v1394
        %1638 = vmatprep.subr.mxu0 0.0
        %1639 = vmatpush1.msra.mxu0 %v1393
        %1640 = vmatprep.subr.mxu0 0.0
        %1641 = vmatpush2.msra.mxu0 %v1424
        %1642 = vmatprep.subr.mxu0 0.0
        %1643 = vmatpush2.msra.mxu0 %v1423
        %1644 = vmatprep.subr.mxu0 0.0
        %1645 = vmatpush2.msra.mxu0 %v1422
        %1646 = vmatprep.subr.mxu0 0.0
        %1647 = vmatpush2.msra.mxu0 %v1421
        %1648 = vmatprep.subr.mxu0 0.0
        %1649 = vmatpush2.msra.mxu0 %v1420
        %1650 = vmatprep.subr.mxu0 0.0
        %1651 = vmatpush2.msra.mxu0 %v1419
        %1652 = vmatprep.subr.mxu0 0.0
        %1653 = vmatpush2.msra.mxu0 %v1418
        %1654 = vmatprep.subr.mxu0 0.0
        %1655 = vmatpush2.msra.mxu0 %v1417
        %1656 = vmatprep.subr.mxu0 0.0
        %1657 = vmatpush2.msra.mxu0 %v1416
        %1658 = vmatprep.subr.mxu0 0.0
        %1659 = vmatpush2.msra.mxu0 %v1415
        %1660 = vmatprep.subr.mxu0 0.0
        %1661 = vmatpush2.msra.mxu0 %v1414
        %1662 = vmatprep.subr.mxu0 0.0
        %1663 = vmatpush2.msra.mxu0 %v1413
        %1664 = vmatprep.subr.mxu0 0.0
        %1665 = vmatpush2.msra.mxu0 %v1412
        %1666 = vmatprep.subr.mxu0 0.0
        %1667 = vmatpush2.msra.mxu0 %v1411
        %1668 = vmatprep.subr.mxu0 0.0
        %1669 = vmatpush2.msra.mxu0 %v1410
        %1670 = vmatprep.subr.mxu0 0.0
        %1671 = vmatpush2.msra.mxu0 %v1409
        %1672 = vmatprep.mubr.f32.mxu0 %v1368
        %1673 = vmatmul.mubr.f32.gmra.mxu0 %v1367
        %v1674 = vpop.f32.mrf.mxu0
        %v1675 = vadd.f32 %v1606, %v1674
        %v1676 = vpop.f32.mrf.mxu0
        %1677 = vmatprep.mubr.f32.mxu0 %v1381
        %1678 = vmatmul.mubr.f32.gmra.mxu0 %v1380
        %v1679 = vpop.f32.mrf.mxu0
        %v1680 = vadd.f32 %v1606, %v1679
        %v1681 = vpop.f32.mrf.mxu0
        %1682 = vdwg.mxu0
        %1683 = vmatprep.subr.mxu0 0.0
        %1684 = vmatpush1.msra.mxu0 %v1440
        %1685 = vmatprep.subr.mxu0 0.0
        %1686 = vmatpush1.msra.mxu0 %v1439
        %1687 = vmatprep.subr.mxu0 0.0
        %1688 = vmatpush1.msra.mxu0 %v1438
        %1689 = vmatprep.subr.mxu0 0.0
        %1690 = vmatpush1.msra.mxu0 %v1437
        %1691 = vmatprep.subr.mxu0 0.0
        %1692 = vmatpush1.msra.mxu0 %v1436
        %1693 = vmatprep.subr.mxu0 0.0
        %1694 = vmatpush1.msra.mxu0 %v1435
        %1695 = vmatprep.subr.mxu0 0.0
        %1696 = vmatpush1.msra.mxu0 %v1434
        %1697 = vmatprep.subr.mxu0 0.0
        %1698 = vmatpush1.msra.mxu0 %v1433
        %1699 = vmatprep.subr.mxu0 0.0
        %1700 = vmatpush1.msra.mxu0 %v1432
        %1701 = vmatprep.subr.mxu0 0.0
        %1702 = vmatpush1.msra.mxu0 %v1431
        %1703 = vmatprep.subr.mxu0 0.0
        %1704 = vmatpush1.msra.mxu0 %v1430
        %1705 = vmatprep.subr.mxu0 0.0
        %1706 = vmatpush1.msra.mxu0 %v1429
        %1707 = vmatprep.subr.mxu0 0.0
        %1708 = vmatpush1.msra.mxu0 %v1428
        %1709 = vmatprep.subr.mxu0 0.0
        %1710 = vmatpush1.msra.mxu0 %v1427
        %1711 = vmatprep.subr.mxu0 0.0
        %1712 = vmatpush1.msra.mxu0 %v1426
        %1713 = vmatprep.subr.mxu0 0.0
        %1714 = vmatpush1.msra.mxu0 %v1425
        %1715 = vmatprep.subr.mxu0 0.0
        %1716 = vmatpush2.msra.mxu0 %v1456
        %1717 = vmatprep.subr.mxu0 0.0
        %1718 = vmatpush2.msra.mxu0 %v1455
        %1719 = vmatprep.subr.mxu0 0.0
        %1720 = vmatpush2.msra.mxu0 %v1454
        %1721 = vmatprep.subr.mxu0 0.0
        %1722 = vmatpush2.msra.mxu0 %v1453
        %1723 = vmatprep.subr.mxu0 0.0
        %1724 = vmatpush2.msra.mxu0 %v1452
        %1725 = vmatprep.subr.mxu0 0.0
        %1726 = vmatpush2.msra.mxu0 %v1451
        %1727 = vmatprep.subr.mxu0 0.0
        %1728 = vmatpush2.msra.mxu0 %v1450
        %1729 = vmatprep.subr.mxu0 0.0
        %1730 = vmatpush2.msra.mxu0 %v1449
        %1731 = vmatprep.subr.mxu0 0.0
        %1732 = vmatpush2.msra.mxu0 %v1448
        %1733 = vmatprep.subr.mxu0 0.0
        %1734 = vmatpush2.msra.mxu0 %v1447
        %1735 = vmatprep.subr.mxu0 0.0
        %1736 = vmatpush2.msra.mxu0 %v1446
        %1737 = vmatprep.subr.mxu0 0.0
        %1738 = vmatpush2.msra.mxu0 %v1445
        %1739 = vmatprep.subr.mxu0 0.0
        %1740 = vmatpush2.msra.mxu0 %v1444
        %1741 = vmatprep.subr.mxu0 0.0
        %1742 = vmatpush2.msra.mxu0 %v1443
        %1743 = vmatprep.subr.mxu0 0.0
        %1744 = vmatpush2.msra.mxu0 %v1442
        %1745 = vmatprep.subr.mxu0 0.0
        %1746 = vmatpush2.msra.mxu0 %v1441
        %1747 = vmatprep.mubr.f32.mxu0 %v1370
        %1748 = vmatmul.mubr.f32.gmra.mxu0 %v1369
        %v1749 = vpop.f32.mrf.mxu0
        %v1750 = vadd.f32 %v1675, %v1749
        %v1751 = vpop.f32.mrf.mxu0
        %1752 = vmatprep.mubr.f32.mxu0 %v1383
        %1753 = vmatmul.mubr.f32.gmra.mxu0 %v1382
        %v1754 = vpop.f32.mrf.mxu0
        %v1755 = vadd.f32 %v1680, %v1754
        %v1756 = vpop.f32.mrf.mxu0
        %1757 = vdwg.mxu0
        %1758 = vmatprep.subr.mxu0 0.0
        %1759 = vmatpush1.msra.mxu0 %v1472
        %1760 = vmatprep.subr.mxu0 0.0
        %1761 = vmatpush1.msra.mxu0 %v1471
        %1762 = vmatprep.subr.mxu0 0.0
        %1763 = vmatpush1.msra.mxu0 %v1470
        %1764 = vmatprep.subr.mxu0 0.0
        %1765 = vmatpush1.msra.mxu0 %v1469
        %1766 = vmatprep.subr.mxu0 0.0
        %1767 = vmatpush1.msra.mxu0 %v1468
        %1768 = vmatprep.subr.mxu0 0.0
        %1769 = vmatpush1.msra.mxu0 %v1467
        %1770 = vmatprep.subr.mxu0 0.0
        %1771 = vmatpush1.msra.mxu0 %v1466
        %1772 = vmatprep.subr.mxu0 0.0
        %1773 = vmatpush1.msra.mxu0 %v1465
        %1774 = vmatprep.subr.mxu0 0.0
        %1775 = vmatpush1.msra.mxu0 %v1464
        %1776 = vmatprep.subr.mxu0 0.0
        %1777 = vmatpush1.msra.mxu0 %v1463
        %1778 = vmatprep.subr.mxu0 0.0
        %1779 = vmatpush1.msra.mxu0 %v1462
        %1780 = vmatprep.subr.mxu0 0.0
        %1781 = vmatpush1.msra.mxu0 %v1461
        %1782 = vmatprep.subr.mxu0 0.0
        %1783 = vmatpush1.msra.mxu0 %v1460
        %1784 = vmatprep.subr.mxu0 0.0
        %1785 = vmatpush1.msra.mxu0 %v1459
        %1786 = vmatprep.subr.mxu0 0.0
        %1787 = vmatpush1.msra.mxu0 %v1458
        %1788 = vmatprep.subr.mxu0 0.0
        %1789 = vmatpush1.msra.mxu0 %v1457
        %1790 = vmatprep.subr.mxu0 0.0
        %1791 = vmatpush2.msra.mxu0 %v1488
        %1792 = vmatprep.subr.mxu0 0.0
        %1793 = vmatpush2.msra.mxu0 %v1487
        %1794 = vmatprep.subr.mxu0 0.0
        %1795 = vmatpush2.msra.mxu0 %v1486
        %1796 = vmatprep.subr.mxu0 0.0
        %1797 = vmatpush2.msra.mxu0 %v1485
        %1798 = vmatprep.subr.mxu0 0.0
        %1799 = vmatpush2.msra.mxu0 %v1484
        %1800 = vmatprep.subr.mxu0 0.0
        %1801 = vmatpush2.msra.mxu0 %v1483
        %1802 = vmatprep.subr.mxu0 0.0
        %1803 = vmatpush2.msra.mxu0 %v1482
        %1804 = vmatprep.subr.mxu0 0.0
        %1805 = vmatpush2.msra.mxu0 %v1481
        %1806 = vmatprep.subr.mxu0 0.0
        %1807 = vmatpush2.msra.mxu0 %v1480
        %1808 = vmatprep.subr.mxu0 0.0
        %1809 = vmatpush2.msra.mxu0 %v1479
        %1810 = vmatprep.subr.mxu0 0.0
        %1811 = vmatpush2.msra.mxu0 %v1478
        %1812 = vmatprep.subr.mxu0 0.0
        %1813 = vmatpush2.msra.mxu0 %v1477
        %1814 = vmatprep.subr.mxu0 0.0
        %1815 = vmatpush2.msra.mxu0 %v1476
        %1816 = vmatprep.subr.mxu0 0.0
        %1817 = vmatpush2.msra.mxu0 %v1475
        %1818 = vmatprep.subr.mxu0 0.0
        %1819 = vmatpush2.msra.mxu0 %v1474
        %1820 = vmatprep.subr.mxu0 0.0
        %1821 = vmatpush2.msra.mxu0 %v1473
        %1822 = vmatprep.mubr.f32.mxu0 %v1372
        %1823 = vmatmul.mubr.f32.gmra.mxu0 %v1371
        %v1824 = vpop.f32.mrf.mxu0
        %v1825 = vadd.f32 %v1750, %v1824
        %v1826 = vpop.f32.mrf.mxu0
        %1827 = vmatprep.mubr.f32.mxu0 %v1385
        %1828 = vmatmul.mubr.f32.gmra.mxu0 %v1384
        %v1829 = vpop.f32.mrf.mxu0
        %v1830 = vadd.f32 %v1755, %v1829
        %v1831 = vpop.f32.mrf.mxu0
        %1832 = vdwg.mxu0
        %1833 = vmatprep.subr.mxu0 0.0
        %1834 = vmatpush1.msra.mxu0 %v1504
        %1835 = vmatprep.subr.mxu0 0.0
        %1836 = vmatpush1.msra.mxu0 %v1503
        %1837 = vmatprep.subr.mxu0 0.0
        %1838 = vmatpush1.msra.mxu0 %v1502
        %1839 = vmatprep.subr.mxu0 0.0
        %1840 = vmatpush1.msra.mxu0 %v1501
        %1841 = vmatprep.subr.mxu0 0.0
        %1842 = vmatpush1.msra.mxu0 %v1500
        %1843 = vmatprep.subr.mxu0 0.0
        %1844 = vmatpush1.msra.mxu0 %v1499
        %1845 = vmatprep.subr.mxu0 0.0
        %1846 = vmatpush1.msra.mxu0 %v1498
        %1847 = vmatprep.subr.mxu0 0.0
        %1848 = vmatpush1.msra.mxu0 %v1497
        %1849 = vmatprep.subr.mxu0 0.0
        %1850 = vmatpush1.msra.mxu0 %v1496
        %1851 = vmatprep.subr.mxu0 0.0
        %1852 = vmatpush1.msra.mxu0 %v1495
        %1853 = vmatprep.subr.mxu0 0.0
        %1854 = vmatpush1.msra.mxu0 %v1494
        %1855 = vmatprep.subr.mxu0 0.0
        %1856 = vmatpush1.msra.mxu0 %v1493
        %1857 = vmatprep.subr.mxu0 0.0
        %1858 = vmatpush1.msra.mxu0 %v1492
        %1859 = vmatprep.subr.mxu0 0.0
        %1860 = vmatpush1.msra.mxu0 %v1491
        %1861 = vmatprep.subr.mxu0 0.0
        %1862 = vmatpush1.msra.mxu0 %v1490
        %1863 = vmatprep.subr.mxu0 0.0
        %1864 = vmatpush1.msra.mxu0 %v1489
        %1865 = vmatprep.subr.mxu0 0.0
        %1866 = vmatpush2.msra.mxu0 %v1520
        %1867 = vmatprep.subr.mxu0 0.0
        %1868 = vmatpush2.msra.mxu0 %v1519
        %1869 = vmatprep.subr.mxu0 0.0
        %1870 = vmatpush2.msra.mxu0 %v1518
        %1871 = vmatprep.subr.mxu0 0.0
        %1872 = vmatpush2.msra.mxu0 %v1517
        %1873 = vmatprep.subr.mxu0 0.0
        %1874 = vmatpush2.msra.mxu0 %v1516
        %1875 = vmatprep.subr.mxu0 0.0
        %1876 = vmatpush2.msra.mxu0 %v1515
        %1877 = vmatprep.subr.mxu0 0.0
        %1878 = vmatpush2.msra.mxu0 %v1514
        %1879 = vmatprep.subr.mxu0 0.0
        %1880 = vmatpush2.msra.mxu0 %v1513
        %1881 = vmatprep.subr.mxu0 0.0
        %1882 = vmatpush2.msra.mxu0 %v1512
        %1883 = vmatprep.subr.mxu0 0.0
        %1884 = vmatpush2.msra.mxu0 %v1511
        %1885 = vmatprep.subr.mxu0 0.0
        %1886 = vmatpush2.msra.mxu0 %v1510
        %1887 = vmatprep.subr.mxu0 0.0
        %1888 = vmatpush2.msra.mxu0 %v1509
        %1889 = vmatprep.subr.mxu0 0.0
        %1890 = vmatpush2.msra.mxu0 %v1508
        %1891 = vmatprep.subr.mxu0 0.0
        %1892 = vmatpush2.msra.mxu0 %v1507
        %1893 = vmatprep.subr.mxu0 0.0
        %1894 = vmatpush2.msra.mxu0 %v1506
        %1895 = vmatprep.subr.mxu0 0.0
        %1896 = vmatpush2.msra.mxu0 %v1505
        %1897 = vmatprep.mubr.f32.mxu0 %v1374
        %1898 = vmatmul.mubr.f32.gmra.mxu0 %v1373
        %v1899 = vpop.f32.mrf.mxu0
        %v1900 = vadd.f32 %v1825, %v1899
        %v1901 = vpop.f32.mrf.mxu0
        %1902 = vmatprep.mubr.f32.mxu0 %v1387
        %1903 = vmatmul.mubr.f32.gmra.mxu0 %v1386
        %v1904 = vpop.f32.mrf.mxu0
        %v1905 = vadd.f32 %v1830, %v1904
        %v1906 = vpop.f32.mrf.mxu0
        %1907 = vdwg.mxu0
        %1908 = vmatprep.subr.mxu0 0.0
        %1909 = vmatpush1.msra.mxu0 %v1536
        %1910 = vmatprep.subr.mxu0 0.0
        %1911 = vmatpush1.msra.mxu0 %v1535
        %1912 = vmatprep.subr.mxu0 0.0
        %1913 = vmatpush1.msra.mxu0 %v1534
        %1914 = vmatprep.subr.mxu0 0.0
        %1915 = vmatpush1.msra.mxu0 %v1533
        %1916 = vmatprep.subr.mxu0 0.0
        %1917 = vmatpush1.msra.mxu0 %v1532
        %1918 = vmatprep.subr.mxu0 0.0
        %1919 = vmatpush1.msra.mxu0 %v1531
        %1920 = vmatprep.subr.mxu0 0.0
        %1921 = vmatpush1.msra.mxu0 %v1530
        %1922 = vmatprep.subr.mxu0 0.0
        %1923 = vmatpush1.msra.mxu0 %v1529
        %1924 = vmatprep.subr.mxu0 0.0
        %1925 = vmatpush1.msra.mxu0 %v1528
        %1926 = vmatprep.subr.mxu0 0.0
        %1927 = vmatpush1.msra.mxu0 %v1527
        %1928 = vmatprep.subr.mxu0 0.0
        %1929 = vmatpush1.msra.mxu0 %v1526
        %1930 = vmatprep.subr.mxu0 0.0
        %1931 = vmatpush1.msra.mxu0 %v1525
        %1932 = vmatprep.subr.mxu0 0.0
        %1933 = vmatpush1.msra.mxu0 %v1524
        %1934 = vmatprep.subr.mxu0 0.0
        %1935 = vmatpush1.msra.mxu0 %v1523
        %1936 = vmatprep.subr.mxu0 0.0
        %1937 = vmatpush1.msra.mxu0 %v1522
        %1938 = vmatprep.subr.mxu0 0.0
        %1939 = vmatpush1.msra.mxu0 %v1521
        %1940 = vmatprep.subr.mxu0 0.0
        %1941 = vmatpush2.msra.mxu0 %v1552
        %1942 = vmatprep.subr.mxu0 0.0
        %1943 = vmatpush2.msra.mxu0 %v1551
        %1944 = vmatprep.subr.mxu0 0.0
        %1945 = vmatpush2.msra.mxu0 %v1550
        %1946 = vmatprep.subr.mxu0 0.0
        %1947 = vmatpush2.msra.mxu0 %v1549
        %1948 = vmatprep.subr.mxu0 0.0
        %1949 = vmatpush2.msra.mxu0 %v1548
        %1950 = vmatprep.subr.mxu0 0.0
        %1951 = vmatpush2.msra.mxu0 %v1547
        %1952 = vmatprep.subr.mxu0 0.0
        %1953 = vmatpush2.msra.mxu0 %v1546
        %1954 = vmatprep.subr.mxu0 0.0
        %1955 = vmatpush2.msra.mxu0 %v1545
        %1956 = vmatprep.subr.mxu0 0.0
        %1957 = vmatpush2.msra.mxu0 %v1544
        %1958 = vmatprep.subr.mxu0 0.0
        %1959 = vmatpush2.msra.mxu0 %v1543
        %1960 = vmatprep.subr.mxu0 0.0
        %1961 = vmatpush2.msra.mxu0 %v1542
        %1962 = vmatprep.subr.mxu0 0.0
        %1963 = vmatpush2.msra.mxu0 %v1541
        %1964 = vmatprep.subr.mxu0 0.0
        %1965 = vmatpush2.msra.mxu0 %v1540
        %1966 = vmatprep.subr.mxu0 0.0
        %1967 = vmatpush2.msra.mxu0 %v1539
        %1968 = vmatprep.subr.mxu0 0.0
        %1969 = vmatpush2.msra.mxu0 %v1538
        %1970 = vmatprep.subr.mxu0 0.0
        %1971 = vmatpush2.msra.mxu0 %v1537
        %1972 = vmatprep.mubr.f32.mxu0 %v1376
        %1973 = vmatmul.mubr.f32.gmra.mxu0 %v1375
        %v1974 = vpop.f32.mrf.mxu0
        %v1975 = vadd.f32 %v1900, %v1974
        %v1976 = vpop.f32.mrf.mxu0
        %1977 = vmatprep.mubr.f32.mxu0 %v1389
        %1978 = vmatmul.mubr.f32.gmra.mxu0 %v1388
        %v1979 = vpop.f32.mrf.mxu0
        %v1980 = vadd.f32 %v1905, %v1979
        %v1981 = vpop.f32.mrf.mxu0
        %1982 = vdwg.mxu0
        %1983 = vmatprep.subr.mxu0 0.0
        %1984 = vmatpush1.msra.mxu0 %v1568
        %1985 = vmatprep.subr.mxu0 0.0
        %1986 = vmatpush1.msra.mxu0 %v1567
        %1987 = vmatprep.subr.mxu0 0.0
        %1988 = vmatpush1.msra.mxu0 %v1566
        %1989 = vmatprep.subr.mxu0 0.0
        %1990 = vmatpush1.msra.mxu0 %v1565
        %1991 = vmatprep.subr.mxu0 0.0
        %1992 = vmatpush1.msra.mxu0 %v1564
        %1993 = vmatprep.subr.mxu0 0.0
        %1994 = vmatpush1.msra.mxu0 %v1563
        %1995 = vmatprep.subr.mxu0 0.0
        %1996 = vmatpush1.msra.mxu0 %v1562
        %1997 = vmatprep.subr.mxu0 0.0
        %1998 = vmatpush1.msra.mxu0 %v1561
        %1999 = vmatprep.subr.mxu0 0.0
        %2000 = vmatpush1.msra.mxu0 %v1560
        %2001 = vmatprep.subr.mxu0 0.0
        %2002 = vmatpush1.msra.mxu0 %v1559
        %2003 = vmatprep.subr.mxu0 0.0
        %2004 = vmatpush1.msra.mxu0 %v1558
        %2005 = vmatprep.subr.mxu0 0.0
        %2006 = vmatpush1.msra.mxu0 %v1557
        %2007 = vmatprep.subr.mxu0 0.0
        %2008 = vmatpush1.msra.mxu0 %v1556
        %2009 = vmatprep.subr.mxu0 0.0
        %2010 = vmatpush1.msra.mxu0 %v1555
        %2011 = vmatprep.subr.mxu0 0.0
        %2012 = vmatpush1.msra.mxu0 %v1554
        %2013 = vmatprep.subr.mxu0 0.0
        %2014 = vmatpush1.msra.mxu0 %v1553
        %2015 = vmatprep.subr.mxu0 0.0
        %2016 = vmatpush2.msra.mxu0 %v1584
        %2017 = vmatprep.subr.mxu0 0.0
        %2018 = vmatpush2.msra.mxu0 %v1583
        %2019 = vmatprep.subr.mxu0 0.0
        %2020 = vmatpush2.msra.mxu0 %v1582
        %2021 = vmatprep.subr.mxu0 0.0
        %2022 = vmatpush2.msra.mxu0 %v1581
        %2023 = vmatprep.subr.mxu0 0.0
        %2024 = vmatpush2.msra.mxu0 %v1580
        %2025 = vmatprep.subr.mxu0 0.0
        %2026 = vmatpush2.msra.mxu0 %v1579
        %2027 = vmatprep.subr.mxu0 0.0
        %2028 = vmatpush2.msra.mxu0 %v1578
        %2029 = vmatprep.subr.mxu0 0.0
        %2030 = vmatpush2.msra.mxu0 %v1577
        %2031 = vmatprep.subr.mxu0 0.0
        %2032 = vmatpush2.msra.mxu0 %v1576
        %2033 = vmatprep.subr.mxu0 0.0
        %2034 = vmatpush2.msra.mxu0 %v1575
        %2035 = vmatprep.subr.mxu0 0.0
        %2036 = vmatpush2.msra.mxu0 %v1574
        %2037 = vmatprep.subr.mxu0 0.0
        %2038 = vmatpush2.msra.mxu0 %v1573
        %2039 = vmatprep.subr.mxu0 0.0
        %2040 = vmatpush2.msra.mxu0 %v1572
        %2041 = vmatprep.subr.mxu0 0.0
        %2042 = vmatpush2.msra.mxu0 %v1571
        %2043 = vmatprep.subr.mxu0 0.0
        %2044 = vmatpush2.msra.mxu0 %v1570
        %2045 = vmatprep.subr.mxu0 0.0
        %2046 = vmatpush2.msra.mxu0 %v1569
        %2047 = vmatprep.mubr.f32.mxu0 %v1378
        %2048 = vmatmul.mubr.f32.gmra.mxu0 %v1377
        %v2049 = vpop.f32.mrf.mxu0
        %v2050 = vadd.f32 %v1975, %v2049
        %v2051 = vpop.f32.mrf.mxu0
        %2052 = vmatprep.mubr.f32.mxu0 %v1391
        %2053 = vmatmul.mubr.f32.gmra.mxu0 %v1390
        %v2054 = vpop.f32.mrf.mxu0
        %v2055 = vadd.f32 %v1980, %v2054
        %v2056 = vpop.f32.mrf.mxu0
        %2057 = vdwg.mxu0
        %2058 = vmatprep.subr.mxu0 0.0
        %2059 = vmatpush1.msra.mxu0 %v1600
        %2060 = vmatprep.subr.mxu0 0.0
        %2061 = vmatpush1.msra.mxu0 %v1599
        %2062 = vmatprep.subr.mxu0 0.0
        %2063 = vmatpush1.msra.mxu0 %v1598
        %2064 = vmatprep.subr.mxu0 0.0
        %2065 = vmatpush1.msra.mxu0 %v1597
        %2066 = vmatprep.subr.mxu0 0.0
        %2067 = vmatpush1.msra.mxu0 %v1596
        %2068 = vmatprep.subr.mxu0 0.0
        %2069 = vmatpush1.msra.mxu0 %v1595
        %2070 = vmatprep.subr.mxu0 0.0
        %2071 = vmatpush1.msra.mxu0 %v1594
        %2072 = vmatprep.subr.mxu0 0.0
        %2073 = vmatpush1.msra.mxu0 %v1593
        %2074 = vmatprep.subr.mxu0 0.0
        %2075 = vmatpush1.msra.mxu0 %v1592
        %2076 = vmatprep.subr.mxu0 0.0
        %2077 = vmatpush1.msra.mxu0 %v1591
        %2078 = vmatprep.subr.mxu0 0.0
        %2079 = vmatpush1.msra.mxu0 %v1590
        %2080 = vmatprep.subr.mxu0 0.0
        %2081 = vmatpush1.msra.mxu0 %v1589
        %2082 = vmatprep.subr.mxu0 0.0
        %2083 = vmatpush1.msra.mxu0 %v1588
        %2084 = vmatprep.subr.mxu0 0.0
        %2085 = vmatpush1.msra.mxu0 %v1587
        %2086 = vmatprep.subr.mxu0 0.0
        %2087 = vmatpush1.msra.mxu0 %v1586
        %2088 = vmatprep.subr.mxu0 0.0
        %2089 = vmatpush1.msra.mxu0 %v1585
        %2090 = vmatprep.subr.mxu0 0.0
        %2091 = vmatpush2.msra.mxu0 0.0
        %2092 = vmatprep.subr.mxu0 0.0
        %2093 = vmatpush2.msra.mxu0 0.0
        %2094 = vmatprep.subr.mxu0 0.0
        %2095 = vmatpush2.msra.mxu0 0.0
        %2096 = vmatprep.subr.mxu0 0.0
        %2097 = vmatpush2.msra.mxu0 0.0
        %2098 = vmatprep.subr.mxu0 0.0
        %2099 = vmatpush2.msra.mxu0 0.0
        %2100 = vmatprep.subr.mxu0 0.0
        %2101 = vmatpush2.msra.mxu0 0.0
        %2102 = vmatprep.subr.mxu0 0.0
        %2103 = vmatpush2.msra.mxu0 0.0
        %2104 = vmatprep.subr.mxu0 0.0
        %2105 = vmatpush2.msra.mxu0 0.0
        %2106 = vmatprep.subr.mxu0 0.0
        %2107 = vmatpush2.msra.mxu0 0.0
        %2108 = vmatprep.subr.mxu0 0.0
        %2109 = vmatpush2.msra.mxu0 0.0
        %2110 = vmatprep.subr.mxu0 0.0
        %2111 = vmatpush2.msra.mxu0 0.0
        %2112 = vmatprep.subr.mxu0 0.0
        %2113 = vmatpush2.msra.mxu0 0.0
        %2114 = vmatprep.subr.mxu0 0.0
        %2115 = vmatpush2.msra.mxu0 0.0
        %2116 = vmatprep.subr.mxu0 0.0
        %2117 = vmatpush2.msra.mxu0 0.0
        %2118 = vmatprep.subr.mxu0 0.0
        %2119 = vmatpush2.msra.mxu0 0.0
        %2120 = vmatprep.subr.mxu0 0.0
        %2121 = vmatpush2.msra.mxu0 0.0
        %2122 = vmatprep.mubr.f32.mxu0 0.0
        %2123 = vmatmul.mubr.f32.gmra.mxu0 %v1379
        %v2124 = vpop.f32.mrf.mxu0
        %v2125 = vadd.f32 %v2050, %v2124
        %v2126 = vpop.f32.mrf.mxu0
        %2127 = vmatprep.mubr.f32.mxu0 0.0
        %2128 = vmatmul.mubr.f32.gmra.mxu0 %v1392
        %v2129 = vpop.f32.mrf.mxu0
        %v2130 = vadd.f32 %v2055, %v2129
        %v2131 = vpop.f32.mrf.mxu0
        %2132 = vdwg.mxu0
        %v2133 = vmax.f32 %v2125, 0.0
        %v2134 = vmax.f32 %v2130, 0.0
        %v2135 = vsel %vm746, %v2133, 0.0
        %v2136 = vsel %vm748, %v2134, 0.0
        %v2137 = vadd.f32 %v2135, %v2136
        %v2138 = vrot.slane %v2137, 4
        %v2139 = vadd.f32 %v2137, %v2138
        %v2140 = vrot.slane %v2139, 2
        %v2141 = vadd.f32 %v2139, %v2140
        %v2142 = vrot.slane %v2141, 1
        %v2143 = vadd.f32 %v2141, %v2142
        %v2144 = vmul.f32 %v2143, 0.11111111
        %v2145 = vld [vmem:[%s11] sm:$0xff]
        %v2146 = vld [vmem:[%s11 + $0x8] sm:$0xff]
        %v2147 = vld [vmem:[%s11 + $0x10] sm:$0xff]
        %v2148 = vld [vmem:[%s11 + $0x18] sm:$0xff]
        %v2149 = vld [vmem:[%s11 + $0x20] sm:$0xff]
        %v2150 = vld [vmem:[%s11 + $0x28] sm:$0xff]
        %v2151 = vld [vmem:[%s11 + $0x30] sm:$0xff]
        %v2152 = vld [vmem:[%s11 + $0x38] sm:$0xff]
        %v2154 = vsel %vm746, %v2144, 0
        %2156 = vmatprep.subr.mxu0 0.0
        %2157 = vmatpush1.msra.mxu0 0.0
        %2158 = vmatprep.subr.mxu0 0.0
        %2159 = vmatpush1.msra.mxu0 0.0
        %2160 = vmatprep.subr.mxu0 0.0
        %2161 = vmatpush1.msra.mxu0 0.0
        %2162 = vmatprep.subr.mxu0 0.0
        %2163 = vmatpush1.msra.mxu0 0.0
        %2164 = vmatprep.subr.mxu0 0.0
        %2165 = vmatpush1.msra.mxu0 0.0
        %2166 = vmatprep.subr.mxu0 0.0
        %2167 = vmatpush1.msra.mxu0 0.0
        %2168 = vmatprep.subr.mxu0 0.0
        %2169 = vmatpush1.msra.mxu0 0.0
        %2170 = vmatprep.subr.mxu0 0.0
        %2171 = vmatpush1.msra.mxu0 0.0
        %2172 = vmatprep.subr.mxu0 0.0
        %2173 = vmatpush1.msra.mxu0 %v2152
        %2174 = vmatprep.subr.mxu0 0.0
        %2175 = vmatpush1.msra.mxu0 %v2151
        %2176 = vmatprep.subr.mxu0 0.0
        %2177 = vmatpush1.msra.mxu0 %v2150
        %2178 = vmatprep.subr.mxu0 0.0
        %2179 = vmatpush1.msra.mxu0 %v2149
        %2180 = vmatprep.subr.mxu0 0.0
        %2181 = vmatpush1.msra.mxu0 %v2148
        %2182 = vmatprep.subr.mxu0 0.0
        %2183 = vmatpush1.msra.mxu0 %v2147
        %2184 = vmatprep.subr.mxu0 0.0
        %2185 = vmatpush1.msra.mxu0 %v2146
        %2186 = vmatprep.subr.mxu0 0.0
        %2187 = vmatpush1.msra.mxu0 %v2145
        %2188 = vmatprep.subr.mxu0 0.0
        %2189 = vmatpush2.msra.mxu0 0.0
        %2190 = vmatprep.subr.mxu0 0.0
        %2191 = vmatpush2.msra.mxu0 0.0
        %2192 = vmatprep.subr.mxu0 0.0
        %2193 = vmatpush2.msra.mxu0 0.0
        %2194 = vmatprep.subr.mxu0 0.0
        %2195 = vmatpush2.msra.mxu0 0.0
        %2196 = vmatprep.subr.mxu0 0.0
        %2197 = vmatpush2.msra.mxu0 0.0
        %2198 = vmatprep.subr.mxu0 0.0
        %2199 = vmatpush2.msra.mxu0 0.0
        %2200 = vmatprep.subr.mxu0 0.0
        %2201 = vmatpush2.msra.mxu0 0.0
        %2202 = vmatprep.subr.mxu0 0.0
        %2203 = vmatpush2.msra.mxu0 0.0
        %2204 = vmatprep.subr.mxu0 0.0
        %2205 = vmatpush2.msra.mxu0 0.0
        %2206 = vmatprep.subr.mxu0 0.0
        %2207 = vmatpush2.msra.mxu0 0.0
        %2208 = vmatprep.subr.mxu0 0.0
        %2209 = vmatpush2.msra.mxu0 0.0
        %2210 = vmatprep.subr.mxu0 0.0
        %2211 = vmatpush2.msra.mxu0 0.0
        %2212 = vmatprep.subr.mxu0 0.0
        %2213 = vmatpush2.msra.mxu0 0.0
        %2214 = vmatprep.subr.mxu0 0.0
        %2215 = vmatpush2.msra.mxu0 0.0
        %2216 = vmatprep.subr.mxu0 0.0
        %2217 = vmatpush2.msra.mxu0 0.0
        %2218 = vmatprep.subr.mxu0 0.0
        %2219 = vmatpush2.msra.mxu0 0.0
        %2220 = vmatprep.mubr.f32.mxu0 0.0
        %2221 = vmatmul.mubr.f32.gmra.mxu0 %v2154
        %v2222 = vpop.f32.mrf.mxu0
        %v2223 = vadd.f32 0.0, %v2222
        %v2224 = vpop.f32.mrf.mxu0
        %2225 = vdwg.mxu0
        %v2226 = vadd.f32 %v1366, %v2223
        %v2227 = vmax.f32 %v2226, 0.0
        %v2228 = vld [vmem:[%s13] sm:$0xff]
        %v2229 = vld [vmem:[%s13 + $0x8] sm:$0xff]
        %v2230 = vld [vmem:[%s13 + $0x10] sm:$0xff]
        %v2231 = vld [vmem:[%s13 + $0x18] sm:$0xff]
        %v2232 = vld [vmem:[%s13 + $0x20] sm:$0xff]
        %v2233 = vld [vmem:[%s13 + $0x28] sm:$0xff]
        %v2234 = vld [vmem:[%s13 + $0x30] sm:$0xff]
        %v2235 = vld [vmem:[%s13 + $0x38] sm:$0xff]
        %v2236 = vld [vmem:[%s13 + $0x40] sm:$0xff]
        %v2237 = vld [vmem:[%s13 + $0x48] sm:$0xff]
        %v2238 = vld [vmem:[%s13 + $0x50] sm:$0xff]
        %v2239 = vld [vmem:[%s13 + $0x58] sm:$0xff]
        %v2240 = vld [vmem:[%s13 + $0x60] sm:$0xff]
        %v2241 = vld [vmem:[%s13 + $0x68] sm:$0xff]
        %v2242 = vld [vmem:[%s13 + $0x70] sm:$0xff]
        %v2243 = vld [vmem:[%s13 + $0x78] sm:$0xff]
        %v2244 = vld [vmem:[%s14] sm:$0x1]
        %2245 = vmatprep.subr.mxu0 0.0
        %2246 = vmatpush1.msra.mxu0 %v2243
        %2247 = vmatprep.subr.mxu0 0.0
        %2248 = vmatpush1.msra.mxu0 %v2242
        %2249 = vmatprep.subr.mxu0 0.0
        %2250 = vmatpush1.msra.mxu0 %v2241
        %2251 = vmatprep.subr.mxu0 0.0
        %2252 = vmatpush1.msra.mxu0 %v2240
        %2253 = vmatprep.subr.mxu0 0.0
        %2254 = vmatpush1.msra.mxu0 %v2239
        %2255 = vmatprep.subr.mxu0 0.0
        %2256 = vmatpush1.msra.mxu0 %v2238
        %2257 = vmatprep.subr.mxu0 0.0
        %2258 = vmatpush1.msra.mxu0 %v2237
        %2259 = vmatprep.subr.mxu0 0.0
        %2260 = vmatpush1.msra.mxu0 %v2236
        %2261 = vmatprep.subr.mxu0 0.0
        %2262 = vmatpush1.msra.mxu0 %v2235
        %2263 = vmatprep.subr.mxu0 0.0
        %2264 = vmatpush1.msra.mxu0 %v2234
        %2265 = vmatprep.subr.mxu0 0.0
        %2266 = vmatpush1.msra.mxu0 %v2233
        %2267 = vmatprep.subr.mxu0 0.0
        %2268 = vmatpush1.msra.mxu0 %v2232
        %2269 = vmatprep.subr.mxu0 0.0
        %2270 = vmatpush1.msra.mxu0 %v2231
        %2271 = vmatprep.subr.mxu0 0.0
        %2272 = vmatpush1.msra.mxu0 %v2230
        %2273 = vmatprep.subr.mxu0 0.0
        %2274 = vmatpush1.msra.mxu0 %v2229
        %2275 = vmatprep.subr.mxu0 0.0
        %2276 = vmatpush1.msra.mxu0 %v2228
        %2277 = vmatprep.subr.mxu0 0.0
        %2278 = vmatpush2.msra.mxu0 0.0
        %2279 = vmatprep.subr.mxu0 0.0
        %2280 = vmatpush2.msra.mxu0 0.0
        %2281 = vmatprep.subr.mxu0 0.0
        %2282 = vmatpush2.msra.mxu0 0.0
        %2283 = vmatprep.subr.mxu0 0.0
        %2284 = vmatpush2.msra.mxu0 0.0
        %2285 = vmatprep.subr.mxu0 0.0
        %2286 = vmatpush2.msra.mxu0 0.0
        %2287 = vmatprep.subr.mxu0 0.0
        %2288 = vmatpush2.msra.mxu0 0.0
        %2289 = vmatprep.subr.mxu0 0.0
        %2290 = vmatpush2.msra.mxu0 0.0
        %2291 = vmatprep.subr.mxu0 0.0
        %2292 = vmatpush2.msra.mxu0 0.0
        %2293 = vmatprep.subr.mxu0 0.0
        %2294 = vmatpush2.msra.mxu0 0.0
        %2295 = vmatprep.subr.mxu0 0.0
        %2296 = vmatpush2.msra.mxu0 0.0
        %2297 = vmatprep.subr.mxu0 0.0
        %2298 = vmatpush2.msra.mxu0 0.0
        %2299 = vmatprep.subr.mxu0 0.0
        %2300 = vmatpush2.msra.mxu0 0.0
        %2301 = vmatprep.subr.mxu0 0.0
        %2302 = vmatpush2.msra.mxu0 0.0
        %2303 = vmatprep.subr.mxu0 0.0
        %2304 = vmatpush2.msra.mxu0 0.0
        %2305 = vmatprep.subr.mxu0 0.0
        %2306 = vmatpush2.msra.mxu0 0.0
        %2307 = vmatprep.subr.mxu0 0.0
        %2308 = vmatpush2.msra.mxu0 0.0
        %2309 = vmatprep.mubr.f32.mxu0 0.0
        %2310 = vmatmul.mubr.f32.gmra.mxu0 %v2227
        %v2311 = vpop.f32.mrf.mxu0
        %v2312 = vadd.f32 %v2244, %v2311
        %v2313 = vpop.f32.mrf.mxu0
        %2314 = vdwg.mxu0
        %vm2315 = vcmask 16384
        %2316 = vst.msk [vmem:[%s516] sm:$0x1] %vm2315, %v2312
        %s2317 = sand.u32 %s367, 1
        %s2318 = scalar_lea.sflag [#allocation3], %s2317
        %s2319 = sand.u32 %s367, 1
        %s2320 = scalar_lea.vmem [#allocation2], %s2319
        // Predicated region
        $region81: #{multiscale_forward.3} parent=79 // pred_check
          %p2321 = pneg %p377
        $region82: #{multiscale_forward.3} parent=79 // pred_check_branch
          %2323 = sbr.rel (%p2321) target = $region84
        $region83: #{multiscale_forward.3} parent=79 // pred_region
          %s2325 = ssub.s32 16, 16
          %2326 = vsyncadd %s2318, %s2325
          %s2327 = smul.addr %s29, 16
          %s2328 = scalar_lea.hbm %s15, %s2327
          %s2330 = sshll.u32 %s2320, 4
          %s2331 = int_to_ptr.vmem [resolvable:$true] %s2330
          %2333 = dma.vmem_to_hbm [thread:$0]  %s2331, 16, %s2328, %s2318
        $region84: #{multiscale_forward.3} parent=79 // pred_fallthru
          _
      $region80: #{multiscale_forward.3} parent=5 // pred_fallthru
        _
      %p2334 = scmp.le.s32.totalorder 2, %s24
      // Predicated region
      $region85: #{multiscale_forward.3} parent=5 // pred_check
        %p2335 = pneg %p2334
      $region86: #{multiscale_forward.3} parent=5 // pred_check_branch
        %2337 = sbr.rel (%p2335) target = $region88
      $region87: #{multiscale_forward.3} parent=5 // pred_region
        %s2338 = ssub.s32 %s24, 2
        // Predicated region
        $region89: #{multiscale_forward.3} parent=87 // pred_check
          %p2339 = pneg %p383
        $region90: #{multiscale_forward.3} parent=87 // pred_check_branch
          %2341 = sbr.rel (%p2339) target = $region92
        $region91: #{multiscale_forward.3} parent=87 // pred_region
          %s2342 = sand.u32 %s368, 1
          %s2343 = scalar_lea.sflag [#allocation3], %s2342
          %s2344 = sand.u32 %s368, 1
          %s2345 = scalar_lea.vmem [#allocation2], %s2344
          %2346 = dma.done %s2343, 16
        $region92: #{multiscale_forward.3} parent=87 // pred_fallthru
          _
      $region88: #{multiscale_forward.3} parent=5 // pred_fallthru
        _
    $region6: #{multiscale_forward.3} parent=1 // loop_footer
      %s28 = sadd.s32 1, %s24
    $region7: #{multiscale_forward.3} parent=1 // loop_footer_branch
      %23 = sbr.rel target = $region3
    $region8: #{multiscale_forward.3} parent=1 // loop_exit
      _
    %2347 = vsyncpa [#allocation3], 1
    %s2348 = scalar_lea.sflag [#allocation3], 1
    %2349 = vsyncpa %s2348, 1

</llo_original>
